<compile_context>
chip_gen: v6e
topology: v6e:2x2x1
jax: 0.10.0
libtpu: 0.0.40
codegen_flags: <defaults>
</compile_context>

<pallas_src>
import functools
import numpy as np
import jax
import jax.numpy as jnp
from jax.experimental import pallas as pl
from jax.experimental.pallas import tpu as pltpu


# ----------------------------------------------------------------------------
# Host-side helpers (pure layout / constant construction, identical semantics
# to the PyTorch module / SwinTransformerBlock mask builder).
# ----------------------------------------------------------------------------
def relative_position_index(ws):
    coords = np.stack(np.meshgrid(np.arange(ws), np.arange(ws), indexing="ij"))  # (2, ws, ws)
    coords_flat = coords.reshape(2, -1)                                           # (2, N)
    rel = coords_flat[:, :, None] - coords_flat[:, None, :]                       # (2, N, N)
    rel = rel.transpose(1, 2, 0).astype(np.int64)                                 # (N, N, 2)
    rel[:, :, 0] += ws - 1
    rel[:, :, 1] += ws - 1
    rel[:, :, 0] *= 2 * ws - 1
    return rel.sum(-1)                                                            # (N, N)


def _np_window_partition(x, ws):
    B, H, W, C = x.shape
    x = x.reshape(B, H // ws, ws, W // ws, ws, C)
    return x.transpose(0, 1, 3, 2, 4, 5).reshape(-1, ws, ws, C)


def compute_attn_mask(H, W, ws, shift):
    """Standard shifted-window attention mask (0 / -100), shape (nW, N, N)."""
    img_mask = np.zeros((1, H, W, 1), np.float32)
    slices = (slice(0, -ws), slice(-ws, -shift), slice(-shift, None))
    cnt = 0
    for hs in slices:
        for wsl in slices:
            img_mask[:, hs, wsl, :] = cnt
            cnt += 1
    mw = _np_window_partition(img_mask, ws).reshape(-1, ws * ws)      # (nW, N)
    am = mw[:, None, :] - mw[:, :, None]                              # (nW, N, N)
    return np.where(am != 0, -100.0, 0.0).astype(np.float32)


def _round_up(x, m):
    return ((x + m - 1) // m) * m


def _pick_window_block(B_, nW_mask):
    """Largest W_BLK <= 16 dividing B_ (and nW when a mask is present)."""
    cap = min(B_, 16)
    for w in range(cap, 0, -1):
        if B_ % w == 0 and (nW_mask is None or nW_mask % w == 0):
            return w
    return 1


# ----------------------------------------------------------------------------
# Pallas kernels
# ----------------------------------------------------------------------------
def linear_kernel(x_ref, w_ref, b_ref, o_ref):
    """out = x @ W + b for one row tile (token-major GEMM)."""
    x = x_ref[...].astype(jnp.float32)
    y = jnp.dot(x, w_ref[...], preferred_element_type=jnp.float32) + b_ref[...]
    o_ref[...] = y.astype(o_ref.dtype)


def _attn_body(q_ref, k_ref, v_ref, bias_ref, mask_ref, o_ref, scale):
    """Batched (windows x heads) attention core: scores + bias(+mask) + softmax + A.V.

    Block shapes:
      q/k/v : (W_BLK, nH, N, hd)
      bias  : (nH, N, N)           (relative-position bias, resident)
      mask  : (W_BLK, N, N)        (optional shifted-window mask)
      out   : (W_BLK, nH, N, hd)
    """
    wb, nh, n, hd = q_ref.shape
    q = q_ref[...].astype(jnp.float32) * scale
    k = k_ref[...].astype(jnp.float32)
    v = v_ref[...].astype(jnp.float32)

    # Collapse (window, head) into one batch axis -> single batched matmul.
    qf = q.reshape(wb * nh, n, hd)
    kf = k.reshape(wb * nh, n, hd)
    vf = v.reshape(wb * nh, n, hd)

    s = jnp.einsum("bqd,bkd->bqk", qf, kf,
                   preferred_element_type=jnp.float32)                 # (wb*nh, n, n)
    s = s.reshape(wb, nh, n, n)
    s = s + bias_ref[...][None, :, :, :]                               # (1, nh, n, n) broadcast
    if mask_ref is not None:
        s = s + mask_ref[...][:, None, :, :]                           # (wb, 1, n, n) broadcast

    m = jnp.max(s, axis=-1, keepdims=True)
    p = jnp.exp(s - m)
    l = jnp.sum(p, axis=-1, keepdims=True)
    p = p * pl.reciprocal(l, approx=True)                              # EUP divide

    o = jnp.einsum("bqk,bkd->bqd",
                   p.reshape(wb * nh, n, n), vf,
                   preferred_element_type=jnp.float32)                 # (wb*nh, n, hd)
    o_ref[...] = o.reshape(wb, nh, n, hd).astype(o_ref.dtype)


def make_attn_core_kernel(scale, with_mask):
    if with_mask:
        def kernel(q_ref, k_ref, v_ref, bias_ref, mask_ref, o_ref):
            _attn_body(q_ref, k_ref, v_ref, bias_ref, mask_ref, o_ref, scale)
    else:
        def kernel(q_ref, k_ref, v_ref, bias_ref, o_ref):
            _attn_body(q_ref, k_ref, v_ref, bias_ref, None, o_ref, scale)
    return kernel


# ----------------------------------------------------------------------------
# Wrappers calling pallas_call
# ----------------------------------------------------------------------------
def linear_pallas(x, w, b, tm=256):
    """Row-tiled token-major GEMM: (T, K) @ (K, Nout) + (Nout,)."""
    T, K = x.shape
    Nout = w.shape[1]
    tm_eff = tm if T >= tm else _round_up(T, 8)
    T_pad = _round_up(T, tm_eff)
    xp = jnp.pad(x, ((0, T_pad - T), (0, 0))) if T_pad != T else x

    out = pl.pallas_call(
        linear_kernel,
        out_shape=jax.ShapeDtypeStruct((T_pad, Nout), x.dtype),
        grid=(T_pad // tm_eff,),
        in_specs=[
            pl.BlockSpec((tm_eff, K), lambda i: (i, 0)),
            pl.BlockSpec((K, Nout), lambda i: (0, 0)),     # resident weight
            pl.BlockSpec((1, Nout), lambda i: (0, 0)),     # resident bias
        ],
        out_specs=pl.BlockSpec((tm_eff, Nout), lambda i: (i, 0)),
        compiler_params=pltpu.CompilerParams(dimension_semantics=("parallel",)),
    )(xp, w, b.reshape(1, Nout))
    return out[:T] if T_pad != T else out


def window_attention_forward(x, params, num_heads, mask=None):
    """WindowAttention.forward: x (B_, N, C), optional mask (nW, N, N)."""
    B_, N, C = x.shape
    hd = C // num_heads
    scale = hd ** (-0.5)

    # --- QKV projection: one big token-major GEMM -----------------------------
    qkv = linear_pallas(x.reshape(B_ * N, C), params["wqkv"], params["bqkv"])   # (T, 3C)
    # Same split/permute as the PyTorch reshape(B_,N,3,nH,hd).permute(2,0,3,1,4)
    # (layout plumbing done wrapper-side so the kernel sees clean batched tiles).
    qkv = qkv.reshape(B_, N, 3, num_heads, hd).transpose(2, 0, 3, 1, 4)         # (3,B_,nH,N,hd)
    q, k, v = qkv[0], qkv[1], qkv[2]

    # --- relative-position bias (resident) + optional shift mask (per block) --
    rel_bias = params["rel_bias"].astype(jnp.float32)                           # (nH, N, N)

    if mask is not None:
        mask = mask.astype(jnp.float32)
        nW = int(mask.shape[0])
    else:
        nW = None

    w_blk = _pick_window_block(B_, nW)
    grid = (B_ // w_blk,)

    qkv_spec = pl.BlockSpec((w_blk, num_heads, N, hd), lambda b: (b, 0, 0, 0))
    bias_spec = pl.BlockSpec((num_heads, N, N), lambda b: (0, 0, 0))            # resident

    in_specs = [qkv_spec, qkv_spec, qkv_spec, bias_spec]
    args = (q, k, v, rel_bias)
    if mask is not None:
        nblk = nW // w_blk
        mask_spec = pl.BlockSpec((w_blk, N, N), lambda b: (b % nblk, 0, 0))
        in_specs.append(mask_spec)
        args = args + (mask,)

    attn_out = pl.pallas_call(
        make_attn_core_kernel(scale, mask is not None),
        out_shape=jax.ShapeDtypeStruct((B_, num_heads, N, hd), x.dtype),
        grid=grid,
        in_specs=in_specs,
        out_specs=pl.BlockSpec((w_blk, num_heads, N, hd), lambda b: (b, 0, 0, 0)),
        compiler_params=pltpu.CompilerParams(dimension_semantics=("parallel",)),
    )(*args)                                                                    # (B_, nH, N, hd)

    # --- output projection: one big token-major GEMM --------------------------
    y = attn_out.transpose(0, 2, 1, 3).reshape(B_ * N, C)
    out = linear_pallas(y, params["wproj"], params["bproj"])
    # TODO(synk): attn_drop / proj_drop are identity (rate 0.0 / eval mode).
    return out.reshape(B_, N, C)


# ----------------------------------------------------------------------------
# Pure-JAX reference (mirrors the PyTorch forward) for a correctness check.
# ----------------------------------------------------------------------------
def window_attention_ref(x, params, num_heads, mask=None):
    B_, N, C = x.shape
    hd = C // num_heads
    scale = hd ** (-0.5)
    qkv = x.reshape(B_ * N, C) @ params["wqkv"] + params["bqkv"]
    qkv = qkv.reshape(B_, N, 3, num_heads, hd).transpose(2, 0, 3, 1, 4)
    q, k, v = qkv[0] * scale, qkv[1], qkv[2]
    attn = jnp.einsum("bhqd,bhkd->bhqk", q, k)
    attn = attn + params["rel_bias"][None]
    if mask is not None:
        nW = mask.shape[0]
        attn = attn.reshape(B_ // nW, nW, num_heads, N, N) + mask[None, :, None]
        attn = attn.reshape(B_, num_heads, N, N)
    attn = jax.nn.softmax(attn, axis=-1)
    out = jnp.einsum("bhqk,bhkd->bhqd", attn, v)
    out = out.transpose(0, 2, 1, 3).reshape(B_ * N, C)
    out = out @ params["wproj"] + params["bproj"]
    return out.reshape(B_, N, C)


# ----------------------------------------------------------------------------
if __name__ == "__main__":
    # Small WindowAttention config: dim=32, window_size=(4,4), num_heads=4,
    # called the way SwinTransformerBlock does: B=2 images of 8x8 tokens
    # -> nW=4 windows each, B_ = 8 windows, N = 16 tokens/window.
    ws, C, num_heads = 4, 32, 4
    B, Hres, Wres = 2, 8, 8
    N = ws * ws
    nW = (Hres // ws) * (Wres // ws)
    B_ = B * nW
    hd = C // num_heads

    key = jax.random.PRNGKey(0)
    kx, kq, kp, kt = jax.random.split(key, 4)
    x = jax.random.normal(kx, (B_, N, C), jnp.float32)

    params = {
        "wqkv": jax.random.normal(kq, (C, 3 * C), jnp.float32) * 0.02,
        "bqkv": jnp.zeros((3 * C,), jnp.float32),
        "wproj": jax.random.normal(kp, (C, C), jnp.float32) * 0.02,
        "bproj": jnp.zeros((C,), jnp.float32),
    }
    # relative_position_bias_table gather -> (nH, N, N), same as the PyTorch buffer path.
    table = jax.random.normal(kt, ((2 * ws - 1) ** 2, num_heads), jnp.float32) * 0.02
    rpi = relative_position_index(ws)                                      # (N, N) numpy
    params["rel_bias"] = table[rpi.reshape(-1)].reshape(N, N, num_heads).transpose(2, 0, 1)

    # Shifted-window mask (SW-MSA case) as SwinTransformerBlock would pass it.
    mask = jnp.asarray(compute_attn_mask(Hres, Wres, ws, shift=ws // 2))   # (nW, N, N)

    fwd_masked = jax.jit(functools.partial(window_attention_forward,
                                           params=params, num_heads=num_heads, mask=mask))
    fwd_plain = jax.jit(functools.partial(window_attention_forward,
                                          params=params, num_heads=num_heads, mask=None))

    out_m = fwd_masked(x)
    out_p = fwd_plain(x)
    jax.block_until_ready((out_m, out_p))
    assert out_m.shape == (B_, N, C) and out_p.shape == (B_, N, C)

    # Numerical check against the pure-JAX reference of the PyTorch forward.
    ref_m = window_attention_ref(x, params, num_heads, mask)
    ref_p = window_attention_ref(x, params, num_heads, None)
    np.testing.assert_allclose(np.asarray(out_m), np.asarray(ref_m), rtol=5e-2, atol=5e-3)
    np.testing.assert_allclose(np.asarray(out_p), np.asarray(ref_p), rtol=5e-2, atol=5e-3)

    print("KERNEL_OK")
</pallas_src>

<mosaic_0001>
module attributes {stable_mosaic.version = 11 : i64} {
  func.func @linear_kernel(%arg0: i32, %arg1: memref<128x32xf32, #tpu.memory_space<vmem>>, %arg2: memref<32x96xf32, #tpu.memory_space<vmem>>, %arg3: memref<1x96xf32, #tpu.memory_space<vmem>>, %arg4: memref<128x96xf32, #tpu.memory_space<vmem>>) attributes {dimension_semantics = [#tpu.dimension_semantics<parallel>], iteration_bounds = array<i64: 1>, scalar_prefetch = 0 : i64, scratch_operands = 0 : i64, tpu.core_type = #tpu.core_type<tc>, window_params = [{transform_indices = @transform_0, window_bounds = array<i64: 128, 32>}, {pipeline_mode = #tpu.pipeline_mode<synchronous>, transform_indices = @transform_1, window_bounds = array<i64: 32, 96>}, {pipeline_mode = #tpu.pipeline_mode<synchronous>, transform_indices = @transform_2, window_bounds = array<i64: 1, 96>}, {transform_indices = @transform_3, window_bounds = array<i64: 128, 96>}]} {
    %c0 = arith.constant 0 : index
    %c0_0 = arith.constant 0 : index
    %0 = vector.load %arg1[%c0, %c0_0] : memref<128x32xf32, #tpu.memory_space<vmem>>, vector<128x32xf32>
    %c0_1 = arith.constant 0 : index
    %c0_2 = arith.constant 0 : index
    %1 = vector.load %arg2[%c0_1, %c0_2] : memref<32x96xf32, #tpu.memory_space<vmem>>, vector<32x96xf32>
    %cst = arith.constant dense<0.000000e+00> : vector<128x96xf32>
    %2 = tpu.matmul %0, %1, %cst {dimension_numbers = #tpu.dot_dimension_numbers<[1], [0], [0], [1], [0, 0, 1, 1], [], []>} : vector<128x32xf32>, vector<32x96xf32>, vector<128x96xf32> -> vector<128x96xf32>
    %c0_3 = arith.constant 0 : index
    %c0_4 = arith.constant 0 : index
    %3 = vector.load %arg3[%c0_3, %c0_4] : memref<1x96xf32, #tpu.memory_space<vmem>>, vector<1x96xf32>
    %4 = vector.broadcast %3 : vector<1x96xf32> to vector<128x96xf32>
    %5 = arith.addf %2, %4 : vector<128x96xf32>
    %c0_5 = arith.constant 0 : index
    %c0_6 = arith.constant 0 : index
    %6 = vector.load %arg4[%c0_5, %c0_6] : memref<128x96xf32, #tpu.memory_space<vmem>>, vector<128x96xf32>
    tpu.vector_store %arg4[%c0_5, %c0_6], %5 {strides = array<i32>} : memref<128x96xf32, #tpu.memory_space<vmem>>, vector<128x96xf32>,
    return
  }
  func.func @transform_0(%arg0: i32) -> (i32, i32) {
    %c0_i32 = arith.constant 0 : i32
    %c0_i32_0 = arith.constant 0 : i32
    return %arg0, %c0_i32 : i32, i32
  }
  func.func @transform_1(%arg0: i32) -> (i32, i32) {
    %c0_i32 = arith.constant 0 : i32
    %c0_i32_0 = arith.constant 0 : i32
    %c0_i32_1 = arith.constant 0 : i32
    return %c0_i32, %c0_i32_0 : i32, i32
  }
  func.func @transform_2(%arg0: i32) -> (i32, i32) {
    %c0_i32 = arith.constant 0 : i32
    %c0_i32_0 = arith.constant 0 : i32
    %c0_i32_1 = arith.constant 0 : i32
    return %c0_i32, %c0_i32_0 : i32, i32
  }
  func.func @transform_3(%arg0: i32) -> (i32, i32) {
    %c0_i32 = arith.constant 0 : i32
    %c0_i32_0 = arith.constant 0 : i32
    return %arg0, %c0_i32 : i32, i32
  }
}

module attributes {stable_mosaic.version = 11 : i64} {
  func.func @kernel(%arg0: i32, %arg1: memref<4x4x16x8xf32, #tpu.memory_space<vmem>>, %arg2: memref<4x4x16x8xf32, #tpu.memory_space<vmem>>, %arg3: memref<4x4x16x8xf32, #tpu.memory_space<vmem>>, %arg4: memref<4x16x16xf32, #tpu.memory_space<vmem>>, %arg5: memref<4x16x16xf32, #tpu.memory_space<vmem>>, %arg6: memref<4x4x16x8xf32, #tpu.memory_space<vmem>>) attributes {dimension_semantics = [#tpu.dimension_semantics<parallel>], iteration_bounds = array<i64: 2>, scalar_prefetch = 0 : i64, scratch_operands = 0 : i64, tpu.core_type = #tpu.core_type<tc>, window_params = [{transform_indices = @transform_0, window_bounds = array<i64: 4, 4, 16, 8>}, {transform_indices = @transform_1, window_bounds = array<i64: 4, 4, 16, 8>}, {transform_indices = @transform_2, window_bounds = array<i64: 4, 4, 16, 8>}, {pipeline_mode = #tpu.pipeline_mode<synchronous>, transform_indices = @transform_3, window_bounds = array<i64: 4, 16, 16>}, {transform_indices = @transform_4, window_bounds = array<i64: 4, 16, 16>}, {transform_indices = @transform_5, window_bounds = array<i64: 4, 4, 16, 8>}]} {
    %c0 = arith.constant 0 : index
    %c0_0 = arith.constant 0 : index
    %c0_1 = arith.constant 0 : index
    %c0_2 = arith.constant 0 : index
    %0 = vector.load %arg1[%c0, %c0_0, %c0_1, %c0_2] : memref<4x4x16x8xf32, #tpu.memory_space<vmem>>, vector<4x4x16x8xf32>
    %cst = arith.constant 0.353553385 : f32
    %1 = vector.broadcast %cst : f32 to vector<4x4x16x8xf32>
    %2 = arith.mulf %0, %1 : vector<4x4x16x8xf32>
    %c0_3 = arith.constant 0 : index
    %c0_4 = arith.constant 0 : index
    %c0_5 = arith.constant 0 : index
    %c0_6 = arith.constant 0 : index
    %3 = vector.load %arg2[%c0_3, %c0_4, %c0_5, %c0_6] : memref<4x4x16x8xf32, #tpu.memory_space<vmem>>, vector<4x4x16x8xf32>
    %c0_7 = arith.constant 0 : index
    %c0_8 = arith.constant 0 : index
    %c0_9 = arith.constant 0 : index
    %c0_10 = arith.constant 0 : index
    %4 = vector.load %arg3[%c0_7, %c0_8, %c0_9, %c0_10] : memref<4x4x16x8xf32, #tpu.memory_space<vmem>>, vector<4x4x16x8xf32>
    %5 = vector.shape_cast %2 : vector<4x4x16x8xf32> to vector<16x16x8xf32>
    %6 = vector.shape_cast %3 : vector<4x4x16x8xf32> to vector<16x16x8xf32>
    %7 = vector.shape_cast %4 : vector<4x4x16x8xf32> to vector<16x16x8xf32>
    "tpu.trace_start"() <{level = 10 : i32, message = "bqd,bkd->bqk"}> : () -> ()
    %cst_11 = arith.constant dense<0.000000e+00> : vector<16x16x16xf32>
    %8 = tpu.matmul %5, %6, %cst_11 {dimension_numbers = #tpu.dot_dimension_numbers<[2], [2], [1], [1], [0, 0, 0, 1, 1, 1], [0], [0]>} : vector<16x16x8xf32>, vector<16x16x8xf32>, vector<16x16x16xf32> -> vector<16x16x16xf32>
    "tpu.trace_stop"() : () -> ()
    %9 = vector.shape_cast %8 : vector<16x16x16xf32> to vector<4x4x16x16xf32>
    %c0_12 = arith.constant 0 : index
    %c0_13 = arith.constant 0 : index
    %c0_14 = arith.constant 0 : index
    %10 = vector.load %arg4[%c0_12, %c0_13, %c0_14] : memref<4x16x16xf32, #tpu.memory_space<vmem>>, vector<4x16x16xf32>
    %11 = vector.shape_cast %10 : vector<4x16x16xf32> to vector<1x4x16x16xf32>
    %12 = vector.broadcast %11 : vector<1x4x16x16xf32> to vector<4x4x16x16xf32>
    %13 = arith.addf %9, %12 : vector<4x4x16x16xf32>
    %c0_15 = arith.constant 0 : index
    %c0_16 = arith.constant 0 : index
    %c0_17 = arith.constant 0 : index
    %14 = vector.load %arg5[%c0_15, %c0_16, %c0_17] : memref<4x16x16xf32, #tpu.memory_space<vmem>>, vector<4x16x16xf32>
    %15 = vector.shape_cast %14 : vector<4x16x16xf32> to vector<4x1x16x16xf32>
    %16 = vector.broadcast %15 : vector<4x1x16x16xf32> to vector<4x4x16x16xf32>
    %17 = arith.addf %13, %16 : vector<4x4x16x16xf32>
    %cst_18 = arith.constant dense<0xFF800000> : vector<4x4x16xf32>
    %18 = vector.multi_reduction <maximumf>, %17, %cst_18 [3] : vector<4x4x16x16xf32> to vector<4x4x16xf32>
    %19 = vector.shape_cast %18 : vector<4x4x16xf32> to vector<4x4x16x1xf32>
    %20 = vector.broadcast %19 : vector<4x4x16x1xf32> to vector<4x4x16x16xf32>
    %21 = arith.subf %17, %20 : vector<4x4x16x16xf32>
    %22 = math.exp %21 : vector<4x4x16x16xf32>
    %cst_19 = arith.constant dense<0.000000e+00> : vector<4x4x16xf32>
    %23 = vector.multi_reduction <add>, %22, %cst_19 [3] : vector<4x4x16x16xf32> to vector<4x4x16xf32>
    %24 = vector.shape_cast %23 : vector<4x4x16xf32> to vector<4x4x16x1xf32>
    %25 = tpu.reciprocal %24 {approx = true} : vector<4x4x16x1xf32> -> vector<4x4x16x1xf32>
    %26 = vector.broadcast %25 : vector<4x4x16x1xf32> to vector<4x4x16x16xf32>
    %27 = arith.mulf %22, %26 : vector<4x4x16x16xf32>
    %28 = vector.shape_cast %27 : vector<4x4x16x16xf32> to vector<16x16x16xf32>
    "tpu.trace_start"() <{level = 10 : i32, message = "bqk,bkd->bqd"}> : () -> ()
    %cst_20 = arith.constant dense<0.000000e+00> : vector<16x16x8xf32>
    %29 = tpu.matmul %28, %7, %cst_20 {dimension_numbers = #tpu.dot_dimension_numbers<[2], [1], [1], [2], [0, 0, 0, 1, 1, 2], [0], [0]>} : vector<16x16x16xf32>, vector<16x16x8xf32>, vector<16x16x8xf32> -> vector<16x16x8xf32>
    "tpu.trace_stop"() : () -> ()
    %30 = vector.shape_cast %29 : vector<16x16x8xf32> to vector<4x4x16x8xf32>
    %c0_21 = arith.constant 0 : index
    %c0_22 = arith.constant 0 : index
    %c0_23 = arith.constant 0 : index
    %c0_24 = arith.constant 0 : index
    %31 = vector.load %arg6[%c0_21, %c0_22, %c0_23, %c0_24] : memref<4x4x16x8xf32, #tpu.memory_space<vmem>>, vector<4x4x16x8xf32>
    tpu.vector_store %arg6[%c0_21, %c0_22, %c0_23, %c0_24], %30 {strides = array<i32>} : memref<4x4x16x8xf32, #tpu.memory_space<vmem>>, vector<4x4x16x8xf32>,
    return
  }
  func.func @transform_0(%arg0: i32) -> (i32, i32, i32, i32) {
    %c0_i32 = arith.constant 0 : i32
    %c0_i32_0 = arith.constant 0 : i32
    %c0_i32_1 = arith.constant 0 : i32
    %c0_i32_2 = arith.constant 0 : i32
    return %arg0, %c0_i32, %c0_i32_0, %c0_i32_1 : i32, i32, i32, i32
  }
  func.func @transform_1(%arg0: i32) -> (i32, i32, i32, i32) {
    %c0_i32 = arith.constant 0 : i32
    %c0_i32_0 = arith.constant 0 : i32
    %c0_i32_1 = arith.constant 0 : i32
    %c0_i32_2 = arith.constant 0 : i32
    return %arg0, %c0_i32, %c0_i32_0, %c0_i32_1 : i32, i32, i32, i32
  }
  func.func @transform_2(%arg0: i32) -> (i32, i32, i32, i32) {
    %c0_i32 = arith.constant 0 : i32
    %c0_i32_0 = arith.constant 0 : i32
    %c0_i32_1 = arith.constant 0 : i32
    %c0_i32_2 = arith.constant 0 : i32
    return %arg0, %c0_i32, %c0_i32_0, %c0_i32_1 : i32, i32, i32, i32
  }
  func.func @transform_3(%arg0: i32) -> (i32, i32, i32) {
    %c0_i32 = arith.constant 0 : i32
    %c0_i32_0 = arith.constant 0 : i32
    %c0_i32_1 = arith.constant 0 : i32
    %c0_i32_2 = arith.constant 0 : i32
    return %c0_i32, %c0_i32_0, %c0_i32_1 : i32, i32, i32
  }
  func.func @transform_4(%arg0: i32) -> (i32, i32, i32) {
    %c1_i32 = arith.constant 1 : i32
    %c0_i32 = arith.constant 0 : i32
    %0 = arith.cmpi eq, %c1_i32, %c0_i32 : i32
    %c1_i32_0 = arith.constant 1 : i32
    %1 = arith.select %0, %c1_i32_0, %c1_i32 : i32
    %2 = arith.remsi %arg0, %1 : i32
    %c0_i32_1 = arith.constant 0 : i32
    %3 = arith.cmpi ne, %2, %c0_i32_1 : i32
    %c0_i32_2 = arith.constant 0 : i32
    %4 = arith.cmpi slt, %2, %c0_i32_2 : i32
    %c0_i32_3 = arith.constant 0 : i32
    %5 = arith.cmpi slt, %1, %c0_i32_3 : i32
    %6 = arith.xori %4, %5 : i1
    %7 = arith.andi %6, %3 : i1
    %8 = arith.addi %2, %1 : i32
    %9 = arith.select %7, %8, %2 : i32
    %c0_i32_4 = arith.constant 0 : i32
    %c0_i32_5 = arith.constant 0 : i32
    %c0_i32_6 = arith.constant 0 : i32
    return %9, %c0_i32_4, %c0_i32_5 : i32, i32, i32
  }
  func.func @transform_5(%arg0: i32) -> (i32, i32, i32, i32) {
    %c0_i32 = arith.constant 0 : i32
    %c0_i32_0 = arith.constant 0 : i32
    %c0_i32_1 = arith.constant 0 : i32
    %c0_i32_2 = arith.constant 0 : i32
    return %arg0, %c0_i32, %c0_i32_0, %c0_i32_1 : i32, i32, i32, i32
  }
}

module attributes {stable_mosaic.version = 11 : i64} {
  func.func @linear_kernel(%arg0: i32, %arg1: memref<128x32xf32, #tpu.memory_space<vmem>>, %arg2: memref<32x32xf32, #tpu.memory_space<vmem>>, %arg3: memref<1x32xf32, #tpu.memory_space<vmem>>, %arg4: memref<128x32xf32, #tpu.memory_space<vmem>>) attributes {dimension_semantics = [#tpu.dimension_semantics<parallel>], iteration_bounds = array<i64: 1>, scalar_prefetch = 0 : i64, scratch_operands = 0 : i64, tpu.core_type = #tpu.core_type<tc>, window_params = [{transform_indices = @transform_0, window_bounds = array<i64: 128, 32>}, {pipeline_mode = #tpu.pipeline_mode<synchronous>, transform_indices = @transform_1, window_bounds = array<i64: 32, 32>}, {pipeline_mode = #tpu.pipeline_mode<synchronous>, transform_indices = @transform_2, window_bounds = array<i64: 1, 32>}, {transform_indices = @transform_3, window_bounds = array<i64: 128, 32>}]} {
    %c0 = arith.constant 0 : index
    %c0_0 = arith.constant 0 : index
    %0 = vector.load %arg1[%c0, %c0_0] : memref<128x32xf32, #tpu.memory_space<vmem>>, vector<128x32xf32>
    %c0_1 = arith.constant 0 : index
    %c0_2 = arith.constant 0 : index
    %1 = vector.load %arg2[%c0_1, %c0_2] : memref<32x32xf32, #tpu.memory_space<vmem>>, vector<32x32xf32>
    %cst = arith.constant dense<0.000000e+00> : vector<128x32xf32>
    %2 = tpu.matmul %0, %1, %cst {dimension_numbers = #tpu.dot_dimension_numbers<[1], [0], [0], [1], [0, 0, 1, 1], [], []>} : vector<128x32xf32>, vector<32x32xf32>, vector<128x32xf32> -> vector<128x32xf32>
    %c0_3 = arith.constant 0 : index
    %c0_4 = arith.constant 0 : index
    %3 = vector.load %arg3[%c0_3, %c0_4] : memref<1x32xf32, #tpu.memory_space<vmem>>, vector<1x32xf32>
    %4 = vector.broadcast %3 : vector<1x32xf32> to vector<128x32xf32>
    %5 = arith.addf %2, %4 : vector<128x32xf32>
    %c0_5 = arith.constant 0 : index
    %c0_6 = arith.constant 0 : index
    %6 = vector.load %arg4[%c0_5, %c0_6] : memref<128x32xf32, #tpu.memory_space<vmem>>, vector<128x32xf32>
    tpu.vector_store %arg4[%c0_5, %c0_6], %5 {strides = array<i32>} : memref<128x32xf32, #tpu.memory_space<vmem>>, vector<128x32xf32>,
    return
  }
  func.func @transform_0(%arg0: i32) -> (i32, i32) {
    %c0_i32 = arith.constant 0 : i32
    %c0_i32_0 = arith.constant 0 : i32
    return %arg0, %c0_i32 : i32, i32
  }
  func.func @transform_1(%arg0: i32) -> (i32, i32) {
    %c0_i32 = arith.constant 0 : i32
    %c0_i32_0 = arith.constant 0 : i32
    %c0_i32_1 = arith.constant 0 : i32
    return %c0_i32, %c0_i32_0 : i32, i32
  }
  func.func @transform_2(%arg0: i32) -> (i32, i32) {
    %c0_i32 = arith.constant 0 : i32
    %c0_i32_0 = arith.constant 0 : i32
    %c0_i32_1 = arith.constant 0 : i32
    return %c0_i32, %c0_i32_0 : i32, i32
  }
  func.func @transform_3(%arg0: i32) -> (i32, i32) {
    %c0_i32 = arith.constant 0 : i32
    %c0_i32_0 = arith.constant 0 : i32
    return %arg0, %c0_i32 : i32, i32
  }
}

</mosaic_0001>

<llo_original>
// kernel: window_attention_forward.3
$region0: #{window_attention_forward.3}
  #allocation0 [shape = 'u32[]', space=smem, size = 0x4, offset = 0x4, fixed_abs, tag = 'smem constant byte address 0x4 - core index']
  #allocation1 [shape = 'u32[144,128]{1,0:T(1,128)}', space=vmem, size = 0x12000, scoped, tag = 'internal scratch']
  %s0 = inlined_call_operand.hbm [shape: f32[128,32], index: 0, kind: input, shape index: {}]
  %s1 = inlined_call_operand.hbm [shape: f32[32,96], index: 1, kind: input, shape index: {}]
  %s2 = inlined_call_operand.vmem [shape: f32[1,96], index: 2, kind: input, shape index: {}]
  %s3 = inlined_call_operand.vmem [shape: f32[128,96], index: 3, kind: output, shape index: {}]
  %s4 = sld [smem:[#allocation0]]
  $region30: #{window_attention_forward.3} parent=0
    _
  %s6 = ssub.s32 1, %s4
  %s7 = scalar_select 0, %s6, %s4
  $region1: #{window_attention_forward.3} parent=0
    #allocation2 [shape = 'u8[65536]{0}', space=vmem, size = 0x10000, scoped, tag = 'input window, operand 0, single buffered']
    #allocation3 [shape = 's32[1]{0}', space=sflag, size = 0x4, scoped, tag = 'scoped memory for window_attention_forward.3']
    #allocation4 [shape = 'u8[16384]{0}', space=vmem, size = 0x4000, scoped, tag = 'input window, operand 1, single buffered']
    #allocation5 [shape = 's32[1]{0}', space=sflag, size = 0x4, scoped, tag = 'scoped memory for window_attention_forward.3']
    %8 = vsyncpa [#allocation3], 0
    %9 = vsyncpa [#allocation5], 0
    // Predicated region
    $region2: #{window_attention_forward.3} parent=1 // pred_check
      _
    $region3: #{window_attention_forward.3} parent=1 // pred_check_branch
      %11 = sbr.rel (0) target = $region5
    $region4: #{window_attention_forward.3} parent=1 // pred_region
      %s13 = ssub.s32 2048, 2048
      %14 = vsyncadd [#allocation3], %s13
      %s15 = sshll.u32 [#allocation2], 4
      %s16 = int_to_ptr.vmem [resolvable:$true] %s15
      %21 = dma.hbm_to_vmem [thread:$0]  %s0, 2048, %s16, [#allocation3], 128, 128, 8
    $region5: #{window_attention_forward.3} parent=1 // pred_fallthru
      _
    // Predicated region
    $region6: #{window_attention_forward.3} parent=1 // pred_check
      _
    $region7: #{window_attention_forward.3} parent=1 // pred_check_branch
      %23 = sbr.rel (0) target = $region9
    $region8: #{window_attention_forward.3} parent=1 // pred_region
      %s25 = ssub.s32 512, 512
      %26 = vsyncadd [#allocation5], %s25
      %s27 = sshll.u32 [#allocation4], 4
      %s28 = int_to_ptr.vmem [resolvable:$true] %s27
      %33 = dma.hbm_to_vmem [thread:$0]  %s1, 512, %s28, [#allocation5], 128, 128, 8
    $region9: #{window_attention_forward.3} parent=1 // pred_fallthru
      _
    // Predicated region
    $region10: #{window_attention_forward.3} parent=1 // pred_check
      _
    $region11: #{window_attention_forward.3} parent=1 // pred_check_branch
      %35 = sbr.rel (0) target = $region13
    $region12: #{window_attention_forward.3} parent=1 // pred_region
      _
    $region13: #{window_attention_forward.3} parent=1 // pred_fallthru
      _
    // Predicated region
    $region14: #{window_attention_forward.3} parent=1 // pred_check
      _
    $region15: #{window_attention_forward.3} parent=1 // pred_check_branch
      %37 = sbr.rel (0) target = $region17
    $region16: #{window_attention_forward.3} parent=1 // pred_region
      %38 = dma.done [#allocation3], 2048
    $region17: #{window_attention_forward.3} parent=1 // pred_fallthru
      _
    // Predicated region
    $region18: #{window_attention_forward.3} parent=1 // pred_check
      _
    $region19: #{window_attention_forward.3} parent=1 // pred_check_branch
      %40 = sbr.rel (0) target = $region21
    $region20: #{window_attention_forward.3} parent=1 // pred_region
      %41 = dma.done [#allocation5], 512
    $region21: #{window_attention_forward.3} parent=1 // pred_fallthru
      _
    %v42 = vld [vmem:[#allocation2] sm:$0xff]
    %v43 = vld [vmem:[#allocation2 + $0x8] sm:$0xff]
    %v44 = vld [vmem:[#allocation2 + $0x10] sm:$0xff]
    %v45 = vld [vmem:[#allocation2 + $0x18] sm:$0xff]
    %v46 = vld [vmem:[#allocation2 + $0x20] sm:$0xff]
    %v47 = vld [vmem:[#allocation2 + $0x28] sm:$0xff]
    %v48 = vld [vmem:[#allocation2 + $0x30] sm:$0xff]
    %v49 = vld [vmem:[#allocation2 + $0x38] sm:$0xff]
    %v50 = vld [vmem:[#allocation2 + $0x40] sm:$0xff]
    %v51 = vld [vmem:[#allocation2 + $0x48] sm:$0xff]
    %v52 = vld [vmem:[#allocation2 + $0x50] sm:$0xff]
    %v53 = vld [vmem:[#allocation2 + $0x58] sm:$0xff]
    %v54 = vld [vmem:[#allocation2 + $0x60] sm:$0xff]
    %v55 = vld [vmem:[#allocation2 + $0x68] sm:$0xff]
    %v56 = vld [vmem:[#allocation2 + $0x70] sm:$0xff]
    %v57 = vld [vmem:[#allocation2 + $0x78] sm:$0xff]
    %v58 = vld [vmem:[#allocation4] sm:$0xff]
    %v59 = vld [vmem:[#allocation4 + $0x8] sm:$0xff]
    %v60 = vld [vmem:[#allocation4 + $0x10] sm:$0xff]
    %v61 = vld [vmem:[#allocation4 + $0x18] sm:$0xff]
    %v62 = vld [vmem:[%s2] sm:$0x1]
    %v64 = vlaneseq
    %v65 = vshrl.u32 %v64, 7
    %v66 = vsub.s32 0, %v65
    %v67 = vrot.slane %v62, %v66
    %vm69 = vcmask 261120
    %v71 = vsel %vm69, %v42, 0
    %v74 = vsel %vm69, %v43, 0
    %v77 = vsel %vm69, %v44, 0
    %v80 = vsel %vm69, %v45, 0
    %v83 = vsel %vm69, %v46, 0
    %v86 = vsel %vm69, %v47, 0
    %v89 = vsel %vm69, %v48, 0
    %v92 = vsel %vm69, %v49, 0
    %v95 = vsel %vm69, %v50, 0
    %v98 = vsel %vm69, %v51, 0
    %v101 = vsel %vm69, %v52, 0
    %v104 = vsel %vm69, %v53, 0
    %v107 = vsel %vm69, %v54, 0
    %v110 = vsel %vm69, %v55, 0
    %v113 = vsel %vm69, %v56, 0
    %v116 = vsel %vm69, %v57, 0
    %118 = vmatprep.subr.mxu0 0.0
    %119 = vmatpush1.msra.mxu0 0.0
    %120 = vmatprep.subr.mxu0 0.0
    %121 = vmatpush1.msra.mxu0 0.0
    %122 = vmatprep.subr.mxu0 0.0
    %123 = vmatpush1.msra.mxu0 0.0
    %124 = vmatprep.subr.mxu0 0.0
    %125 = vmatpush1.msra.mxu0 0.0
    %126 = vmatprep.subr.mxu0 0.0
    %127 = vmatpush1.msra.mxu0 0.0
    %128 = vmatprep.subr.mxu0 0.0
    %129 = vmatpush1.msra.mxu0 0.0
    %130 = vmatprep.subr.mxu0 0.0
    %131 = vmatpush1.msra.mxu0 0.0
    %132 = vmatprep.subr.mxu0 0.0
    %133 = vmatpush1.msra.mxu0 0.0
    %134 = vmatprep.subr.mxu0 0.0
    %135 = vmatpush1.msra.mxu0 0.0
    %136 = vmatprep.subr.mxu0 0.0
    %137 = vmatpush1.msra.mxu0 0.0
    %138 = vmatprep.subr.mxu0 0.0
    %139 = vmatpush1.msra.mxu0 0.0
    %140 = vmatprep.subr.mxu0 0.0
    %141 = vmatpush1.msra.mxu0 0.0
    %142 = vmatprep.subr.mxu0 0.0
    %143 = vmatpush1.msra.mxu0 %v61
    %144 = vmatprep.subr.mxu0 0.0
    %145 = vmatpush1.msra.mxu0 %v60
    %146 = vmatprep.subr.mxu0 0.0
    %147 = vmatpush1.msra.mxu0 %v59
    %148 = vmatprep.subr.mxu0 0.0
    %149 = vmatpush1.msra.mxu0 %v58
    %150 = vmatprep.subr.mxu0 0.0
    %151 = vmatpush2.msra.mxu0 0.0
    %152 = vmatprep.subr.mxu0 0.0
    %153 = vmatpush2.msra.mxu0 0.0
    %154 = vmatprep.subr.mxu0 0.0
    %155 = vmatpush2.msra.mxu0 0.0
    %156 = vmatprep.subr.mxu0 0.0
    %157 = vmatpush2.msra.mxu0 0.0
    %158 = vmatprep.subr.mxu0 0.0
    %159 = vmatpush2.msra.mxu0 0.0
    %160 = vmatprep.subr.mxu0 0.0
    %161 = vmatpush2.msra.mxu0 0.0
    %162 = vmatprep.subr.mxu0 0.0
    %163 = vmatpush2.msra.mxu0 0.0
    %164 = vmatprep.subr.mxu0 0.0
    %165 = vmatpush2.msra.mxu0 0.0
    %166 = vmatprep.subr.mxu0 0.0
    %167 = vmatpush2.msra.mxu0 0.0
    %168 = vmatprep.subr.mxu0 0.0
    %169 = vmatpush2.msra.mxu0 0.0
    %170 = vmatprep.subr.mxu0 0.0
    %171 = vmatpush2.msra.mxu0 0.0
    %172 = vmatprep.subr.mxu0 0.0
    %173 = vmatpush2.msra.mxu0 0.0
    %174 = vmatprep.subr.mxu0 0.0
    %175 = vmatpush2.msra.mxu0 0.0
    %176 = vmatprep.subr.mxu0 0.0
    %177 = vmatpush2.msra.mxu0 0.0
    %178 = vmatprep.subr.mxu0 0.0
    %179 = vmatpush2.msra.mxu0 0.0
    %180 = vmatprep.subr.mxu0 0.0
    %181 = vmatpush2.msra.mxu0 0.0
    %182 = vmatprep.mubr.f32.mxu0 0.0
    %183 = vmatmul.mubr.f32.gmra.mxu0 %v71
    %v184 = vpop.f32.mrf.mxu0
    %v185 = vadd.f32 %v67, %v184
    %v186 = vpop.f32.mrf.mxu0
    %187 = vmatprep.mubr.f32.mxu0 0.0
    %188 = vmatmul.mubr.f32.gmra.mxu0 %v74
    %v189 = vpop.f32.mrf.mxu0
    %v190 = vadd.f32 %v67, %v189
    %v191 = vpop.f32.mrf.mxu0
    %192 = vmatprep.mubr.f32.mxu0 0.0
    %193 = vmatmul.mubr.f32.gmra.mxu0 %v77
    %v194 = vpop.f32.mrf.mxu0
    %v195 = vadd.f32 %v67, %v194
    %v196 = vpop.f32.mrf.mxu0
    %197 = vmatprep.mubr.f32.mxu0 0.0
    %198 = vmatmul.mubr.f32.gmra.mxu0 %v80
    %v199 = vpop.f32.mrf.mxu0
    %v200 = vadd.f32 %v67, %v199
    %v201 = vpop.f32.mrf.mxu0
    %202 = vmatprep.mubr.f32.mxu0 0.0
    %203 = vmatmul.mubr.f32.gmra.mxu0 %v83
    %v204 = vpop.f32.mrf.mxu0
    %v205 = vadd.f32 %v67, %v204
    %v206 = vpop.f32.mrf.mxu0
    %207 = vmatprep.mubr.f32.mxu0 0.0
    %208 = vmatmul.mubr.f32.gmra.mxu0 %v86
    %v209 = vpop.f32.mrf.mxu0
    %v210 = vadd.f32 %v67, %v209
    %v211 = vpop.f32.mrf.mxu0
    %212 = vmatprep.mubr.f32.mxu0 0.0
    %213 = vmatmul.mubr.f32.gmra.mxu0 %v89
    %v214 = vpop.f32.mrf.mxu0
    %v215 = vadd.f32 %v67, %v214
    %v216 = vpop.f32.mrf.mxu0
    %217 = vmatprep.mubr.f32.mxu0 0.0
    %218 = vmatmul.mubr.f32.gmra.mxu0 %v92
    %v219 = vpop.f32.mrf.mxu0
    %v220 = vadd.f32 %v67, %v219
    %v221 = vpop.f32.mrf.mxu0
    %222 = vmatprep.mubr.f32.mxu0 0.0
    %223 = vmatmul.mubr.f32.gmra.mxu0 %v95
    %v224 = vpop.f32.mrf.mxu0
    %v225 = vadd.f32 %v67, %v224
    %v226 = vpop.f32.mrf.mxu0
    %227 = vmatprep.mubr.f32.mxu0 0.0
    %228 = vmatmul.mubr.f32.gmra.mxu0 %v98
    %v229 = vpop.f32.mrf.mxu0
    %v230 = vadd.f32 %v67, %v229
    %v231 = vpop.f32.mrf.mxu0
    %232 = vmatprep.mubr.f32.mxu0 0.0
    %233 = vmatmul.mubr.f32.gmra.mxu0 %v101
    %v234 = vpop.f32.mrf.mxu0
    %v235 = vadd.f32 %v67, %v234
    %v236 = vpop.f32.mrf.mxu0
    %237 = vmatprep.mubr.f32.mxu0 0.0
    %238 = vmatmul.mubr.f32.gmra.mxu0 %v104
    %v239 = vpop.f32.mrf.mxu0
    %v240 = vadd.f32 %v67, %v239
    %v241 = vpop.f32.mrf.mxu0
    %242 = vmatprep.mubr.f32.mxu0 0.0
    %243 = vmatmul.mubr.f32.gmra.mxu0 %v107
    %v244 = vpop.f32.mrf.mxu0
    %v245 = vadd.f32 %v67, %v244
    %v246 = vpop.f32.mrf.mxu0
    %247 = vmatprep.mubr.f32.mxu0 0.0
    %248 = vmatmul.mubr.f32.gmra.mxu0 %v110
    %v249 = vpop.f32.mrf.mxu0
    %v250 = vadd.f32 %v67, %v249
    %v251 = vpop.f32.mrf.mxu0
    %252 = vmatprep.mubr.f32.mxu0 0.0
    %253 = vmatmul.mubr.f32.gmra.mxu0 %v113
    %v254 = vpop.f32.mrf.mxu0
    %v255 = vadd.f32 %v67, %v254
    %v256 = vpop.f32.mrf.mxu0
    %257 = vmatprep.mubr.f32.mxu0 0.0
    %258 = vmatmul.mubr.f32.gmra.mxu0 %v116
    %v259 = vpop.f32.mrf.mxu0
    %v260 = vadd.f32 %v67, %v259
    %v261 = vpop.f32.mrf.mxu0
    %262 = vdwg.mxu0
    %vm263 = vcmask 785408
    %264 = vst.msk [vmem:[%s3] sm:$0xff] %vm263, %v185
    %265 = vst.msk [vmem:[%s3 + $0x8] sm:$0xff] %vm263, %v190
    %266 = vst.msk [vmem:[%s3 + $0x10] sm:$0xff] %vm263, %v195
    %267 = vst.msk [vmem:[%s3 + $0x18] sm:$0xff] %vm263, %v200
    %268 = vst.msk [vmem:[%s3 + $0x20] sm:$0xff] %vm263, %v205
    %269 = vst.msk [vmem:[%s3 + $0x28] sm:$0xff] %vm263, %v210
    %270 = vst.msk [vmem:[%s3 + $0x30] sm:$0xff] %vm263, %v215
    %271 = vst.msk [vmem:[%s3 + $0x38] sm:$0xff] %vm263, %v220
    %272 = vst.msk [vmem:[%s3 + $0x40] sm:$0xff] %vm263, %v225
    %273 = vst.msk [vmem:[%s3 + $0x48] sm:$0xff] %vm263, %v230
    %274 = vst.msk [vmem:[%s3 + $0x50] sm:$0xff] %vm263, %v235
    %275 = vst.msk [vmem:[%s3 + $0x58] sm:$0xff] %vm263, %v240
    %276 = vst.msk [vmem:[%s3 + $0x60] sm:$0xff] %vm263, %v245
    %277 = vst.msk [vmem:[%s3 + $0x68] sm:$0xff] %vm263, %v250
    %278 = vst.msk [vmem:[%s3 + $0x70] sm:$0xff] %vm263, %v255
    %279 = vst.msk [vmem:[%s3 + $0x78] sm:$0xff] %vm263, %v260
    // Predicated region
    $region22: #{window_attention_forward.3} parent=1 // pred_check
      _
    $region23: #{window_attention_forward.3} parent=1 // pred_check_branch
      %281 = sbr.rel (0) target = $region25
    $region24: #{window_attention_forward.3} parent=1 // pred_region
      _
    $region25: #{window_attention_forward.3} parent=1 // pred_fallthru
      _
    // Predicated region
    $region26: #{window_attention_forward.3} parent=1 // pred_check
      _
    $region27: #{window_attention_forward.3} parent=1 // pred_check_branch
      %283 = sbr.rel (0) target = $region29
    $region28: #{window_attention_forward.3} parent=1 // pred_region
      _
    $region29: #{window_attention_forward.3} parent=1 // pred_fallthru
      _
    %284 = vsyncpa [#allocation3], 1
    %285 = vsyncpa [#allocation5], 1

// kernel: window_attention_forward.5
$region0: #{window_attention_forward.5}
  #allocation0 [shape = 'u32[]', space=smem, size = 0x4, offset = 0x4, fixed_abs, tag = 'smem constant byte address 0x4 - core index']
  #allocation1 [shape = 'u32[144,128]{1,0:T(1,128)}', space=vmem, size = 0x12000, scoped, tag = 'internal scratch']
  %s0 = inlined_call_operand.vmem [shape: f32[128,32], index: 0, kind: input, shape index: {}]
  %s1 = inlined_call_operand.vmem [shape: f32[32,32], index: 1, kind: input, shape index: {}]
  %s2 = inlined_call_operand.vmem [shape: f32[1,32], index: 2, kind: input, shape index: {}]
  %s3 = inlined_call_operand.hbm [shape: f32[128,32], index: 3, kind: output, shape index: {}]
  %s4 = sld [smem:[#allocation0]]
  $region22: #{window_attention_forward.5} parent=0
    _
  %s6 = ssub.s32 1, %s4
  %s7 = scalar_select 0, %s6, %s4
  $region1: #{window_attention_forward.5} parent=0
    #allocation2 [shape = 'u8[65536]{0}', space=vmem, size = 0x10000, scoped, tag = 'output window, operand 0, single buffered']
    #allocation3 [shape = 's32[1]{0}', space=sflag, size = 0x4, scoped, tag = 'scoped memory for window_attention_forward.5']
    %8 = vsyncpa [#allocation3], 0
    // Predicated region
    $region2: #{window_attention_forward.5} parent=1 // pred_check
      _
    $region3: #{window_attention_forward.5} parent=1 // pred_check_branch
      %10 = sbr.rel (0) target = $region5
    $region4: #{window_attention_forward.5} parent=1 // pred_region
      _
    $region5: #{window_attention_forward.5} parent=1 // pred_fallthru
      _
    // Predicated region
    $region6: #{window_attention_forward.5} parent=1 // pred_check
      _
    $region7: #{window_attention_forward.5} parent=1 // pred_check_branch
      %12 = sbr.rel (0) target = $region9
    $region8: #{window_attention_forward.5} parent=1 // pred_region
      _
    $region9: #{window_attention_forward.5} parent=1 // pred_fallthru
      _
    // Predicated region
    $region10: #{window_attention_forward.5} parent=1 // pred_check
      _
    $region11: #{window_attention_forward.5} parent=1 // pred_check_branch
      %14 = sbr.rel (0) target = $region13
    $region12: #{window_attention_forward.5} parent=1 // pred_region
      _
    $region13: #{window_attention_forward.5} parent=1 // pred_fallthru
      _
    %v15 = vld [vmem:[%s0] sm:$0xff]
    %v16 = vld [vmem:[%s0 + $0x8] sm:$0xff]
    %v17 = vld [vmem:[%s0 + $0x10] sm:$0xff]
    %v18 = vld [vmem:[%s0 + $0x18] sm:$0xff]
    %v19 = vld [vmem:[%s0 + $0x20] sm:$0xff]
    %v20 = vld [vmem:[%s0 + $0x28] sm:$0xff]
    %v21 = vld [vmem:[%s0 + $0x30] sm:$0xff]
    %v22 = vld [vmem:[%s0 + $0x38] sm:$0xff]
    %v23 = vld [vmem:[%s0 + $0x40] sm:$0xff]
    %v24 = vld [vmem:[%s0 + $0x48] sm:$0xff]
    %v25 = vld [vmem:[%s0 + $0x50] sm:$0xff]
    %v26 = vld [vmem:[%s0 + $0x58] sm:$0xff]
    %v27 = vld [vmem:[%s0 + $0x60] sm:$0xff]
    %v28 = vld [vmem:[%s0 + $0x68] sm:$0xff]
    %v29 = vld [vmem:[%s0 + $0x70] sm:$0xff]
    %v30 = vld [vmem:[%s0 + $0x78] sm:$0xff]
    %v31 = vld [vmem:[%s1] sm:$0xff]
    %v32 = vld [vmem:[%s1 + $0x8] sm:$0xff]
    %v33 = vld [vmem:[%s1 + $0x10] sm:$0xff]
    %v34 = vld [vmem:[%s1 + $0x18] sm:$0xff]
    %v35 = vld [vmem:[%s2] sm:$0x1]
    %v37 = vlaneseq
    %v38 = vshrl.u32 %v37, 7
    %v39 = vsub.s32 0, %v38
    %v40 = vrot.slane %v35, %v39
    %vm42 = vcmask 261120
    %v44 = vsel %vm42, %v15, 0
    %v47 = vsel %vm42, %v16, 0
    %v50 = vsel %vm42, %v17, 0
    %v53 = vsel %vm42, %v18, 0
    %v56 = vsel %vm42, %v19, 0
    %v59 = vsel %vm42, %v20, 0
    %v62 = vsel %vm42, %v21, 0
    %v65 = vsel %vm42, %v22, 0
    %v68 = vsel %vm42, %v23, 0
    %v71 = vsel %vm42, %v24, 0
    %v74 = vsel %vm42, %v25, 0
    %v77 = vsel %vm42, %v26, 0
    %v80 = vsel %vm42, %v27, 0
    %v83 = vsel %vm42, %v28, 0
    %v86 = vsel %vm42, %v29, 0
    %v89 = vsel %vm42, %v30, 0
    %91 = vmatprep.subr.mxu0 0.0
    %92 = vmatpush1.msra.mxu0 0.0
    %93 = vmatprep.subr.mxu0 0.0
    %94 = vmatpush1.msra.mxu0 0.0
    %95 = vmatprep.subr.mxu0 0.0
    %96 = vmatpush1.msra.mxu0 0.0
    %97 = vmatprep.subr.mxu0 0.0
    %98 = vmatpush1.msra.mxu0 0.0
    %99 = vmatprep.subr.mxu0 0.0
    %100 = vmatpush1.msra.mxu0 0.0
    %101 = vmatprep.subr.mxu0 0.0
    %102 = vmatpush1.msra.mxu0 0.0
    %103 = vmatprep.subr.mxu0 0.0
    %104 = vmatpush1.msra.mxu0 0.0
    %105 = vmatprep.subr.mxu0 0.0
    %106 = vmatpush1.msra.mxu0 0.0
    %107 = vmatprep.subr.mxu0 0.0
    %108 = vmatpush1.msra.mxu0 0.0
    %109 = vmatprep.subr.mxu0 0.0
    %110 = vmatpush1.msra.mxu0 0.0
    %111 = vmatprep.subr.mxu0 0.0
    %112 = vmatpush1.msra.mxu0 0.0
    %113 = vmatprep.subr.mxu0 0.0
    %114 = vmatpush1.msra.mxu0 0.0
    %115 = vmatprep.subr.mxu0 0.0
    %116 = vmatpush1.msra.mxu0 %v34
    %117 = vmatprep.subr.mxu0 0.0
    %118 = vmatpush1.msra.mxu0 %v33
    %119 = vmatprep.subr.mxu0 0.0
    %120 = vmatpush1.msra.mxu0 %v32
    %121 = vmatprep.subr.mxu0 0.0
    %122 = vmatpush1.msra.mxu0 %v31
    %123 = vmatprep.subr.mxu0 0.0
    %124 = vmatpush2.msra.mxu0 0.0
    %125 = vmatprep.subr.mxu0 0.0
    %126 = vmatpush2.msra.mxu0 0.0
    %127 = vmatprep.subr.mxu0 0.0
    %128 = vmatpush2.msra.mxu0 0.0
    %129 = vmatprep.subr.mxu0 0.0
    %130 = vmatpush2.msra.mxu0 0.0
    %131 = vmatprep.subr.mxu0 0.0
    %132 = vmatpush2.msra.mxu0 0.0
    %133 = vmatprep.subr.mxu0 0.0
    %134 = vmatpush2.msra.mxu0 0.0
    %135 = vmatprep.subr.mxu0 0.0
    %136 = vmatpush2.msra.mxu0 0.0
    %137 = vmatprep.subr.mxu0 0.0
    %138 = vmatpush2.msra.mxu0 0.0
    %139 = vmatprep.subr.mxu0 0.0
    %140 = vmatpush2.msra.mxu0 0.0
    %141 = vmatprep.subr.mxu0 0.0
    %142 = vmatpush2.msra.mxu0 0.0
    %143 = vmatprep.subr.mxu0 0.0
    %144 = vmatpush2.msra.mxu0 0.0
    %145 = vmatprep.subr.mxu0 0.0
    %146 = vmatpush2.msra.mxu0 0.0
    %147 = vmatprep.subr.mxu0 0.0
    %148 = vmatpush2.msra.mxu0 0.0
    %149 = vmatprep.subr.mxu0 0.0
    %150 = vmatpush2.msra.mxu0 0.0
    %151 = vmatprep.subr.mxu0 0.0
    %152 = vmatpush2.msra.mxu0 0.0
    %153 = vmatprep.subr.mxu0 0.0
    %154 = vmatpush2.msra.mxu0 0.0
    %155 = vmatprep.mubr.f32.mxu0 0.0
    %156 = vmatmul.mubr.f32.gmra.mxu0 %v44
    %v157 = vpop.f32.mrf.mxu0
    %v158 = vadd.f32 %v40, %v157
    %v159 = vpop.f32.mrf.mxu0
    %160 = vmatprep.mubr.f32.mxu0 0.0
    %161 = vmatmul.mubr.f32.gmra.mxu0 %v47
    %v162 = vpop.f32.mrf.mxu0
    %v163 = vadd.f32 %v40, %v162
    %v164 = vpop.f32.mrf.mxu0
    %165 = vmatprep.mubr.f32.mxu0 0.0
    %166 = vmatmul.mubr.f32.gmra.mxu0 %v50
    %v167 = vpop.f32.mrf.mxu0
    %v168 = vadd.f32 %v40, %v167
    %v169 = vpop.f32.mrf.mxu0
    %170 = vmatprep.mubr.f32.mxu0 0.0
    %171 = vmatmul.mubr.f32.gmra.mxu0 %v53
    %v172 = vpop.f32.mrf.mxu0
    %v173 = vadd.f32 %v40, %v172
    %v174 = vpop.f32.mrf.mxu0
    %175 = vmatprep.mubr.f32.mxu0 0.0
    %176 = vmatmul.mubr.f32.gmra.mxu0 %v56
    %v177 = vpop.f32.mrf.mxu0
    %v178 = vadd.f32 %v40, %v177
    %v179 = vpop.f32.mrf.mxu0
    %180 = vmatprep.mubr.f32.mxu0 0.0
    %181 = vmatmul.mubr.f32.gmra.mxu0 %v59
    %v182 = vpop.f32.mrf.mxu0
    %v183 = vadd.f32 %v40, %v182
    %v184 = vpop.f32.mrf.mxu0
    %185 = vmatprep.mubr.f32.mxu0 0.0
    %186 = vmatmul.mubr.f32.gmra.mxu0 %v62
    %v187 = vpop.f32.mrf.mxu0
    %v188 = vadd.f32 %v40, %v187
    %v189 = vpop.f32.mrf.mxu0
    %190 = vmatprep.mubr.f32.mxu0 0.0
    %191 = vmatmul.mubr.f32.gmra.mxu0 %v65
    %v192 = vpop.f32.mrf.mxu0
    %v193 = vadd.f32 %v40, %v192
    %v194 = vpop.f32.mrf.mxu0
    %195 = vmatprep.mubr.f32.mxu0 0.0
    %196 = vmatmul.mubr.f32.gmra.mxu0 %v68
    %v197 = vpop.f32.mrf.mxu0
    %v198 = vadd.f32 %v40, %v197
    %v199 = vpop.f32.mrf.mxu0
    %200 = vmatprep.mubr.f32.mxu0 0.0
    %201 = vmatmul.mubr.f32.gmra.mxu0 %v71
    %v202 = vpop.f32.mrf.mxu0
    %v203 = vadd.f32 %v40, %v202
    %v204 = vpop.f32.mrf.mxu0
    %205 = vmatprep.mubr.f32.mxu0 0.0
    %206 = vmatmul.mubr.f32.gmra.mxu0 %v74
    %v207 = vpop.f32.mrf.mxu0
    %v208 = vadd.f32 %v40, %v207
    %v209 = vpop.f32.mrf.mxu0
    %210 = vmatprep.mubr.f32.mxu0 0.0
    %211 = vmatmul.mubr.f32.gmra.mxu0 %v77
    %v212 = vpop.f32.mrf.mxu0
    %v213 = vadd.f32 %v40, %v212
    %v214 = vpop.f32.mrf.mxu0
    %215 = vmatprep.mubr.f32.mxu0 0.0
    %216 = vmatmul.mubr.f32.gmra.mxu0 %v80
    %v217 = vpop.f32.mrf.mxu0
    %v218 = vadd.f32 %v40, %v217
    %v219 = vpop.f32.mrf.mxu0
    %220 = vmatprep.mubr.f32.mxu0 0.0
    %221 = vmatmul.mubr.f32.gmra.mxu0 %v83
    %v222 = vpop.f32.mrf.mxu0
    %v223 = vadd.f32 %v40, %v222
    %v224 = vpop.f32.mrf.mxu0
    %225 = vmatprep.mubr.f32.mxu0 0.0
    %226 = vmatmul.mubr.f32.gmra.mxu0 %v86
    %v227 = vpop.f32.mrf.mxu0
    %v228 = vadd.f32 %v40, %v227
    %v229 = vpop.f32.mrf.mxu0
    %230 = vmatprep.mubr.f32.mxu0 0.0
    %231 = vmatmul.mubr.f32.gmra.mxu0 %v89
    %v232 = vpop.f32.mrf.mxu0
    %v233 = vadd.f32 %v40, %v232
    %v234 = vpop.f32.mrf.mxu0
    %235 = vdwg.mxu0
    %236 = vst.msk [vmem:[#allocation2] sm:$0xff] %vm42, %v158
    %237 = vst.msk [vmem:[#allocation2 + $0x8] sm:$0xff] %vm42, %v163
    %238 = vst.msk [vmem:[#allocation2 + $0x10] sm:$0xff] %vm42, %v168
    %239 = vst.msk [vmem:[#allocation2 + $0x18] sm:$0xff] %vm42, %v173
    %240 = vst.msk [vmem:[#allocation2 + $0x20] sm:$0xff] %vm42, %v178
    %241 = vst.msk [vmem:[#allocation2 + $0x28] sm:$0xff] %vm42, %v183
    %242 = vst.msk [vmem:[#allocation2 + $0x30] sm:$0xff] %vm42, %v188
    %243 = vst.msk [vmem:[#allocation2 + $0x38] sm:$0xff] %vm42, %v193
    %244 = vst.msk [vmem:[#allocation2 + $0x40] sm:$0xff] %vm42, %v198
    %245 = vst.msk [vmem:[#allocation2 + $0x48] sm:$0xff] %vm42, %v203
    %246 = vst.msk [vmem:[#allocation2 + $0x50] sm:$0xff] %vm42, %v208
    %247 = vst.msk [vmem:[#allocation2 + $0x58] sm:$0xff] %vm42, %v213
    %248 = vst.msk [vmem:[#allocation2 + $0x60] sm:$0xff] %vm42, %v218
    %249 = vst.msk [vmem:[#allocation2 + $0x68] sm:$0xff] %vm42, %v223
    %250 = vst.msk [vmem:[#allocation2 + $0x70] sm:$0xff] %vm42, %v228
    %251 = vst.msk [vmem:[#allocation2 + $0x78] sm:$0xff] %vm42, %v233
    // Predicated region
    $region14: #{window_attention_forward.5} parent=1 // pred_check
      _
    $region15: #{window_attention_forward.5} parent=1 // pred_check_branch
      %253 = sbr.rel (0) target = $region17
    $region16: #{window_attention_forward.5} parent=1 // pred_region
      %s255 = ssub.s32 2048, 2048
      %256 = vsyncadd [#allocation3], %s255
      %s257 = sshll.u32 [#allocation2], 4
      %s258 = int_to_ptr.vmem [resolvable:$true] %s257
      %263 = dma.vmem_to_hbm [thread:$0]  %s258, 2048, %s3, [#allocation3], 128, 128, 8
    $region17: #{window_attention_forward.5} parent=1 // pred_fallthru
      _
    // Predicated region
    $region18: #{window_attention_forward.5} parent=1 // pred_check
      _
    $region19: #{window_attention_forward.5} parent=1 // pred_check_branch
      %265 = sbr.rel (0) target = $region21
    $region20: #{window_attention_forward.5} parent=1 // pred_region
      %266 = dma.done [#allocation3], 2048
    $region21: #{window_attention_forward.5} parent=1 // pred_fallthru
      _
    %267 = vsyncpa [#allocation3], 1

// kernel: window_attention_forward.4
$region0: #{window_attention_forward.4}
  #allocation0 [shape = 'u32[]', space=smem, size = 0x4, offset = 0x4, fixed_abs, tag = 'smem constant byte address 0x4 - core index']
  #allocation1 [shape = 'u32[144,128]{1,0:T(1,128)}', space=vmem, size = 0x12000, scoped, tag = 'internal scratch']
  %s0 = inlined_call_operand.vmem [shape: f32[8,4,16,8], index: 0, kind: input, shape index: {}]
  %s1 = inlined_call_operand.vmem [shape: f32[8,4,16,8], index: 1, kind: input, shape index: {}]
  %s2 = inlined_call_operand.vmem [shape: f32[8,4,16,8], index: 2, kind: input, shape index: {}]
  %s3 = inlined_call_operand.vmem [shape: f32[4,16,16], index: 3, kind: input, shape index: {}]
  %s4 = inlined_call_operand.vmem [shape: f32[4,16,16], index: 4, kind: input, shape index: {}]
  %s5 = inlined_call_operand.vmem [shape: f32[8,4,16,8], index: 5, kind: output, shape index: {}]
  %s6 = sld [smem:[#allocation0]]
  $region53: #{window_attention_forward.4} parent=0
    _
  %s8 = ssub.s32 1, %s6
  %s9 = scalar_select 0, %s8, %s6
  loop: start=0, step=1, limit=4
  $region2: #{window_attention_forward.4} parent=0 // loop_pre_header
    _
  $region3: #{window_attention_forward.4} parent=0 // loop_header
    %s11 = sphi 0, %s15
    %p12 = scmp.ge.s32.totalorder %s11, 4
    %s21 = sphi 0, %s23
    %s24 = sphi 0, %s21
    %s25 = sphi 0, %s24
    %s41 = sphi 0, %s25
    %s47 = sphi 0, %s49
    %s50 = sphi 0, %s47
    %s51 = sphi 0, %s50
    %s67 = sphi 0, %s51
    %s73 = sphi 0, %s75
    %s76 = sphi 0, %s73
    %s77 = sphi 0, %s76
    %s93 = sphi 0, %s77
    %s97 = sphi 0, %s97
    %s99 = sphi 0, %s97
    %s100 = sphi 0, %s99
    %s114 = sphi 0, %s100
    %s118 = sphi 0, %s118
    %s120 = sphi 0, %s118
    %s121 = sphi 0, %s120
    %s135 = sphi 0, %s121
    %s141 = sphi 0, %s143
    %s144 = sphi 0, %s141
    %s145 = sphi 0, %s144
    %s161 = sphi 0, %s145
  $region4: #{window_attention_forward.4} parent=0 // loop_header_branch
    %14 = sbr.rel (%p12) target = $region8
  $region5: #{window_attention_forward.4} parent=0 // loop_body
    %s16 = ssub.s32 %s11, 1
    %s17 = ssub.s32 %s11, 2
    %s18 = sadd.s32 %s11, 1
    %s19 = ssub.s32 %s11, %s18
    %p20 = scmp.eq.s32.totalorder %s19, 0
    %s22 = sadd.s32 %s21, 1
    %s23 = scalar_select %p20, %s21, %s22
    %p26 = pneg %p20
    %p27 = scmp.eq.s32.totalorder %s11, 1
    %p28 = por %p26, %p27
    %p29 = scmp.ne.s32.totalorder %s21, %s24
    %p30 = scmp.eq.s32.totalorder %s11, 0
    %p31 = por %p29, %p30
    %p32 = scmp.ne.s32.totalorder %s21, %s24
    %p33 = scmp.eq.s32.totalorder %s16, 1
    %p34 = por %p32, %p33
    %p35 = scmp.ne.s32.totalorder %s24, %s25
    %p36 = scmp.eq.s32.totalorder %s16, 0
    %p37 = por %p35, %p36
    %p38 = scmp.ne.s32.totalorder %s24, %s25
    %p39 = scmp.eq.s32.totalorder %s17, 1
    %p40 = por %p38, %p39
    %p42 = scmp.ne.s32.totalorder %s25, %s41
    %p43 = scmp.eq.s32.totalorder %s17, 0
    %p44 = por %p42, %p43
    %s45 = ssub.s32 %s11, %s18
    %p46 = scmp.eq.s32.totalorder %s45, 0
    %s48 = sadd.s32 %s47, 1
    %s49 = scalar_select %p46, %s47, %s48
    %p52 = pneg %p46
    %p53 = scmp.eq.s32.totalorder %s11, 1
    %p54 = por %p52, %p53
    %p55 = scmp.ne.s32.totalorder %s47, %s50
    %p56 = scmp.eq.s32.totalorder %s11, 0
    %p57 = por %p55, %p56
    %p58 = scmp.ne.s32.totalorder %s47, %s50
    %p59 = scmp.eq.s32.totalorder %s16, 1
    %p60 = por %p58, %p59
    %p61 = scmp.ne.s32.totalorder %s50, %s51
    %p62 = scmp.eq.s32.totalorder %s16, 0
    %p63 = por %p61, %p62
    %p64 = scmp.ne.s32.totalorder %s50, %s51
    %p65 = scmp.eq.s32.totalorder %s17, 1
    %p66 = por %p64, %p65
    %p68 = scmp.ne.s32.totalorder %s51, %s67
    %p69 = scmp.eq.s32.totalorder %s17, 0
    %p70 = por %p68, %p69
    %s71 = ssub.s32 %s11, %s18
    %p72 = scmp.eq.s32.totalorder %s71, 0
    %s74 = sadd.s32 %s73, 1
    %s75 = scalar_select %p72, %s73, %s74
    %p78 = pneg %p72
    %p79 = scmp.eq.s32.totalorder %s11, 1
    %p80 = por %p78, %p79
    %p81 = scmp.ne.s32.totalorder %s73, %s76
    %p82 = scmp.eq.s32.totalorder %s11, 0
    %p83 = por %p81, %p82
    %p84 = scmp.ne.s32.totalorder %s73, %s76
    %p85 = scmp.eq.s32.totalorder %s16, 1
    %p86 = por %p84, %p85
    %p87 = scmp.ne.s32.totalorder %s76, %s77
    %p88 = scmp.eq.s32.totalorder %s16, 0
    %p89 = por %p87, %p88
    %p90 = scmp.ne.s32.totalorder %s76, %s77
    %p91 = scmp.eq.s32.totalorder %s17, 1
    %p92 = por %p90, %p91
    %p94 = scmp.ne.s32.totalorder %s77, %s93
    %p95 = scmp.eq.s32.totalorder %s17, 0
    %p96 = por %p94, %p95
    %s98 = sadd.s32 %s97, 1
    %p101 = scmp.eq.s32.totalorder %s11, 1
    %p102 = scmp.ne.s32.totalorder %s97, %s99
    %p103 = scmp.eq.s32.totalorder %s11, 0
    %p104 = por %p102, %p103
    %p105 = scmp.ne.s32.totalorder %s97, %s99
    %p106 = scmp.eq.s32.totalorder %s16, 1
    %p107 = por %p105, %p106
    %p108 = scmp.ne.s32.totalorder %s99, %s100
    %p109 = scmp.eq.s32.totalorder %s16, 0
    %p110 = por %p108, %p109
    %p111 = scmp.ne.s32.totalorder %s99, %s100
    %p112 = scmp.eq.s32.totalorder %s17, 1
    %p113 = por %p111, %p112
    %p115 = scmp.ne.s32.totalorder %s100, %s114
    %p116 = scmp.eq.s32.totalorder %s17, 0
    %p117 = por %p115, %p116
    %s119 = sadd.s32 %s118, 1
    %p122 = scmp.eq.s32.totalorder %s11, 1
    %p123 = scmp.ne.s32.totalorder %s118, %s120
    %p124 = scmp.eq.s32.totalorder %s11, 0
    %p125 = por %p123, %p124
    %p126 = scmp.ne.s32.totalorder %s118, %s120
    %p127 = scmp.eq.s32.totalorder %s16, 1
    %p128 = por %p126, %p127
    %p129 = scmp.ne.s32.totalorder %s120, %s121
    %p130 = scmp.eq.s32.totalorder %s16, 0
    %p131 = por %p129, %p130
    %p132 = scmp.ne.s32.totalorder %s120, %s121
    %p133 = scmp.eq.s32.totalorder %s17, 1
    %p134 = por %p132, %p133
    %p136 = scmp.ne.s32.totalorder %s121, %s135
    %p137 = scmp.eq.s32.totalorder %s17, 0
    %p138 = por %p136, %p137
    %s139 = ssub.s32 %s11, %s18
    %p140 = scmp.eq.s32.totalorder %s139, 0
    %s142 = sadd.s32 %s141, 1
    %s143 = scalar_select %p140, %s141, %s142
    %p146 = pneg %p140
    %p147 = scmp.eq.s32.totalorder %s11, 1
    %p148 = por %p146, %p147
    %p149 = scmp.ne.s32.totalorder %s141, %s144
    %p150 = scmp.eq.s32.totalorder %s11, 0
    %p151 = por %p149, %p150
    %p152 = scmp.ne.s32.totalorder %s141, %s144
    %p153 = scmp.eq.s32.totalorder %s16, 1
    %p154 = por %p152, %p153
    %p155 = scmp.ne.s32.totalorder %s144, %s145
    %p156 = scmp.eq.s32.totalorder %s16, 0
    %p157 = por %p155, %p156
    %p158 = scmp.ne.s32.totalorder %s144, %s145
    %p159 = scmp.eq.s32.totalorder %s17, 1
    %p160 = por %p158, %p159
    %p162 = scmp.ne.s32.totalorder %s145, %s161
    %p163 = scmp.eq.s32.totalorder %s17, 0
    %p164 = por %p162, %p163
    %p165 = scmp.le.s32.totalorder 1, %s11
    %p166 = scmp.lt.s32.totalorder %s11, 3
    %p167 = pnand %p165, %p166
    %p168 = pneg %p167
    // Predicated region
    $region9: #{window_attention_forward.4} parent=5 // pred_check
      _
    $region10: #{window_attention_forward.4} parent=5 // pred_check_branch
      %170 = sbr.rel (%p167) target = $region12
    $region11: #{window_attention_forward.4} parent=5 // pred_region
      %s171 = ssub.s32 %s11, 1
      // Predicated region
      $region13: #{window_attention_forward.4} parent=11 // pred_check
        %p172 = pneg %p110
      $region14: #{window_attention_forward.4} parent=11 // pred_check_branch
        %174 = sbr.rel (%p172) target = $region16
      $region15: #{window_attention_forward.4} parent=11 // pred_region
        _
      $region16: #{window_attention_forward.4} parent=11 // pred_fallthru
        _
      // Predicated region
      $region17: #{window_attention_forward.4} parent=11 // pred_check
        %p175 = pneg %p131
      $region18: #{window_attention_forward.4} parent=11 // pred_check_branch
        %177 = sbr.rel (%p175) target = $region20
      $region19: #{window_attention_forward.4} parent=11 // pred_region
        _
      $region20: #{window_attention_forward.4} parent=11 // pred_fallthru
        _
    $region12: #{window_attention_forward.4} parent=5 // pred_fallthru
      _
    %p178 = scmp.lt.s32.totalorder %s11, 2
    // Predicated region
    $region21: #{window_attention_forward.4} parent=5 // pred_check
      %p179 = pneg %p178
    $region22: #{window_attention_forward.4} parent=5 // pred_check_branch
      %181 = sbr.rel (%p179) target = $region24
    $region23: #{window_attention_forward.4} parent=5 // pred_region
      // Predicated region
      $region25: #{window_attention_forward.4} parent=23 // pred_check
        %p182 = pneg %p31
      $region26: #{window_attention_forward.4} parent=23 // pred_check_branch
        %184 = sbr.rel (%p182) target = $region28
      $region27: #{window_attention_forward.4} parent=23 // pred_region
        %s185 = smul.u32 4, %s11
        %p186 = scmp.lt.s32.totalorder %s185, 7
        %s187 = scalar_select %p186, %s185, 7
        %s188 = smul.addr %s187, 8
        %s189 = smul.addr %s188, 8
        %s190 = scalar_lea.vmem %s0, %s189
        %s191 = smul.u32 4, %s11
      $region28: #{window_attention_forward.4} parent=23 // pred_fallthru
        _
      // Predicated region
      $region29: #{window_attention_forward.4} parent=23 // pred_check
        %p192 = pneg %p57
      $region30: #{window_attention_forward.4} parent=23 // pred_check_branch
        %194 = sbr.rel (%p192) target = $region32
      $region31: #{window_attention_forward.4} parent=23 // pred_region
        %s195 = smul.u32 4, %s11
        %p196 = scmp.lt.s32.totalorder %s195, 7
        %s197 = scalar_select %p196, %s195, 7
        %s198 = smul.addr %s197, 8
        %s199 = smul.addr %s198, 8
        %s200 = scalar_lea.vmem %s1, %s199
        %s201 = smul.u32 4, %s11
      $region32: #{window_attention_forward.4} parent=23 // pred_fallthru
        _
      // Predicated region
      $region33: #{window_attention_forward.4} parent=23 // pred_check
        %p202 = pneg %p83
      $region34: #{window_attention_forward.4} parent=23 // pred_check_branch
        %204 = sbr.rel (%p202) target = $region36
      $region35: #{window_attention_forward.4} parent=23 // pred_region
        %s205 = smul.u32 4, %s11
        %p206 = scmp.lt.s32.totalorder %s205, 7
        %s207 = scalar_select %p206, %s205, 7
        %s208 = smul.addr %s207, 8
        %s209 = smul.addr %s208, 8
        %s210 = scalar_lea.vmem %s2, %s209
        %s211 = smul.u32 4, %s11
      $region36: #{window_attention_forward.4} parent=23 // pred_fallthru
        _
    $region24: #{window_attention_forward.4} parent=5 // pred_fallthru
      _
    %p212 = scmp.le.s32.totalorder 1, %s11
    %p213 = scmp.lt.s32.totalorder %s11, 3
    %p214 = pnand %p212, %p213
    %p215 = pneg %p214
    // Predicated region
    $region37: #{window_attention_forward.4} parent=5 // pred_check
      _
    $region38: #{window_attention_forward.4} parent=5 // pred_check_branch
      %217 = sbr.rel (%p214) target = $region40
    $region39: #{window_attention_forward.4} parent=5 // pred_region
      %s218 = ssub.s32 %s11, 1
      %s219 = smul.u32 4, %s16
      %p220 = scmp.lt.s32.totalorder %s219, 7
      %s221 = scalar_select %p220, %s219, 7
      %s222 = smul.addr %s221, 8
      %s223 = smul.addr %s222, 8
      %s224 = scalar_lea.vmem %s0, %s223
      %p225 = pneg %p37
      %p226 = pneg %p34
      %s227 = smul.u32 4, %s16
      %p228 = scmp.lt.s32.totalorder %s227, 7
      %s229 = scalar_select %p228, %s227, 7
      %s230 = smul.addr %s229, 8
      %s231 = smul.addr %s230, 8
      %s232 = scalar_lea.vmem %s1, %s231
      %p233 = pneg %p63
      %p234 = pneg %p60
      %s235 = smul.u32 4, %s16
      %p236 = scmp.lt.s32.totalorder %s235, 7
      %s237 = scalar_select %p236, %s235, 7
      %s238 = smul.addr %s237, 8
      %s239 = smul.addr %s238, 8
      %s240 = scalar_lea.vmem %s2, %s239
      %p241 = pneg %p89
      %p242 = pneg %p86
      %p243 = pneg %p110
      %p244 = pneg %p107
      %p245 = pneg %p131
      %p246 = pneg %p128
      %p247 = pneg %p157
      %p248 = pneg %p154
      %s249 = smul.u32 4, %s16
      %p250 = scmp.lt.s32.totalorder %s249, 7
      %s251 = scalar_select %p250, %s249, 7
      %s252 = smul.addr %s251, 8
      %s253 = smul.addr %s252, 8
      %s254 = scalar_lea.vmem %s5, %s253
      %s255 = smul.u32 4, %s16
      %p256 = scmp.lt.s32.totalorder %s255, 7
      %s257 = scalar_select %p256, %s255, 7
      %s258 = smul.addr %s257, 8
      %s259 = smul.addr %s258, 8
      %s260 = scalar_lea.vmem %s0, %s259
      %s261 = smul.u32 4, %s16
      %s262 = smul.u32 4, %s16
      %p263 = scmp.lt.s32.totalorder %s262, 7
      %s264 = scalar_select %p263, %s262, 7
      %s265 = smul.addr %s264, 8
      %s266 = smul.addr %s265, 8
      %s267 = scalar_lea.vmem %s1, %s266
      %s268 = smul.u32 4, %s16
      %s269 = smul.u32 4, %s16
      %p270 = scmp.lt.s32.totalorder %s269, 7
      %s271 = scalar_select %p270, %s269, 7
      %s272 = smul.addr %s271, 8
      %s273 = smul.addr %s272, 8
      %s274 = scalar_lea.vmem %s2, %s273
      %s275 = smul.u32 4, %s16
      %s276 = smul.u32 4, %s16
      %p277 = scmp.lt.s32.totalorder %s276, 7
      %s278 = scalar_select %p277, %s276, 7
      %s279 = smul.addr %s278, 8
      %s280 = smul.addr %s279, 8
      %s281 = scalar_lea.vmem %s5, %s280
      %s282 = smul.u32 4, %s16
      %v283 = vld [vmem:[%s260] sm:$0xff]
      %v284 = vld [vmem:[%s260 + $0x8] sm:$0xff]
      %v285 = vld [vmem:[%s260 + $0x10] sm:$0xff]
      %v286 = vld [vmem:[%s260 + $0x18] sm:$0xff]
      %v287 = vld [vmem:[%s260 + $0x20] sm:$0xff]
      %v288 = vld [vmem:[%s260 + $0x28] sm:$0xff]
      %v289 = vld [vmem:[%s260 + $0x30] sm:$0xff]
      %v290 = vld [vmem:[%s260 + $0x38] sm:$0xff]
      %v291 = vld [vmem:[%s260 + $0x40] sm:$0xff]
      %v292 = vld [vmem:[%s260 + $0x48] sm:$0xff]
      %v293 = vld [vmem:[%s260 + $0x50] sm:$0xff]
      %v294 = vld [vmem:[%s260 + $0x58] sm:$0xff]
      %v295 = vld [vmem:[%s260 + $0x60] sm:$0xff]
      %v296 = vld [vmem:[%s260 + $0x68] sm:$0xff]
      %v297 = vld [vmem:[%s260 + $0x70] sm:$0xff]
      %v298 = vld [vmem:[%s260 + $0x78] sm:$0xff]
      %v299 = vld [vmem:[%s260 + $0x80] sm:$0xff]
      %v300 = vld [vmem:[%s260 + $0x88] sm:$0xff]
      %v301 = vld [vmem:[%s260 + $0x90] sm:$0xff]
      %v302 = vld [vmem:[%s260 + $0x98] sm:$0xff]
      %v303 = vld [vmem:[%s260 + $0xa0] sm:$0xff]
      %v304 = vld [vmem:[%s260 + $0xa8] sm:$0xff]
      %v305 = vld [vmem:[%s260 + $0xb0] sm:$0xff]
      %v306 = vld [vmem:[%s260 + $0xb8] sm:$0xff]
      %v307 = vld [vmem:[%s260 + $0xc0] sm:$0xff]
      %v308 = vld [vmem:[%s260 + $0xc8] sm:$0xff]
      %v309 = vld [vmem:[%s260 + $0xd0] sm:$0xff]
      %v310 = vld [vmem:[%s260 + $0xd8] sm:$0xff]
      %v311 = vld [vmem:[%s260 + $0xe0] sm:$0xff]
      %v312 = vld [vmem:[%s260 + $0xe8] sm:$0xff]
      %v313 = vld [vmem:[%s260 + $0xf0] sm:$0xff]
      %v314 = vld [vmem:[%s260 + $0xf8] sm:$0xff]
      %v315 = vmul.f32 %v283, 0.35355338
      %v316 = vmul.f32 %v284, 0.35355338
      %v317 = vmul.f32 %v285, 0.35355338
      %v318 = vmul.f32 %v286, 0.35355338
      %v319 = vmul.f32 %v287, 0.35355338
      %v320 = vmul.f32 %v288, 0.35355338
      %v321 = vmul.f32 %v289, 0.35355338
      %v322 = vmul.f32 %v290, 0.35355338
      %v323 = vmul.f32 %v291, 0.35355338
      %v324 = vmul.f32 %v292, 0.35355338
      %v325 = vmul.f32 %v293, 0.35355338
      %v326 = vmul.f32 %v294, 0.35355338
      %v327 = vmul.f32 %v295, 0.35355338
      %v328 = vmul.f32 %v296, 0.35355338
      %v329 = vmul.f32 %v297, 0.35355338
      %v330 = vmul.f32 %v298, 0.35355338
      %v331 = vmul.f32 %v299, 0.35355338
      %v332 = vmul.f32 %v300, 0.35355338
      %v333 = vmul.f32 %v301, 0.35355338
      %v334 = vmul.f32 %v302, 0.35355338
      %v335 = vmul.f32 %v303, 0.35355338
      %v336 = vmul.f32 %v304, 0.35355338
      %v337 = vmul.f32 %v305, 0.35355338
      %v338 = vmul.f32 %v306, 0.35355338
      %v339 = vmul.f32 %v307, 0.35355338
      %v340 = vmul.f32 %v308, 0.35355338
      %v341 = vmul.f32 %v309, 0.35355338
      %v342 = vmul.f32 %v310, 0.35355338
      %v343 = vmul.f32 %v311, 0.35355338
      %v344 = vmul.f32 %v312, 0.35355338
      %v345 = vmul.f32 %v313, 0.35355338
      %v346 = vmul.f32 %v314, 0.35355338
      %v347 = vld [vmem:[%s267] sm:$0xff]
      %v348 = vld [vmem:[%s267 + $0x8] sm:$0xff]
      %v349 = vld [vmem:[%s267 + $0x10] sm:$0xff]
      %v350 = vld [vmem:[%s267 + $0x18] sm:$0xff]
      %v351 = vld [vmem:[%s267 + $0x20] sm:$0xff]
      %v352 = vld [vmem:[%s267 + $0x28] sm:$0xff]
      %v353 = vld [vmem:[%s267 + $0x30] sm:$0xff]
      %v354 = vld [vmem:[%s267 + $0x38] sm:$0xff]
      %v355 = vld [vmem:[%s267 + $0x40] sm:$0xff]
      %v356 = vld [vmem:[%s267 + $0x48] sm:$0xff]
      %v357 = vld [vmem:[%s267 + $0x50] sm:$0xff]
      %v358 = vld [vmem:[%s267 + $0x58] sm:$0xff]
      %v359 = vld [vmem:[%s267 + $0x60] sm:$0xff]
      %v360 = vld [vmem:[%s267 + $0x68] sm:$0xff]
      %v361 = vld [vmem:[%s267 + $0x70] sm:$0xff]
      %v362 = vld [vmem:[%s267 + $0x78] sm:$0xff]
      %v363 = vld [vmem:[%s267 + $0x80] sm:$0xff]
      %v364 = vld [vmem:[%s267 + $0x88] sm:$0xff]
      %v365 = vld [vmem:[%s267 + $0x90] sm:$0xff]
      %v366 = vld [vmem:[%s267 + $0x98] sm:$0xff]
      %v367 = vld [vmem:[%s267 + $0xa0] sm:$0xff]
      %v368 = vld [vmem:[%s267 + $0xa8] sm:$0xff]
      %v369 = vld [vmem:[%s267 + $0xb0] sm:$0xff]
      %v370 = vld [vmem:[%s267 + $0xb8] sm:$0xff]
      %v371 = vld [vmem:[%s267 + $0xc0] sm:$0xff]
      %v372 = vld [vmem:[%s267 + $0xc8] sm:$0xff]
      %v373 = vld [vmem:[%s267 + $0xd0] sm:$0xff]
      %v374 = vld [vmem:[%s267 + $0xd8] sm:$0xff]
      %v375 = vld [vmem:[%s267 + $0xe0] sm:$0xff]
      %v376 = vld [vmem:[%s267 + $0xe8] sm:$0xff]
      %v377 = vld [vmem:[%s267 + $0xf0] sm:$0xff]
      %v378 = vld [vmem:[%s267 + $0xf8] sm:$0xff]
      %v379 = vld [vmem:[%s274] sm:$0xff]
      %v380 = vld [vmem:[%s274 + $0x8] sm:$0xff]
      %v381 = vld [vmem:[%s274 + $0x10] sm:$0xff]
      %v382 = vld [vmem:[%s274 + $0x18] sm:$0xff]
      %v383 = vld [vmem:[%s274 + $0x20] sm:$0xff]
      %v384 = vld [vmem:[%s274 + $0x28] sm:$0xff]
      %v385 = vld [vmem:[%s274 + $0x30] sm:$0xff]
      %v386 = vld [vmem:[%s274 + $0x38] sm:$0xff]
      %v387 = vld [vmem:[%s274 + $0x40] sm:$0xff]
      %v388 = vld [vmem:[%s274 + $0x48] sm:$0xff]
      %v389 = vld [vmem:[%s274 + $0x50] sm:$0xff]
      %v390 = vld [vmem:[%s274 + $0x58] sm:$0xff]
      %v391 = vld [vmem:[%s274 + $0x60] sm:$0xff]
      %v392 = vld [vmem:[%s274 + $0x68] sm:$0xff]
      %v393 = vld [vmem:[%s274 + $0x70] sm:$0xff]
      %v394 = vld [vmem:[%s274 + $0x78] sm:$0xff]
      %v395 = vld [vmem:[%s274 + $0x80] sm:$0xff]
      %v396 = vld [vmem:[%s274 + $0x88] sm:$0xff]
      %v397 = vld [vmem:[%s274 + $0x90] sm:$0xff]
      %v398 = vld [vmem:[%s274 + $0x98] sm:$0xff]
      %v399 = vld [vmem:[%s274 + $0xa0] sm:$0xff]
      %v400 = vld [vmem:[%s274 + $0xa8] sm:$0xff]
      %v401 = vld [vmem:[%s274 + $0xb0] sm:$0xff]
      %v402 = vld [vmem:[%s274 + $0xb8] sm:$0xff]
      %v403 = vld [vmem:[%s274 + $0xc0] sm:$0xff]
      %v404 = vld [vmem:[%s274 + $0xc8] sm:$0xff]
      %v405 = vld [vmem:[%s274 + $0xd0] sm:$0xff]
      %v406 = vld [vmem:[%s274 + $0xd8] sm:$0xff]
      %v407 = vld [vmem:[%s274 + $0xe0] sm:$0xff]
      %v408 = vld [vmem:[%s274 + $0xe8] sm:$0xff]
      %v409 = vld [vmem:[%s274 + $0xf0] sm:$0xff]
      %v410 = vld [vmem:[%s274 + $0xf8] sm:$0xff]
      %vm411 = vcmask 64512
      %v413 = vsel %vm411, %v315, 0
      %v416 = vsel %vm411, %v316, 0
      %v419 = vsel %vm411, %v347, 0
      %v422 = vsel %vm411, %v348, 0
      %424 = vmatprep.subr.mxu0 0.0
      %425 = vmatpush1.xpose.msra.mxu0 0.0
      %426 = vmatprep.subr.mxu0 0.0
      %427 = vmatpush1.xpose.msra.mxu0 0.0
      %428 = vmatprep.subr.mxu0 0.0
      %429 = vmatpush1.xpose.msra.mxu0 0.0
      %430 = vmatprep.subr.mxu0 0.0
      %431 = vmatpush1.xpose.msra.mxu0 0.0
      %432 = vmatprep.subr.mxu0 0.0
      %433 = vmatpush1.xpose.msra.mxu0 0.0
      %434 = vmatprep.subr.mxu0 0.0
      %435 = vmatpush1.xpose.msra.mxu0 0.0
      %436 = vmatprep.subr.mxu0 0.0
      %437 = vmatpush1.xpose.msra.mxu0 0.0
      %438 = vmatprep.subr.mxu0 0.0
      %439 = vmatpush1.xpose.msra.mxu0 0.0
      %440 = vmatprep.subr.mxu0 0.0
      %441 = vmatpush1.xpose.msra.mxu0 0.0
      %442 = vmatprep.subr.mxu0 0.0
      %443 = vmatpush1.xpose.msra.mxu0 0.0
      %444 = vmatprep.subr.mxu0 0.0
      %445 = vmatpush1.xpose.msra.mxu0 0.0
      %446 = vmatprep.subr.mxu0 0.0
      %447 = vmatpush1.xpose.msra.mxu0 0.0
      %448 = vmatprep.subr.mxu0 0.0
      %449 = vmatpush1.xpose.msra.mxu0 0.0
      %450 = vmatprep.subr.mxu0 0.0
      %451 = vmatpush1.xpose.msra.mxu0 0.0
      %452 = vmatprep.subr.mxu0 0.0
      %453 = vmatpush1.xpose.msra.mxu0 %v422
      %454 = vmatprep.subr.mxu0 0.0
      %455 = vmatpush1.xpose.msra.mxu0 %v419
      %456 = vmatprep.subr.mxu0 0.0
      %457 = vmatpush2.xpose.msra.mxu0 0.0
      %458 = vmatprep.subr.mxu0 0.0
      %459 = vmatpush2.xpose.msra.mxu0 0.0
      %460 = vmatprep.subr.mxu0 0.0
      %461 = vmatpush2.xpose.msra.mxu0 0.0
      %462 = vmatprep.subr.mxu0 0.0
      %463 = vmatpush2.xpose.msra.mxu0 0.0
      %464 = vmatprep.subr.mxu0 0.0
      %465 = vmatpush2.xpose.msra.mxu0 0.0
      %466 = vmatprep.subr.mxu0 0.0
      %467 = vmatpush2.xpose.msra.mxu0 0.0
      %468 = vmatprep.subr.mxu0 0.0
      %469 = vmatpush2.xpose.msra.mxu0 0.0
      %470 = vmatprep.subr.mxu0 0.0
      %471 = vmatpush2.xpose.msra.mxu0 0.0
      %472 = vmatprep.subr.mxu0 0.0
      %473 = vmatpush2.xpose.msra.mxu0 0.0
      %474 = vmatprep.subr.mxu0 0.0
      %475 = vmatpush2.xpose.msra.mxu0 0.0
      %476 = vmatprep.subr.mxu0 0.0
      %477 = vmatpush2.xpose.msra.mxu0 0.0
      %478 = vmatprep.subr.mxu0 0.0
      %479 = vmatpush2.xpose.msra.mxu0 0.0
      %480 = vmatprep.subr.mxu0 0.0
      %481 = vmatpush2.xpose.msra.mxu0 0.0
      %482 = vmatprep.subr.mxu0 0.0
      %483 = vmatpush2.xpose.msra.mxu0 0.0
      %484 = vmatprep.subr.mxu0 0.0
      %485 = vmatpush2.xpose.msra.mxu0 0.0
      %486 = vmatprep.subr.mxu0 0.0
      %487 = vmatpush2.xpose.msra.mxu0 0.0
      %488 = vmatprep.mubr.f32.mxu0 0.0
      %489 = vmatmul.mubr.f32.gmra.mxu0 %v413
      %v490 = vpop.f32.mrf.mxu0
      %v491 = vadd.f32 0.0, %v490
      %v492 = vpop.f32.mrf.mxu0
      %493 = vmatprep.mubr.f32.mxu0 0.0
      %494 = vmatmul.mubr.f32.gmra.mxu0 %v416
      %v495 = vpop.f32.mrf.mxu0
      %v496 = vadd.f32 0.0, %v495
      %v497 = vpop.f32.mrf.mxu0
      %498 = vdwg.mxu0
      %v500 = vsel %vm411, %v317, 0
      %v503 = vsel %vm411, %v318, 0
      %v506 = vsel %vm411, %v349, 0
      %v509 = vsel %vm411, %v350, 0
      %511 = vmatprep.subr.mxu0 0.0
      %512 = vmatpush1.xpose.msra.mxu0 0.0
      %513 = vmatprep.subr.mxu0 0.0
      %514 = vmatpush1.xpose.msra.mxu0 0.0
      %515 = vmatprep.subr.mxu0 0.0
      %516 = vmatpush1.xpose.msra.mxu0 0.0
      %517 = vmatprep.subr.mxu0 0.0
      %518 = vmatpush1.xpose.msra.mxu0 0.0
      %519 = vmatprep.subr.mxu0 0.0
      %520 = vmatpush1.xpose.msra.mxu0 0.0
      %521 = vmatprep.subr.mxu0 0.0
      %522 = vmatpush1.xpose.msra.mxu0 0.0
      %523 = vmatprep.subr.mxu0 0.0
      %524 = vmatpush1.xpose.msra.mxu0 0.0
      %525 = vmatprep.subr.mxu0 0.0
      %526 = vmatpush1.xpose.msra.mxu0 0.0
      %527 = vmatprep.subr.mxu0 0.0
      %528 = vmatpush1.xpose.msra.mxu0 0.0
      %529 = vmatprep.subr.mxu0 0.0
      %530 = vmatpush1.xpose.msra.mxu0 0.0
      %531 = vmatprep.subr.mxu0 0.0
      %532 = vmatpush1.xpose.msra.mxu0 0.0
      %533 = vmatprep.subr.mxu0 0.0
      %534 = vmatpush1.xpose.msra.mxu0 0.0
      %535 = vmatprep.subr.mxu0 0.0
      %536 = vmatpush1.xpose.msra.mxu0 0.0
      %537 = vmatprep.subr.mxu0 0.0
      %538 = vmatpush1.xpose.msra.mxu0 0.0
      %539 = vmatprep.subr.mxu0 0.0
      %540 = vmatpush1.xpose.msra.mxu0 %v509
      %541 = vmatprep.subr.mxu0 0.0
      %542 = vmatpush1.xpose.msra.mxu0 %v506
      %543 = vmatprep.subr.mxu0 0.0
      %544 = vmatpush2.xpose.msra.mxu0 0.0
      %545 = vmatprep.subr.mxu0 0.0
      %546 = vmatpush2.xpose.msra.mxu0 0.0
      %547 = vmatprep.subr.mxu0 0.0
      %548 = vmatpush2.xpose.msra.mxu0 0.0
      %549 = vmatprep.subr.mxu0 0.0
      %550 = vmatpush2.xpose.msra.mxu0 0.0
      %551 = vmatprep.subr.mxu0 0.0
      %552 = vmatpush2.xpose.msra.mxu0 0.0
      %553 = vmatprep.subr.mxu0 0.0
      %554 = vmatpush2.xpose.msra.mxu0 0.0
      %555 = vmatprep.subr.mxu0 0.0
      %556 = vmatpush2.xpose.msra.mxu0 0.0
      %557 = vmatprep.subr.mxu0 0.0
      %558 = vmatpush2.xpose.msra.mxu0 0.0
      %559 = vmatprep.subr.mxu0 0.0
      %560 = vmatpush2.xpose.msra.mxu0 0.0
      %561 = vmatprep.subr.mxu0 0.0
      %562 = vmatpush2.xpose.msra.mxu0 0.0
      %563 = vmatprep.subr.mxu0 0.0
      %564 = vmatpush2.xpose.msra.mxu0 0.0
      %565 = vmatprep.subr.mxu0 0.0
      %566 = vmatpush2.xpose.msra.mxu0 0.0
      %567 = vmatprep.subr.mxu0 0.0
      %568 = vmatpush2.xpose.msra.mxu0 0.0
      %569 = vmatprep.subr.mxu0 0.0
      %570 = vmatpush2.xpose.msra.mxu0 0.0
      %571 = vmatprep.subr.mxu0 0.0
      %572 = vmatpush2.xpose.msra.mxu0 0.0
      %573 = vmatprep.subr.mxu0 0.0
      %574 = vmatpush2.xpose.msra.mxu0 0.0
      %575 = vmatprep.mubr.f32.mxu0 0.0
      %576 = vmatmul.mubr.f32.gmra.mxu0 %v500
      %v577 = vpop.f32.mrf.mxu0
      %v578 = vadd.f32 0.0, %v577
      %v579 = vpop.f32.mrf.mxu0
      %580 = vmatprep.mubr.f32.mxu0 0.0
      %581 = vmatmul.mubr.f32.gmra.mxu0 %v503
      %v582 = vpop.f32.mrf.mxu0
      %v583 = vadd.f32 0.0, %v582
      %v584 = vpop.f32.mrf.mxu0
      %585 = vdwg.mxu0
      %v587 = vsel %vm411, %v319, 0
      %v590 = vsel %vm411, %v320, 0
      %v593 = vsel %vm411, %v351, 0
      %v596 = vsel %vm411, %v352, 0
      %598 = vmatprep.subr.mxu0 0.0
      %599 = vmatpush1.xpose.msra.mxu0 0.0
      %600 = vmatprep.subr.mxu0 0.0
      %601 = vmatpush1.xpose.msra.mxu0 0.0
      %602 = vmatprep.subr.mxu0 0.0
      %603 = vmatpush1.xpose.msra.mxu0 0.0
      %604 = vmatprep.subr.mxu0 0.0
      %605 = vmatpush1.xpose.msra.mxu0 0.0
      %606 = vmatprep.subr.mxu0 0.0
      %607 = vmatpush1.xpose.msra.mxu0 0.0
      %608 = vmatprep.subr.mxu0 0.0
      %609 = vmatpush1.xpose.msra.mxu0 0.0
      %610 = vmatprep.subr.mxu0 0.0
      %611 = vmatpush1.xpose.msra.mxu0 0.0
      %612 = vmatprep.subr.mxu0 0.0
      %613 = vmatpush1.xpose.msra.mxu0 0.0
      %614 = vmatprep.subr.mxu0 0.0
      %615 = vmatpush1.xpose.msra.mxu0 0.0
      %616 = vmatprep.subr.mxu0 0.0
      %617 = vmatpush1.xpose.msra.mxu0 0.0
      %618 = vmatprep.subr.mxu0 0.0
      %619 = vmatpush1.xpose.msra.mxu0 0.0
      %620 = vmatprep.subr.mxu0 0.0
      %621 = vmatpush1.xpose.msra.mxu0 0.0
      %622 = vmatprep.subr.mxu0 0.0
      %623 = vmatpush1.xpose.msra.mxu0 0.0
      %624 = vmatprep.subr.mxu0 0.0
      %625 = vmatpush1.xpose.msra.mxu0 0.0
      %626 = vmatprep.subr.mxu0 0.0
      %627 = vmatpush1.xpose.msra.mxu0 %v596
      %628 = vmatprep.subr.mxu0 0.0
      %629 = vmatpush1.xpose.msra.mxu0 %v593
      %630 = vmatprep.subr.mxu0 0.0
      %631 = vmatpush2.xpose.msra.mxu0 0.0
      %632 = vmatprep.subr.mxu0 0.0
      %633 = vmatpush2.xpose.msra.mxu0 0.0
      %634 = vmatprep.subr.mxu0 0.0
      %635 = vmatpush2.xpose.msra.mxu0 0.0
      %636 = vmatprep.subr.mxu0 0.0
      %637 = vmatpush2.xpose.msra.mxu0 0.0
      %638 = vmatprep.subr.mxu0 0.0
      %639 = vmatpush2.xpose.msra.mxu0 0.0
      %640 = vmatprep.subr.mxu0 0.0
      %641 = vmatpush2.xpose.msra.mxu0 0.0
      %642 = vmatprep.subr.mxu0 0.0
      %643 = vmatpush2.xpose.msra.mxu0 0.0
      %644 = vmatprep.subr.mxu0 0.0
      %645 = vmatpush2.xpose.msra.mxu0 0.0
      %646 = vmatprep.subr.mxu0 0.0
      %647 = vmatpush2.xpose.msra.mxu0 0.0
      %648 = vmatprep.subr.mxu0 0.0
      %649 = vmatpush2.xpose.msra.mxu0 0.0
      %650 = vmatprep.subr.mxu0 0.0
      %651 = vmatpush2.xpose.msra.mxu0 0.0
      %652 = vmatprep.subr.mxu0 0.0
      %653 = vmatpush2.xpose.msra.mxu0 0.0
      %654 = vmatprep.subr.mxu0 0.0
      %655 = vmatpush2.xpose.msra.mxu0 0.0
      %656 = vmatprep.subr.mxu0 0.0
      %657 = vmatpush2.xpose.msra.mxu0 0.0
      %658 = vmatprep.subr.mxu0 0.0
      %659 = vmatpush2.xpose.msra.mxu0 0.0
      %660 = vmatprep.subr.mxu0 0.0
      %661 = vmatpush2.xpose.msra.mxu0 0.0
      %662 = vmatprep.mubr.f32.mxu0 0.0
      %663 = vmatmul.mubr.f32.gmra.mxu0 %v587
      %v664 = vpop.f32.mrf.mxu0
      %v665 = vadd.f32 0.0, %v664
      %v666 = vpop.f32.mrf.mxu0
      %667 = vmatprep.mubr.f32.mxu0 0.0
      %668 = vmatmul.mubr.f32.gmra.mxu0 %v590
      %v669 = vpop.f32.mrf.mxu0
      %v670 = vadd.f32 0.0, %v669
      %v671 = vpop.f32.mrf.mxu0
      %672 = vdwg.mxu0
      %v674 = vsel %vm411, %v321, 0
      %v677 = vsel %vm411, %v322, 0
      %v680 = vsel %vm411, %v353, 0
      %v683 = vsel %vm411, %v354, 0
      %685 = vmatprep.subr.mxu0 0.0
      %686 = vmatpush1.xpose.msra.mxu0 0.0
      %687 = vmatprep.subr.mxu0 0.0
      %688 = vmatpush1.xpose.msra.mxu0 0.0
      %689 = vmatprep.subr.mxu0 0.0
      %690 = vmatpush1.xpose.msra.mxu0 0.0
      %691 = vmatprep.subr.mxu0 0.0
      %692 = vmatpush1.xpose.msra.mxu0 0.0
      %693 = vmatprep.subr.mxu0 0.0
      %694 = vmatpush1.xpose.msra.mxu0 0.0
      %695 = vmatprep.subr.mxu0 0.0
      %696 = vmatpush1.xpose.msra.mxu0 0.0
      %697 = vmatprep.subr.mxu0 0.0
      %698 = vmatpush1.xpose.msra.mxu0 0.0
      %699 = vmatprep.subr.mxu0 0.0
      %700 = vmatpush1.xpose.msra.mxu0 0.0
      %701 = vmatprep.subr.mxu0 0.0
      %702 = vmatpush1.xpose.msra.mxu0 0.0
      %703 = vmatprep.subr.mxu0 0.0
      %704 = vmatpush1.xpose.msra.mxu0 0.0
      %705 = vmatprep.subr.mxu0 0.0
      %706 = vmatpush1.xpose.msra.mxu0 0.0
      %707 = vmatprep.subr.mxu0 0.0
      %708 = vmatpush1.xpose.msra.mxu0 0.0
      %709 = vmatprep.subr.mxu0 0.0
      %710 = vmatpush1.xpose.msra.mxu0 0.0
      %711 = vmatprep.subr.mxu0 0.0
      %712 = vmatpush1.xpose.msra.mxu0 0.0
      %713 = vmatprep.subr.mxu0 0.0
      %714 = vmatpush1.xpose.msra.mxu0 %v683
      %715 = vmatprep.subr.mxu0 0.0
      %716 = vmatpush1.xpose.msra.mxu0 %v680
      %717 = vmatprep.subr.mxu0 0.0
      %718 = vmatpush2.xpose.msra.mxu0 0.0
      %719 = vmatprep.subr.mxu0 0.0
      %720 = vmatpush2.xpose.msra.mxu0 0.0
      %721 = vmatprep.subr.mxu0 0.0
      %722 = vmatpush2.xpose.msra.mxu0 0.0
      %723 = vmatprep.subr.mxu0 0.0
      %724 = vmatpush2.xpose.msra.mxu0 0.0
      %725 = vmatprep.subr.mxu0 0.0
      %726 = vmatpush2.xpose.msra.mxu0 0.0
      %727 = vmatprep.subr.mxu0 0.0
      %728 = vmatpush2.xpose.msra.mxu0 0.0
      %729 = vmatprep.subr.mxu0 0.0
      %730 = vmatpush2.xpose.msra.mxu0 0.0
      %731 = vmatprep.subr.mxu0 0.0
      %732 = vmatpush2.xpose.msra.mxu0 0.0
      %733 = vmatprep.subr.mxu0 0.0
      %734 = vmatpush2.xpose.msra.mxu0 0.0
      %735 = vmatprep.subr.mxu0 0.0
      %736 = vmatpush2.xpose.msra.mxu0 0.0
      %737 = vmatprep.subr.mxu0 0.0
      %738 = vmatpush2.xpose.msra.mxu0 0.0
      %739 = vmatprep.subr.mxu0 0.0
      %740 = vmatpush2.xpose.msra.mxu0 0.0
      %741 = vmatprep.subr.mxu0 0.0
      %742 = vmatpush2.xpose.msra.mxu0 0.0
      %743 = vmatprep.subr.mxu0 0.0
      %744 = vmatpush2.xpose.msra.mxu0 0.0
      %745 = vmatprep.subr.mxu0 0.0
      %746 = vmatpush2.xpose.msra.mxu0 0.0
      %747 = vmatprep.subr.mxu0 0.0
      %748 = vmatpush2.xpose.msra.mxu0 0.0
      %749 = vmatprep.mubr.f32.mxu0 0.0
      %750 = vmatmul.mubr.f32.gmra.mxu0 %v674
      %v751 = vpop.f32.mrf.mxu0
      %v752 = vadd.f32 0.0, %v751
      %v753 = vpop.f32.mrf.mxu0
      %754 = vmatprep.mubr.f32.mxu0 0.0
      %755 = vmatmul.mubr.f32.gmra.mxu0 %v677
      %v756 = vpop.f32.mrf.mxu0
      %v757 = vadd.f32 0.0, %v756
      %v758 = vpop.f32.mrf.mxu0
      %759 = vdwg.mxu0
      %v761 = vsel %vm411, %v323, 0
      %v764 = vsel %vm411, %v324, 0
      %v767 = vsel %vm411, %v355, 0
      %v770 = vsel %vm411, %v356, 0
      %772 = vmatprep.subr.mxu0 0.0
      %773 = vmatpush1.xpose.msra.mxu0 0.0
      %774 = vmatprep.subr.mxu0 0.0
      %775 = vmatpush1.xpose.msra.mxu0 0.0
      %776 = vmatprep.subr.mxu0 0.0
      %777 = vmatpush1.xpose.msra.mxu0 0.0
      %778 = vmatprep.subr.mxu0 0.0
      %779 = vmatpush1.xpose.msra.mxu0 0.0
      %780 = vmatprep.subr.mxu0 0.0
      %781 = vmatpush1.xpose.msra.mxu0 0.0
      %782 = vmatprep.subr.mxu0 0.0
      %783 = vmatpush1.xpose.msra.mxu0 0.0
      %784 = vmatprep.subr.mxu0 0.0
      %785 = vmatpush1.xpose.msra.mxu0 0.0
      %786 = vmatprep.subr.mxu0 0.0
      %787 = vmatpush1.xpose.msra.mxu0 0.0
      %788 = vmatprep.subr.mxu0 0.0
      %789 = vmatpush1.xpose.msra.mxu0 0.0
      %790 = vmatprep.subr.mxu0 0.0
      %791 = vmatpush1.xpose.msra.mxu0 0.0
      %792 = vmatprep.subr.mxu0 0.0
      %793 = vmatpush1.xpose.msra.mxu0 0.0
      %794 = vmatprep.subr.mxu0 0.0
      %795 = vmatpush1.xpose.msra.mxu0 0.0
      %796 = vmatprep.subr.mxu0 0.0
      %797 = vmatpush1.xpose.msra.mxu0 0.0
      %798 = vmatprep.subr.mxu0 0.0
      %799 = vmatpush1.xpose.msra.mxu0 0.0
      %800 = vmatprep.subr.mxu0 0.0
      %801 = vmatpush1.xpose.msra.mxu0 %v770
      %802 = vmatprep.subr.mxu0 0.0
      %803 = vmatpush1.xpose.msra.mxu0 %v767
      %804 = vmatprep.subr.mxu0 0.0
      %805 = vmatpush2.xpose.msra.mxu0 0.0
      %806 = vmatprep.subr.mxu0 0.0
      %807 = vmatpush2.xpose.msra.mxu0 0.0
      %808 = vmatprep.subr.mxu0 0.0
      %809 = vmatpush2.xpose.msra.mxu0 0.0
      %810 = vmatprep.subr.mxu0 0.0
      %811 = vmatpush2.xpose.msra.mxu0 0.0
      %812 = vmatprep.subr.mxu0 0.0
      %813 = vmatpush2.xpose.msra.mxu0 0.0
      %814 = vmatprep.subr.mxu0 0.0
      %815 = vmatpush2.xpose.msra.mxu0 0.0
      %816 = vmatprep.subr.mxu0 0.0
      %817 = vmatpush2.xpose.msra.mxu0 0.0
      %818 = vmatprep.subr.mxu0 0.0
      %819 = vmatpush2.xpose.msra.mxu0 0.0
      %820 = vmatprep.subr.mxu0 0.0
      %821 = vmatpush2.xpose.msra.mxu0 0.0
      %822 = vmatprep.subr.mxu0 0.0
      %823 = vmatpush2.xpose.msra.mxu0 0.0
      %824 = vmatprep.subr.mxu0 0.0
      %825 = vmatpush2.xpose.msra.mxu0 0.0
      %826 = vmatprep.subr.mxu0 0.0
      %827 = vmatpush2.xpose.msra.mxu0 0.0
      %828 = vmatprep.subr.mxu0 0.0
      %829 = vmatpush2.xpose.msra.mxu0 0.0
      %830 = vmatprep.subr.mxu0 0.0
      %831 = vmatpush2.xpose.msra.mxu0 0.0
      %832 = vmatprep.subr.mxu0 0.0
      %833 = vmatpush2.xpose.msra.mxu0 0.0
      %834 = vmatprep.subr.mxu0 0.0
      %835 = vmatpush2.xpose.msra.mxu0 0.0
      %836 = vmatprep.mubr.f32.mxu0 0.0
      %837 = vmatmul.mubr.f32.gmra.mxu0 %v761
      %v838 = vpop.f32.mrf.mxu0
      %v839 = vadd.f32 0.0, %v838
      %v840 = vpop.f32.mrf.mxu0
      %841 = vmatprep.mubr.f32.mxu0 0.0
      %842 = vmatmul.mubr.f32.gmra.mxu0 %v764
      %v843 = vpop.f32.mrf.mxu0
      %v844 = vadd.f32 0.0, %v843
      %v845 = vpop.f32.mrf.mxu0
      %846 = vdwg.mxu0
      %v848 = vsel %vm411, %v325, 0
      %v851 = vsel %vm411, %v326, 0
      %v854 = vsel %vm411, %v357, 0
      %v857 = vsel %vm411, %v358, 0
      %859 = vmatprep.subr.mxu0 0.0
      %860 = vmatpush1.xpose.msra.mxu0 0.0
      %861 = vmatprep.subr.mxu0 0.0
      %862 = vmatpush1.xpose.msra.mxu0 0.0
      %863 = vmatprep.subr.mxu0 0.0
      %864 = vmatpush1.xpose.msra.mxu0 0.0
      %865 = vmatprep.subr.mxu0 0.0
      %866 = vmatpush1.xpose.msra.mxu0 0.0
      %867 = vmatprep.subr.mxu0 0.0
      %868 = vmatpush1.xpose.msra.mxu0 0.0
      %869 = vmatprep.subr.mxu0 0.0
      %870 = vmatpush1.xpose.msra.mxu0 0.0
      %871 = vmatprep.subr.mxu0 0.0
      %872 = vmatpush1.xpose.msra.mxu0 0.0
      %873 = vmatprep.subr.mxu0 0.0
      %874 = vmatpush1.xpose.msra.mxu0 0.0
      %875 = vmatprep.subr.mxu0 0.0
      %876 = vmatpush1.xpose.msra.mxu0 0.0
      %877 = vmatprep.subr.mxu0 0.0
      %878 = vmatpush1.xpose.msra.mxu0 0.0
      %879 = vmatprep.subr.mxu0 0.0
      %880 = vmatpush1.xpose.msra.mxu0 0.0
      %881 = vmatprep.subr.mxu0 0.0
      %882 = vmatpush1.xpose.msra.mxu0 0.0
      %883 = vmatprep.subr.mxu0 0.0
      %884 = vmatpush1.xpose.msra.mxu0 0.0
      %885 = vmatprep.subr.mxu0 0.0
      %886 = vmatpush1.xpose.msra.mxu0 0.0
      %887 = vmatprep.subr.mxu0 0.0
      %888 = vmatpush1.xpose.msra.mxu0 %v857
      %889 = vmatprep.subr.mxu0 0.0
      %890 = vmatpush1.xpose.msra.mxu0 %v854
      %891 = vmatprep.subr.mxu0 0.0
      %892 = vmatpush2.xpose.msra.mxu0 0.0
      %893 = vmatprep.subr.mxu0 0.0
      %894 = vmatpush2.xpose.msra.mxu0 0.0
      %895 = vmatprep.subr.mxu0 0.0
      %896 = vmatpush2.xpose.msra.mxu0 0.0
      %897 = vmatprep.subr.mxu0 0.0
      %898 = vmatpush2.xpose.msra.mxu0 0.0
      %899 = vmatprep.subr.mxu0 0.0
      %900 = vmatpush2.xpose.msra.mxu0 0.0
      %901 = vmatprep.subr.mxu0 0.0
      %902 = vmatpush2.xpose.msra.mxu0 0.0
      %903 = vmatprep.subr.mxu0 0.0
      %904 = vmatpush2.xpose.msra.mxu0 0.0
      %905 = vmatprep.subr.mxu0 0.0
      %906 = vmatpush2.xpose.msra.mxu0 0.0
      %907 = vmatprep.subr.mxu0 0.0
      %908 = vmatpush2.xpose.msra.mxu0 0.0
      %909 = vmatprep.subr.mxu0 0.0
      %910 = vmatpush2.xpose.msra.mxu0 0.0
      %911 = vmatprep.subr.mxu0 0.0
      %912 = vmatpush2.xpose.msra.mxu0 0.0
      %913 = vmatprep.subr.mxu0 0.0
      %914 = vmatpush2.xpose.msra.mxu0 0.0
      %915 = vmatprep.subr.mxu0 0.0
      %916 = vmatpush2.xpose.msra.mxu0 0.0
      %917 = vmatprep.subr.mxu0 0.0
      %918 = vmatpush2.xpose.msra.mxu0 0.0
      %919 = vmatprep.subr.mxu0 0.0
      %920 = vmatpush2.xpose.msra.mxu0 0.0
      %921 = vmatprep.subr.mxu0 0.0
      %922 = vmatpush2.xpose.msra.mxu0 0.0
      %923 = vmatprep.mubr.f32.mxu0 0.0
      %924 = vmatmul.mubr.f32.gmra.mxu0 %v848
      %v925 = vpop.f32.mrf.mxu0
      %v926 = vadd.f32 0.0, %v925
      %v927 = vpop.f32.mrf.mxu0
      %928 = vmatprep.mubr.f32.mxu0 0.0
      %929 = vmatmul.mubr.f32.gmra.mxu0 %v851
      %v930 = vpop.f32.mrf.mxu0
      %v931 = vadd.f32 0.0, %v930
      %v932 = vpop.f32.mrf.mxu0
      %933 = vdwg.mxu0
      %v935 = vsel %vm411, %v327, 0
      %v938 = vsel %vm411, %v328, 0
      %v941 = vsel %vm411, %v359, 0
      %v944 = vsel %vm411, %v360, 0
      %946 = vmatprep.subr.mxu0 0.0
      %947 = vmatpush1.xpose.msra.mxu0 0.0
      %948 = vmatprep.subr.mxu0 0.0
      %949 = vmatpush1.xpose.msra.mxu0 0.0
      %950 = vmatprep.subr.mxu0 0.0
      %951 = vmatpush1.xpose.msra.mxu0 0.0
      %952 = vmatprep.subr.mxu0 0.0
      %953 = vmatpush1.xpose.msra.mxu0 0.0
      %954 = vmatprep.subr.mxu0 0.0
      %955 = vmatpush1.xpose.msra.mxu0 0.0
      %956 = vmatprep.subr.mxu0 0.0
      %957 = vmatpush1.xpose.msra.mxu0 0.0
      %958 = vmatprep.subr.mxu0 0.0
      %959 = vmatpush1.xpose.msra.mxu0 0.0
      %960 = vmatprep.subr.mxu0 0.0
      %961 = vmatpush1.xpose.msra.mxu0 0.0
      %962 = vmatprep.subr.mxu0 0.0
      %963 = vmatpush1.xpose.msra.mxu0 0.0
      %964 = vmatprep.subr.mxu0 0.0
      %965 = vmatpush1.xpose.msra.mxu0 0.0
      %966 = vmatprep.subr.mxu0 0.0
      %967 = vmatpush1.xpose.msra.mxu0 0.0
      %968 = vmatprep.subr.mxu0 0.0
      %969 = vmatpush1.xpose.msra.mxu0 0.0
      %970 = vmatprep.subr.mxu0 0.0
      %971 = vmatpush1.xpose.msra.mxu0 0.0
      %972 = vmatprep.subr.mxu0 0.0
      %973 = vmatpush1.xpose.msra.mxu0 0.0
      %974 = vmatprep.subr.mxu0 0.0
      %975 = vmatpush1.xpose.msra.mxu0 %v944
      %976 = vmatprep.subr.mxu0 0.0
      %977 = vmatpush1.xpose.msra.mxu0 %v941
      %978 = vmatprep.subr.mxu0 0.0
      %979 = vmatpush2.xpose.msra.mxu0 0.0
      %980 = vmatprep.subr.mxu0 0.0
      %981 = vmatpush2.xpose.msra.mxu0 0.0
      %982 = vmatprep.subr.mxu0 0.0
      %983 = vmatpush2.xpose.msra.mxu0 0.0
      %984 = vmatprep.subr.mxu0 0.0
      %985 = vmatpush2.xpose.msra.mxu0 0.0
      %986 = vmatprep.subr.mxu0 0.0
      %987 = vmatpush2.xpose.msra.mxu0 0.0
      %988 = vmatprep.subr.mxu0 0.0
      %989 = vmatpush2.xpose.msra.mxu0 0.0
      %990 = vmatprep.subr.mxu0 0.0
      %991 = vmatpush2.xpose.msra.mxu0 0.0
      %992 = vmatprep.subr.mxu0 0.0
      %993 = vmatpush2.xpose.msra.mxu0 0.0
      %994 = vmatprep.subr.mxu0 0.0
      %995 = vmatpush2.xpose.msra.mxu0 0.0
      %996 = vmatprep.subr.mxu0 0.0
      %997 = vmatpush2.xpose.msra.mxu0 0.0
      %998 = vmatprep.subr.mxu0 0.0
      %999 = vmatpush2.xpose.msra.mxu0 0.0
      %1000 = vmatprep.subr.mxu0 0.0
      %1001 = vmatpush2.xpose.msra.mxu0 0.0
      %1002 = vmatprep.subr.mxu0 0.0
      %1003 = vmatpush2.xpose.msra.mxu0 0.0
      %1004 = vmatprep.subr.mxu0 0.0
      %1005 = vmatpush2.xpose.msra.mxu0 0.0
      %1006 = vmatprep.subr.mxu0 0.0
      %1007 = vmatpush2.xpose.msra.mxu0 0.0
      %1008 = vmatprep.subr.mxu0 0.0
      %1009 = vmatpush2.xpose.msra.mxu0 0.0
      %1010 = vmatprep.mubr.f32.mxu0 0.0
      %1011 = vmatmul.mubr.f32.gmra.mxu0 %v935
      %v1012 = vpop.f32.mrf.mxu0
      %v1013 = vadd.f32 0.0, %v1012
      %v1014 = vpop.f32.mrf.mxu0
      %1015 = vmatprep.mubr.f32.mxu0 0.0
      %1016 = vmatmul.mubr.f32.gmra.mxu0 %v938
      %v1017 = vpop.f32.mrf.mxu0
      %v1018 = vadd.f32 0.0, %v1017
      %v1019 = vpop.f32.mrf.mxu0
      %1020 = vdwg.mxu0
      %v1022 = vsel %vm411, %v329, 0
      %v1025 = vsel %vm411, %v330, 0
      %v1028 = vsel %vm411, %v361, 0
      %v1031 = vsel %vm411, %v362, 0
      %1033 = vmatprep.subr.mxu0 0.0
      %1034 = vmatpush1.xpose.msra.mxu0 0.0
      %1035 = vmatprep.subr.mxu0 0.0
      %1036 = vmatpush1.xpose.msra.mxu0 0.0
      %1037 = vmatprep.subr.mxu0 0.0
      %1038 = vmatpush1.xpose.msra.mxu0 0.0
      %1039 = vmatprep.subr.mxu0 0.0
      %1040 = vmatpush1.xpose.msra.mxu0 0.0
      %1041 = vmatprep.subr.mxu0 0.0
      %1042 = vmatpush1.xpose.msra.mxu0 0.0
      %1043 = vmatprep.subr.mxu0 0.0
      %1044 = vmatpush1.xpose.msra.mxu0 0.0
      %1045 = vmatprep.subr.mxu0 0.0
      %1046 = vmatpush1.xpose.msra.mxu0 0.0
      %1047 = vmatprep.subr.mxu0 0.0
      %1048 = vmatpush1.xpose.msra.mxu0 0.0
      %1049 = vmatprep.subr.mxu0 0.0
      %1050 = vmatpush1.xpose.msra.mxu0 0.0
      %1051 = vmatprep.subr.mxu0 0.0
      %1052 = vmatpush1.xpose.msra.mxu0 0.0
      %1053 = vmatprep.subr.mxu0 0.0
      %1054 = vmatpush1.xpose.msra.mxu0 0.0
      %1055 = vmatprep.subr.mxu0 0.0
      %1056 = vmatpush1.xpose.msra.mxu0 0.0
      %1057 = vmatprep.subr.mxu0 0.0
      %1058 = vmatpush1.xpose.msra.mxu0 0.0
      %1059 = vmatprep.subr.mxu0 0.0
      %1060 = vmatpush1.xpose.msra.mxu0 0.0
      %1061 = vmatprep.subr.mxu0 0.0
      %1062 = vmatpush1.xpose.msra.mxu0 %v1031
      %1063 = vmatprep.subr.mxu0 0.0
      %1064 = vmatpush1.xpose.msra.mxu0 %v1028
      %1065 = vmatprep.subr.mxu0 0.0
      %1066 = vmatpush2.xpose.msra.mxu0 0.0
      %1067 = vmatprep.subr.mxu0 0.0
      %1068 = vmatpush2.xpose.msra.mxu0 0.0
      %1069 = vmatprep.subr.mxu0 0.0
      %1070 = vmatpush2.xpose.msra.mxu0 0.0
      %1071 = vmatprep.subr.mxu0 0.0
      %1072 = vmatpush2.xpose.msra.mxu0 0.0
      %1073 = vmatprep.subr.mxu0 0.0
      %1074 = vmatpush2.xpose.msra.mxu0 0.0
      %1075 = vmatprep.subr.mxu0 0.0
      %1076 = vmatpush2.xpose.msra.mxu0 0.0
      %1077 = vmatprep.subr.mxu0 0.0
      %1078 = vmatpush2.xpose.msra.mxu0 0.0
      %1079 = vmatprep.subr.mxu0 0.0
      %1080 = vmatpush2.xpose.msra.mxu0 0.0
      %1081 = vmatprep.subr.mxu0 0.0
      %1082 = vmatpush2.xpose.msra.mxu0 0.0
      %1083 = vmatprep.subr.mxu0 0.0
      %1084 = vmatpush2.xpose.msra.mxu0 0.0
      %1085 = vmatprep.subr.mxu0 0.0
      %1086 = vmatpush2.xpose.msra.mxu0 0.0
      %1087 = vmatprep.subr.mxu0 0.0
      %1088 = vmatpush2.xpose.msra.mxu0 0.0
      %1089 = vmatprep.subr.mxu0 0.0
      %1090 = vmatpush2.xpose.msra.mxu0 0.0
      %1091 = vmatprep.subr.mxu0 0.0
      %1092 = vmatpush2.xpose.msra.mxu0 0.0
      %1093 = vmatprep.subr.mxu0 0.0
      %1094 = vmatpush2.xpose.msra.mxu0 0.0
      %1095 = vmatprep.subr.mxu0 0.0
      %1096 = vmatpush2.xpose.msra.mxu0 0.0
      %1097 = vmatprep.mubr.f32.mxu0 0.0
      %1098 = vmatmul.mubr.f32.gmra.mxu0 %v1022
      %v1099 = vpop.f32.mrf.mxu0
      %v1100 = vadd.f32 0.0, %v1099
      %v1101 = vpop.f32.mrf.mxu0
      %1102 = vmatprep.mubr.f32.mxu0 0.0
      %1103 = vmatmul.mubr.f32.gmra.mxu0 %v1025
      %v1104 = vpop.f32.mrf.mxu0
      %v1105 = vadd.f32 0.0, %v1104
      %v1106 = vpop.f32.mrf.mxu0
      %1107 = vdwg.mxu0
      %v1109 = vsel %vm411, %v331, 0
      %v1112 = vsel %vm411, %v332, 0
      %v1115 = vsel %vm411, %v363, 0
      %v1118 = vsel %vm411, %v364, 0
      %1120 = vmatprep.subr.mxu0 0.0
      %1121 = vmatpush1.xpose.msra.mxu0 0.0
      %1122 = vmatprep.subr.mxu0 0.0
      %1123 = vmatpush1.xpose.msra.mxu0 0.0
      %1124 = vmatprep.subr.mxu0 0.0
      %1125 = vmatpush1.xpose.msra.mxu0 0.0
      %1126 = vmatprep.subr.mxu0 0.0
      %1127 = vmatpush1.xpose.msra.mxu0 0.0
      %1128 = vmatprep.subr.mxu0 0.0
      %1129 = vmatpush1.xpose.msra.mxu0 0.0
      %1130 = vmatprep.subr.mxu0 0.0
      %1131 = vmatpush1.xpose.msra.mxu0 0.0
      %1132 = vmatprep.subr.mxu0 0.0
      %1133 = vmatpush1.xpose.msra.mxu0 0.0
      %1134 = vmatprep.subr.mxu0 0.0
      %1135 = vmatpush1.xpose.msra.mxu0 0.0
      %1136 = vmatprep.subr.mxu0 0.0
      %1137 = vmatpush1.xpose.msra.mxu0 0.0
      %1138 = vmatprep.subr.mxu0 0.0
      %1139 = vmatpush1.xpose.msra.mxu0 0.0
      %1140 = vmatprep.subr.mxu0 0.0
      %1141 = vmatpush1.xpose.msra.mxu0 0.0
      %1142 = vmatprep.subr.mxu0 0.0
      %1143 = vmatpush1.xpose.msra.mxu0 0.0
      %1144 = vmatprep.subr.mxu0 0.0
      %1145 = vmatpush1.xpose.msra.mxu0 0.0
      %1146 = vmatprep.subr.mxu0 0.0
      %1147 = vmatpush1.xpose.msra.mxu0 0.0
      %1148 = vmatprep.subr.mxu0 0.0
      %1149 = vmatpush1.xpose.msra.mxu0 %v1118
      %1150 = vmatprep.subr.mxu0 0.0
      %1151 = vmatpush1.xpose.msra.mxu0 %v1115
      %1152 = vmatprep.subr.mxu0 0.0
      %1153 = vmatpush2.xpose.msra.mxu0 0.0
      %1154 = vmatprep.subr.mxu0 0.0
      %1155 = vmatpush2.xpose.msra.mxu0 0.0
      %1156 = vmatprep.subr.mxu0 0.0
      %1157 = vmatpush2.xpose.msra.mxu0 0.0
      %1158 = vmatprep.subr.mxu0 0.0
      %1159 = vmatpush2.xpose.msra.mxu0 0.0
      %1160 = vmatprep.subr.mxu0 0.0
      %1161 = vmatpush2.xpose.msra.mxu0 0.0
      %1162 = vmatprep.subr.mxu0 0.0
      %1163 = vmatpush2.xpose.msra.mxu0 0.0
      %1164 = vmatprep.subr.mxu0 0.0
      %1165 = vmatpush2.xpose.msra.mxu0 0.0
      %1166 = vmatprep.subr.mxu0 0.0
      %1167 = vmatpush2.xpose.msra.mxu0 0.0
      %1168 = vmatprep.subr.mxu0 0.0
      %1169 = vmatpush2.xpose.msra.mxu0 0.0
      %1170 = vmatprep.subr.mxu0 0.0
      %1171 = vmatpush2.xpose.msra.mxu0 0.0
      %1172 = vmatprep.subr.mxu0 0.0
      %1173 = vmatpush2.xpose.msra.mxu0 0.0
      %1174 = vmatprep.subr.mxu0 0.0
      %1175 = vmatpush2.xpose.msra.mxu0 0.0
      %1176 = vmatprep.subr.mxu0 0.0
      %1177 = vmatpush2.xpose.msra.mxu0 0.0
      %1178 = vmatprep.subr.mxu0 0.0
      %1179 = vmatpush2.xpose.msra.mxu0 0.0
      %1180 = vmatprep.subr.mxu0 0.0
      %1181 = vmatpush2.xpose.msra.mxu0 0.0
      %1182 = vmatprep.subr.mxu0 0.0
      %1183 = vmatpush2.xpose.msra.mxu0 0.0
      %1184 = vmatprep.mubr.f32.mxu0 0.0
      %1185 = vmatmul.mubr.f32.gmra.mxu0 %v1109
      %v1186 = vpop.f32.mrf.mxu0
      %v1187 = vadd.f32 0.0, %v1186
      %v1188 = vpop.f32.mrf.mxu0
      %1189 = vmatprep.mubr.f32.mxu0 0.0
      %1190 = vmatmul.mubr.f32.gmra.mxu0 %v1112
      %v1191 = vpop.f32.mrf.mxu0
      %v1192 = vadd.f32 0.0, %v1191
      %v1193 = vpop.f32.mrf.mxu0
      %1194 = vdwg.mxu0
      %v1196 = vsel %vm411, %v333, 0
      %v1199 = vsel %vm411, %v334, 0
      %v1202 = vsel %vm411, %v365, 0
      %v1205 = vsel %vm411, %v366, 0
      %1207 = vmatprep.subr.mxu0 0.0
      %1208 = vmatpush1.xpose.msra.mxu0 0.0
      %1209 = vmatprep.subr.mxu0 0.0
      %1210 = vmatpush1.xpose.msra.mxu0 0.0
      %1211 = vmatprep.subr.mxu0 0.0
      %1212 = vmatpush1.xpose.msra.mxu0 0.0
      %1213 = vmatprep.subr.mxu0 0.0
      %1214 = vmatpush1.xpose.msra.mxu0 0.0
      %1215 = vmatprep.subr.mxu0 0.0
      %1216 = vmatpush1.xpose.msra.mxu0 0.0
      %1217 = vmatprep.subr.mxu0 0.0
      %1218 = vmatpush1.xpose.msra.mxu0 0.0
      %1219 = vmatprep.subr.mxu0 0.0
      %1220 = vmatpush1.xpose.msra.mxu0 0.0
      %1221 = vmatprep.subr.mxu0 0.0
      %1222 = vmatpush1.xpose.msra.mxu0 0.0
      %1223 = vmatprep.subr.mxu0 0.0
      %1224 = vmatpush1.xpose.msra.mxu0 0.0
      %1225 = vmatprep.subr.mxu0 0.0
      %1226 = vmatpush1.xpose.msra.mxu0 0.0
      %1227 = vmatprep.subr.mxu0 0.0
      %1228 = vmatpush1.xpose.msra.mxu0 0.0
      %1229 = vmatprep.subr.mxu0 0.0
      %1230 = vmatpush1.xpose.msra.mxu0 0.0
      %1231 = vmatprep.subr.mxu0 0.0
      %1232 = vmatpush1.xpose.msra.mxu0 0.0
      %1233 = vmatprep.subr.mxu0 0.0
      %1234 = vmatpush1.xpose.msra.mxu0 0.0
      %1235 = vmatprep.subr.mxu0 0.0
      %1236 = vmatpush1.xpose.msra.mxu0 %v1205
      %1237 = vmatprep.subr.mxu0 0.0
      %1238 = vmatpush1.xpose.msra.mxu0 %v1202
      %1239 = vmatprep.subr.mxu0 0.0
      %1240 = vmatpush2.xpose.msra.mxu0 0.0
      %1241 = vmatprep.subr.mxu0 0.0
      %1242 = vmatpush2.xpose.msra.mxu0 0.0
      %1243 = vmatprep.subr.mxu0 0.0
      %1244 = vmatpush2.xpose.msra.mxu0 0.0
      %1245 = vmatprep.subr.mxu0 0.0
      %1246 = vmatpush2.xpose.msra.mxu0 0.0
      %1247 = vmatprep.subr.mxu0 0.0
      %1248 = vmatpush2.xpose.msra.mxu0 0.0
      %1249 = vmatprep.subr.mxu0 0.0
      %1250 = vmatpush2.xpose.msra.mxu0 0.0
      %1251 = vmatprep.subr.mxu0 0.0
      %1252 = vmatpush2.xpose.msra.mxu0 0.0
      %1253 = vmatprep.subr.mxu0 0.0
      %1254 = vmatpush2.xpose.msra.mxu0 0.0
      %1255 = vmatprep.subr.mxu0 0.0
      %1256 = vmatpush2.xpose.msra.mxu0 0.0
      %1257 = vmatprep.subr.mxu0 0.0
      %1258 = vmatpush2.xpose.msra.mxu0 0.0
      %1259 = vmatprep.subr.mxu0 0.0
      %1260 = vmatpush2.xpose.msra.mxu0 0.0
      %1261 = vmatprep.subr.mxu0 0.0
      %1262 = vmatpush2.xpose.msra.mxu0 0.0
      %1263 = vmatprep.subr.mxu0 0.0
      %1264 = vmatpush2.xpose.msra.mxu0 0.0
      %1265 = vmatprep.subr.mxu0 0.0
      %1266 = vmatpush2.xpose.msra.mxu0 0.0
      %1267 = vmatprep.subr.mxu0 0.0
      %1268 = vmatpush2.xpose.msra.mxu0 0.0
      %1269 = vmatprep.subr.mxu0 0.0
      %1270 = vmatpush2.xpose.msra.mxu0 0.0
      %1271 = vmatprep.mubr.f32.mxu0 0.0
      %1272 = vmatmul.mubr.f32.gmra.mxu0 %v1196
      %v1273 = vpop.f32.mrf.mxu0
      %v1274 = vadd.f32 0.0, %v1273
      %v1275 = vpop.f32.mrf.mxu0
      %1276 = vmatprep.mubr.f32.mxu0 0.0
      %1277 = vmatmul.mubr.f32.gmra.mxu0 %v1199
      %v1278 = vpop.f32.mrf.mxu0
      %v1279 = vadd.f32 0.0, %v1278
      %v1280 = vpop.f32.mrf.mxu0
      %1281 = vdwg.mxu0
      %v1283 = vsel %vm411, %v335, 0
      %v1286 = vsel %vm411, %v336, 0
      %v1289 = vsel %vm411, %v367, 0
      %v1292 = vsel %vm411, %v368, 0
      %1294 = vmatprep.subr.mxu0 0.0
      %1295 = vmatpush1.xpose.msra.mxu0 0.0
      %1296 = vmatprep.subr.mxu0 0.0
      %1297 = vmatpush1.xpose.msra.mxu0 0.0
      %1298 = vmatprep.subr.mxu0 0.0
      %1299 = vmatpush1.xpose.msra.mxu0 0.0
      %1300 = vmatprep.subr.mxu0 0.0
      %1301 = vmatpush1.xpose.msra.mxu0 0.0
      %1302 = vmatprep.subr.mxu0 0.0
      %1303 = vmatpush1.xpose.msra.mxu0 0.0
      %1304 = vmatprep.subr.mxu0 0.0
      %1305 = vmatpush1.xpose.msra.mxu0 0.0
      %1306 = vmatprep.subr.mxu0 0.0
      %1307 = vmatpush1.xpose.msra.mxu0 0.0
      %1308 = vmatprep.subr.mxu0 0.0
      %1309 = vmatpush1.xpose.msra.mxu0 0.0
      %1310 = vmatprep.subr.mxu0 0.0
      %1311 = vmatpush1.xpose.msra.mxu0 0.0
      %1312 = vmatprep.subr.mxu0 0.0
      %1313 = vmatpush1.xpose.msra.mxu0 0.0
      %1314 = vmatprep.subr.mxu0 0.0
      %1315 = vmatpush1.xpose.msra.mxu0 0.0
      %1316 = vmatprep.subr.mxu0 0.0
      %1317 = vmatpush1.xpose.msra.mxu0 0.0
      %1318 = vmatprep.subr.mxu0 0.0
      %1319 = vmatpush1.xpose.msra.mxu0 0.0
      %1320 = vmatprep.subr.mxu0 0.0
      %1321 = vmatpush1.xpose.msra.mxu0 0.0
      %1322 = vmatprep.subr.mxu0 0.0
      %1323 = vmatpush1.xpose.msra.mxu0 %v1292
      %1324 = vmatprep.subr.mxu0 0.0
      %1325 = vmatpush1.xpose.msra.mxu0 %v1289
      %1326 = vmatprep.subr.mxu0 0.0
      %1327 = vmatpush2.xpose.msra.mxu0 0.0
      %1328 = vmatprep.subr.mxu0 0.0
      %1329 = vmatpush2.xpose.msra.mxu0 0.0
      %1330 = vmatprep.subr.mxu0 0.0
      %1331 = vmatpush2.xpose.msra.mxu0 0.0
      %1332 = vmatprep.subr.mxu0 0.0
      %1333 = vmatpush2.xpose.msra.mxu0 0.0
      %1334 = vmatprep.subr.mxu0 0.0
      %1335 = vmatpush2.xpose.msra.mxu0 0.0
      %1336 = vmatprep.subr.mxu0 0.0
      %1337 = vmatpush2.xpose.msra.mxu0 0.0
      %1338 = vmatprep.subr.mxu0 0.0
      %1339 = vmatpush2.xpose.msra.mxu0 0.0
      %1340 = vmatprep.subr.mxu0 0.0
      %1341 = vmatpush2.xpose.msra.mxu0 0.0
      %1342 = vmatprep.subr.mxu0 0.0
      %1343 = vmatpush2.xpose.msra.mxu0 0.0
      %1344 = vmatprep.subr.mxu0 0.0
      %1345 = vmatpush2.xpose.msra.mxu0 0.0
      %1346 = vmatprep.subr.mxu0 0.0
      %1347 = vmatpush2.xpose.msra.mxu0 0.0
      %1348 = vmatprep.subr.mxu0 0.0
      %1349 = vmatpush2.xpose.msra.mxu0 0.0
      %1350 = vmatprep.subr.mxu0 0.0
      %1351 = vmatpush2.xpose.msra.mxu0 0.0
      %1352 = vmatprep.subr.mxu0 0.0
      %1353 = vmatpush2.xpose.msra.mxu0 0.0
      %1354 = vmatprep.subr.mxu0 0.0
      %1355 = vmatpush2.xpose.msra.mxu0 0.0
      %1356 = vmatprep.subr.mxu0 0.0
      %1357 = vmatpush2.xpose.msra.mxu0 0.0
      %1358 = vmatprep.mubr.f32.mxu0 0.0
      %1359 = vmatmul.mubr.f32.gmra.mxu0 %v1283
      %v1360 = vpop.f32.mrf.mxu0
      %v1361 = vadd.f32 0.0, %v1360
      %v1362 = vpop.f32.mrf.mxu0
      %1363 = vmatprep.mubr.f32.mxu0 0.0
      %1364 = vmatmul.mubr.f32.gmra.mxu0 %v1286
      %v1365 = vpop.f32.mrf.mxu0
      %v1366 = vadd.f32 0.0, %v1365
      %v1367 = vpop.f32.mrf.mxu0
      %1368 = vdwg.mxu0
      %v1370 = vsel %vm411, %v337, 0
      %v1373 = vsel %vm411, %v338, 0
      %v1376 = vsel %vm411, %v369, 0
      %v1379 = vsel %vm411, %v370, 0
      %1381 = vmatprep.subr.mxu0 0.0
      %1382 = vmatpush1.xpose.msra.mxu0 0.0
      %1383 = vmatprep.subr.mxu0 0.0
      %1384 = vmatpush1.xpose.msra.mxu0 0.0
      %1385 = vmatprep.subr.mxu0 0.0
      %1386 = vmatpush1.xpose.msra.mxu0 0.0
      %1387 = vmatprep.subr.mxu0 0.0
      %1388 = vmatpush1.xpose.msra.mxu0 0.0
      %1389 = vmatprep.subr.mxu0 0.0
      %1390 = vmatpush1.xpose.msra.mxu0 0.0
      %1391 = vmatprep.subr.mxu0 0.0
      %1392 = vmatpush1.xpose.msra.mxu0 0.0
      %1393 = vmatprep.subr.mxu0 0.0
      %1394 = vmatpush1.xpose.msra.mxu0 0.0
      %1395 = vmatprep.subr.mxu0 0.0
      %1396 = vmatpush1.xpose.msra.mxu0 0.0
      %1397 = vmatprep.subr.mxu0 0.0
      %1398 = vmatpush1.xpose.msra.mxu0 0.0
      %1399 = vmatprep.subr.mxu0 0.0
      %1400 = vmatpush1.xpose.msra.mxu0 0.0
      %1401 = vmatprep.subr.mxu0 0.0
      %1402 = vmatpush1.xpose.msra.mxu0 0.0
      %1403 = vmatprep.subr.mxu0 0.0
      %1404 = vmatpush1.xpose.msra.mxu0 0.0
      %1405 = vmatprep.subr.mxu0 0.0
      %1406 = vmatpush1.xpose.msra.mxu0 0.0
      %1407 = vmatprep.subr.mxu0 0.0
      %1408 = vmatpush1.xpose.msra.mxu0 0.0
      %1409 = vmatprep.subr.mxu0 0.0
      %1410 = vmatpush1.xpose.msra.mxu0 %v1379
      %1411 = vmatprep.subr.mxu0 0.0
      %1412 = vmatpush1.xpose.msra.mxu0 %v1376
      %1413 = vmatprep.subr.mxu0 0.0
      %1414 = vmatpush2.xpose.msra.mxu0 0.0
      %1415 = vmatprep.subr.mxu0 0.0
      %1416 = vmatpush2.xpose.msra.mxu0 0.0
      %1417 = vmatprep.subr.mxu0 0.0
      %1418 = vmatpush2.xpose.msra.mxu0 0.0
      %1419 = vmatprep.subr.mxu0 0.0
      %1420 = vmatpush2.xpose.msra.mxu0 0.0
      %1421 = vmatprep.subr.mxu0 0.0
      %1422 = vmatpush2.xpose.msra.mxu0 0.0
      %1423 = vmatprep.subr.mxu0 0.0
      %1424 = vmatpush2.xpose.msra.mxu0 0.0
      %1425 = vmatprep.subr.mxu0 0.0
      %1426 = vmatpush2.xpose.msra.mxu0 0.0
      %1427 = vmatprep.subr.mxu0 0.0
      %1428 = vmatpush2.xpose.msra.mxu0 0.0
      %1429 = vmatprep.subr.mxu0 0.0
      %1430 = vmatpush2.xpose.msra.mxu0 0.0
      %1431 = vmatprep.subr.mxu0 0.0
      %1432 = vmatpush2.xpose.msra.mxu0 0.0
      %1433 = vmatprep.subr.mxu0 0.0
      %1434 = vmatpush2.xpose.msra.mxu0 0.0
      %1435 = vmatprep.subr.mxu0 0.0
      %1436 = vmatpush2.xpose.msra.mxu0 0.0
      %1437 = vmatprep.subr.mxu0 0.0
      %1438 = vmatpush2.xpose.msra.mxu0 0.0
      %1439 = vmatprep.subr.mxu0 0.0
      %1440 = vmatpush2.xpose.msra.mxu0 0.0
      %1441 = vmatprep.subr.mxu0 0.0
      %1442 = vmatpush2.xpose.msra.mxu0 0.0
      %1443 = vmatprep.subr.mxu0 0.0
      %1444 = vmatpush2.xpose.msra.mxu0 0.0
      %1445 = vmatprep.mubr.f32.mxu0 0.0
      %1446 = vmatmul.mubr.f32.gmra.mxu0 %v1370
      %v1447 = vpop.f32.mrf.mxu0
      %v1448 = vadd.f32 0.0, %v1447
      %v1449 = vpop.f32.mrf.mxu0
      %1450 = vmatprep.mubr.f32.mxu0 0.0
      %1451 = vmatmul.mubr.f32.gmra.mxu0 %v1373
      %v1452 = vpop.f32.mrf.mxu0
      %v1453 = vadd.f32 0.0, %v1452
      %v1454 = vpop.f32.mrf.mxu0
      %1455 = vdwg.mxu0
      %v1457 = vsel %vm411, %v339, 0
      %v1460 = vsel %vm411, %v340, 0
      %v1463 = vsel %vm411, %v371, 0
      %v1466 = vsel %vm411, %v372, 0
      %1468 = vmatprep.subr.mxu0 0.0
      %1469 = vmatpush1.xpose.msra.mxu0 0.0
      %1470 = vmatprep.subr.mxu0 0.0
      %1471 = vmatpush1.xpose.msra.mxu0 0.0
      %1472 = vmatprep.subr.mxu0 0.0
      %1473 = vmatpush1.xpose.msra.mxu0 0.0
      %1474 = vmatprep.subr.mxu0 0.0
      %1475 = vmatpush1.xpose.msra.mxu0 0.0
      %1476 = vmatprep.subr.mxu0 0.0
      %1477 = vmatpush1.xpose.msra.mxu0 0.0
      %1478 = vmatprep.subr.mxu0 0.0
      %1479 = vmatpush1.xpose.msra.mxu0 0.0
      %1480 = vmatprep.subr.mxu0 0.0
      %1481 = vmatpush1.xpose.msra.mxu0 0.0
      %1482 = vmatprep.subr.mxu0 0.0
      %1483 = vmatpush1.xpose.msra.mxu0 0.0
      %1484 = vmatprep.subr.mxu0 0.0
      %1485 = vmatpush1.xpose.msra.mxu0 0.0
      %1486 = vmatprep.subr.mxu0 0.0
      %1487 = vmatpush1.xpose.msra.mxu0 0.0
      %1488 = vmatprep.subr.mxu0 0.0
      %1489 = vmatpush1.xpose.msra.mxu0 0.0
      %1490 = vmatprep.subr.mxu0 0.0
      %1491 = vmatpush1.xpose.msra.mxu0 0.0
      %1492 = vmatprep.subr.mxu0 0.0
      %1493 = vmatpush1.xpose.msra.mxu0 0.0
      %1494 = vmatprep.subr.mxu0 0.0
      %1495 = vmatpush1.xpose.msra.mxu0 0.0
      %1496 = vmatprep.subr.mxu0 0.0
      %1497 = vmatpush1.xpose.msra.mxu0 %v1466
      %1498 = vmatprep.subr.mxu0 0.0
      %1499 = vmatpush1.xpose.msra.mxu0 %v1463
      %1500 = vmatprep.subr.mxu0 0.0
      %1501 = vmatpush2.xpose.msra.mxu0 0.0
      %1502 = vmatprep.subr.mxu0 0.0
      %1503 = vmatpush2.xpose.msra.mxu0 0.0
      %1504 = vmatprep.subr.mxu0 0.0
      %1505 = vmatpush2.xpose.msra.mxu0 0.0
      %1506 = vmatprep.subr.mxu0 0.0
      %1507 = vmatpush2.xpose.msra.mxu0 0.0
      %1508 = vmatprep.subr.mxu0 0.0
      %1509 = vmatpush2.xpose.msra.mxu0 0.0
      %1510 = vmatprep.subr.mxu0 0.0
      %1511 = vmatpush2.xpose.msra.mxu0 0.0
      %1512 = vmatprep.subr.mxu0 0.0
      %1513 = vmatpush2.xpose.msra.mxu0 0.0
      %1514 = vmatprep.subr.mxu0 0.0
      %1515 = vmatpush2.xpose.msra.mxu0 0.0
      %1516 = vmatprep.subr.mxu0 0.0
      %1517 = vmatpush2.xpose.msra.mxu0 0.0
      %1518 = vmatprep.subr.mxu0 0.0
      %1519 = vmatpush2.xpose.msra.mxu0 0.0
      %1520 = vmatprep.subr.mxu0 0.0
      %1521 = vmatpush2.xpose.msra.mxu0 0.0
      %1522 = vmatprep.subr.mxu0 0.0
      %1523 = vmatpush2.xpose.msra.mxu0 0.0
      %1524 = vmatprep.subr.mxu0 0.0
      %1525 = vmatpush2.xpose.msra.mxu0 0.0
      %1526 = vmatprep.subr.mxu0 0.0
      %1527 = vmatpush2.xpose.msra.mxu0 0.0
      %1528 = vmatprep.subr.mxu0 0.0
      %1529 = vmatpush2.xpose.msra.mxu0 0.0
      %1530 = vmatprep.subr.mxu0 0.0
      %1531 = vmatpush2.xpose.msra.mxu0 0.0
      %1532 = vmatprep.mubr.f32.mxu0 0.0
      %1533 = vmatmul.mubr.f32.gmra.mxu0 %v1457
      %v1534 = vpop.f32.mrf.mxu0
      %v1535 = vadd.f32 0.0, %v1534
      %v1536 = vpop.f32.mrf.mxu0
      %1537 = vmatprep.mubr.f32.mxu0 0.0
      %1538 = vmatmul.mubr.f32.gmra.mxu0 %v1460
      %v1539 = vpop.f32.mrf.mxu0
      %v1540 = vadd.f32 0.0, %v1539
      %v1541 = vpop.f32.mrf.mxu0
      %1542 = vdwg.mxu0
      %v1544 = vsel %vm411, %v341, 0
      %v1547 = vsel %vm411, %v342, 0
      %v1550 = vsel %vm411, %v373, 0
      %v1553 = vsel %vm411, %v374, 0
      %1555 = vmatprep.subr.mxu0 0.0
      %1556 = vmatpush1.xpose.msra.mxu0 0.0
      %1557 = vmatprep.subr.mxu0 0.0
      %1558 = vmatpush1.xpose.msra.mxu0 0.0
      %1559 = vmatprep.subr.mxu0 0.0
      %1560 = vmatpush1.xpose.msra.mxu0 0.0
      %1561 = vmatprep.subr.mxu0 0.0
      %1562 = vmatpush1.xpose.msra.mxu0 0.0
      %1563 = vmatprep.subr.mxu0 0.0
      %1564 = vmatpush1.xpose.msra.mxu0 0.0
      %1565 = vmatprep.subr.mxu0 0.0
      %1566 = vmatpush1.xpose.msra.mxu0 0.0
      %1567 = vmatprep.subr.mxu0 0.0
      %1568 = vmatpush1.xpose.msra.mxu0 0.0
      %1569 = vmatprep.subr.mxu0 0.0
      %1570 = vmatpush1.xpose.msra.mxu0 0.0
      %1571 = vmatprep.subr.mxu0 0.0
      %1572 = vmatpush1.xpose.msra.mxu0 0.0
      %1573 = vmatprep.subr.mxu0 0.0
      %1574 = vmatpush1.xpose.msra.mxu0 0.0
      %1575 = vmatprep.subr.mxu0 0.0
      %1576 = vmatpush1.xpose.msra.mxu0 0.0
      %1577 = vmatprep.subr.mxu0 0.0
      %1578 = vmatpush1.xpose.msra.mxu0 0.0
      %1579 = vmatprep.subr.mxu0 0.0
      %1580 = vmatpush1.xpose.msra.mxu0 0.0
      %1581 = vmatprep.subr.mxu0 0.0
      %1582 = vmatpush1.xpose.msra.mxu0 0.0
      %1583 = vmatprep.subr.mxu0 0.0
      %1584 = vmatpush1.xpose.msra.mxu0 %v1553
      %1585 = vmatprep.subr.mxu0 0.0
      %1586 = vmatpush1.xpose.msra.mxu0 %v1550
      %1587 = vmatprep.subr.mxu0 0.0
      %1588 = vmatpush2.xpose.msra.mxu0 0.0
      %1589 = vmatprep.subr.mxu0 0.0
      %1590 = vmatpush2.xpose.msra.mxu0 0.0
      %1591 = vmatprep.subr.mxu0 0.0
      %1592 = vmatpush2.xpose.msra.mxu0 0.0
      %1593 = vmatprep.subr.mxu0 0.0
      %1594 = vmatpush2.xpose.msra.mxu0 0.0
      %1595 = vmatprep.subr.mxu0 0.0
      %1596 = vmatpush2.xpose.msra.mxu0 0.0
      %1597 = vmatprep.subr.mxu0 0.0
      %1598 = vmatpush2.xpose.msra.mxu0 0.0
      %1599 = vmatprep.subr.mxu0 0.0
      %1600 = vmatpush2.xpose.msra.mxu0 0.0
      %1601 = vmatprep.subr.mxu0 0.0
      %1602 = vmatpush2.xpose.msra.mxu0 0.0
      %1603 = vmatprep.subr.mxu0 0.0
      %1604 = vmatpush2.xpose.msra.mxu0 0.0
      %1605 = vmatprep.subr.mxu0 0.0
      %1606 = vmatpush2.xpose.msra.mxu0 0.0
      %1607 = vmatprep.subr.mxu0 0.0
      %1608 = vmatpush2.xpose.msra.mxu0 0.0
      %1609 = vmatprep.subr.mxu0 0.0
      %1610 = vmatpush2.xpose.msra.mxu0 0.0
      %1611 = vmatprep.subr.mxu0 0.0
      %1612 = vmatpush2.xpose.msra.mxu0 0.0
      %1613 = vmatprep.subr.mxu0 0.0
      %1614 = vmatpush2.xpose.msra.mxu0 0.0
      %1615 = vmatprep.subr.mxu0 0.0
      %1616 = vmatpush2.xpose.msra.mxu0 0.0
      %1617 = vmatprep.subr.mxu0 0.0
      %1618 = vmatpush2.xpose.msra.mxu0 0.0
      %1619 = vmatprep.mubr.f32.mxu0 0.0
      %1620 = vmatmul.mubr.f32.gmra.mxu0 %v1544
      %v1621 = vpop.f32.mrf.mxu0
      %v1622 = vadd.f32 0.0, %v1621
      %v1623 = vpop.f32.mrf.mxu0
      %1624 = vmatprep.mubr.f32.mxu0 0.0
      %1625 = vmatmul.mubr.f32.gmra.mxu0 %v1547
      %v1626 = vpop.f32.mrf.mxu0
      %v1627 = vadd.f32 0.0, %v1626
      %v1628 = vpop.f32.mrf.mxu0
      %1629 = vdwg.mxu0
      %v1631 = vsel %vm411, %v343, 0
      %v1634 = vsel %vm411, %v344, 0
      %v1637 = vsel %vm411, %v375, 0
      %v1640 = vsel %vm411, %v376, 0
      %1642 = vmatprep.subr.mxu0 0.0
      %1643 = vmatpush1.xpose.msra.mxu0 0.0
      %1644 = vmatprep.subr.mxu0 0.0
      %1645 = vmatpush1.xpose.msra.mxu0 0.0
      %1646 = vmatprep.subr.mxu0 0.0
      %1647 = vmatpush1.xpose.msra.mxu0 0.0
      %1648 = vmatprep.subr.mxu0 0.0
      %1649 = vmatpush1.xpose.msra.mxu0 0.0
      %1650 = vmatprep.subr.mxu0 0.0
      %1651 = vmatpush1.xpose.msra.mxu0 0.0
      %1652 = vmatprep.subr.mxu0 0.0
      %1653 = vmatpush1.xpose.msra.mxu0 0.0
      %1654 = vmatprep.subr.mxu0 0.0
      %1655 = vmatpush1.xpose.msra.mxu0 0.0
      %1656 = vmatprep.subr.mxu0 0.0
      %1657 = vmatpush1.xpose.msra.mxu0 0.0
      %1658 = vmatprep.subr.mxu0 0.0
      %1659 = vmatpush1.xpose.msra.mxu0 0.0
      %1660 = vmatprep.subr.mxu0 0.0
      %1661 = vmatpush1.xpose.msra.mxu0 0.0
      %1662 = vmatprep.subr.mxu0 0.0
      %1663 = vmatpush1.xpose.msra.mxu0 0.0
      %1664 = vmatprep.subr.mxu0 0.0
      %1665 = vmatpush1.xpose.msra.mxu0 0.0
      %1666 = vmatprep.subr.mxu0 0.0
      %1667 = vmatpush1.xpose.msra.mxu0 0.0
      %1668 = vmatprep.subr.mxu0 0.0
      %1669 = vmatpush1.xpose.msra.mxu0 0.0
      %1670 = vmatprep.subr.mxu0 0.0
      %1671 = vmatpush1.xpose.msra.mxu0 %v1640
      %1672 = vmatprep.subr.mxu0 0.0
      %1673 = vmatpush1.xpose.msra.mxu0 %v1637
      %1674 = vmatprep.subr.mxu0 0.0
      %1675 = vmatpush2.xpose.msra.mxu0 0.0
      %1676 = vmatprep.subr.mxu0 0.0
      %1677 = vmatpush2.xpose.msra.mxu0 0.0
      %1678 = vmatprep.subr.mxu0 0.0
      %1679 = vmatpush2.xpose.msra.mxu0 0.0
      %1680 = vmatprep.subr.mxu0 0.0
      %1681 = vmatpush2.xpose.msra.mxu0 0.0
      %1682 = vmatprep.subr.mxu0 0.0
      %1683 = vmatpush2.xpose.msra.mxu0 0.0
      %1684 = vmatprep.subr.mxu0 0.0
      %1685 = vmatpush2.xpose.msra.mxu0 0.0
      %1686 = vmatprep.subr.mxu0 0.0
      %1687 = vmatpush2.xpose.msra.mxu0 0.0
      %1688 = vmatprep.subr.mxu0 0.0
      %1689 = vmatpush2.xpose.msra.mxu0 0.0
      %1690 = vmatprep.subr.mxu0 0.0
      %1691 = vmatpush2.xpose.msra.mxu0 0.0
      %1692 = vmatprep.subr.mxu0 0.0
      %1693 = vmatpush2.xpose.msra.mxu0 0.0
      %1694 = vmatprep.subr.mxu0 0.0
      %1695 = vmatpush2.xpose.msra.mxu0 0.0
      %1696 = vmatprep.subr.mxu0 0.0
      %1697 = vmatpush2.xpose.msra.mxu0 0.0
      %1698 = vmatprep.subr.mxu0 0.0
      %1699 = vmatpush2.xpose.msra.mxu0 0.0
      %1700 = vmatprep.subr.mxu0 0.0
      %1701 = vmatpush2.xpose.msra.mxu0 0.0
      %1702 = vmatprep.subr.mxu0 0.0
      %1703 = vmatpush2.xpose.msra.mxu0 0.0
      %1704 = vmatprep.subr.mxu0 0.0
      %1705 = vmatpush2.xpose.msra.mxu0 0.0
      %1706 = vmatprep.mubr.f32.mxu0 0.0
      %1707 = vmatmul.mubr.f32.gmra.mxu0 %v1631
      %v1708 = vpop.f32.mrf.mxu0
      %v1709 = vadd.f32 0.0, %v1708
      %v1710 = vpop.f32.mrf.mxu0
      %1711 = vmatprep.mubr.f32.mxu0 0.0
      %1712 = vmatmul.mubr.f32.gmra.mxu0 %v1634
      %v1713 = vpop.f32.mrf.mxu0
      %v1714 = vadd.f32 0.0, %v1713
      %v1715 = vpop.f32.mrf.mxu0
      %1716 = vdwg.mxu0
      %v1718 = vsel %vm411, %v345, 0
      %v1721 = vsel %vm411, %v346, 0
      %v1724 = vsel %vm411, %v377, 0
      %v1727 = vsel %vm411, %v378, 0
      %1729 = vmatprep.subr.mxu0 0.0
      %1730 = vmatpush1.xpose.msra.mxu0 0.0
      %1731 = vmatprep.subr.mxu0 0.0
      %1732 = vmatpush1.xpose.msra.mxu0 0.0
      %1733 = vmatprep.subr.mxu0 0.0
      %1734 = vmatpush1.xpose.msra.mxu0 0.0
      %1735 = vmatprep.subr.mxu0 0.0
      %1736 = vmatpush1.xpose.msra.mxu0 0.0
      %1737 = vmatprep.subr.mxu0 0.0
      %1738 = vmatpush1.xpose.msra.mxu0 0.0
      %1739 = vmatprep.subr.mxu0 0.0
      %1740 = vmatpush1.xpose.msra.mxu0 0.0
      %1741 = vmatprep.subr.mxu0 0.0
      %1742 = vmatpush1.xpose.msra.mxu0 0.0
      %1743 = vmatprep.subr.mxu0 0.0
      %1744 = vmatpush1.xpose.msra.mxu0 0.0
      %1745 = vmatprep.subr.mxu0 0.0
      %1746 = vmatpush1.xpose.msra.mxu0 0.0
      %1747 = vmatprep.subr.mxu0 0.0
      %1748 = vmatpush1.xpose.msra.mxu0 0.0
      %1749 = vmatprep.subr.mxu0 0.0
      %1750 = vmatpush1.xpose.msra.mxu0 0.0
      %1751 = vmatprep.subr.mxu0 0.0
      %1752 = vmatpush1.xpose.msra.mxu0 0.0
      %1753 = vmatprep.subr.mxu0 0.0
      %1754 = vmatpush1.xpose.msra.mxu0 0.0
      %1755 = vmatprep.subr.mxu0 0.0
      %1756 = vmatpush1.xpose.msra.mxu0 0.0
      %1757 = vmatprep.subr.mxu0 0.0
      %1758 = vmatpush1.xpose.msra.mxu0 %v1727
      %1759 = vmatprep.subr.mxu0 0.0
      %1760 = vmatpush1.xpose.msra.mxu0 %v1724
      %1761 = vmatprep.subr.mxu0 0.0
      %1762 = vmatpush2.xpose.msra.mxu0 0.0
      %1763 = vmatprep.subr.mxu0 0.0
      %1764 = vmatpush2.xpose.msra.mxu0 0.0
      %1765 = vmatprep.subr.mxu0 0.0
      %1766 = vmatpush2.xpose.msra.mxu0 0.0
      %1767 = vmatprep.subr.mxu0 0.0
      %1768 = vmatpush2.xpose.msra.mxu0 0.0
      %1769 = vmatprep.subr.mxu0 0.0
      %1770 = vmatpush2.xpose.msra.mxu0 0.0
      %1771 = vmatprep.subr.mxu0 0.0
      %1772 = vmatpush2.xpose.msra.mxu0 0.0
      %1773 = vmatprep.subr.mxu0 0.0
      %1774 = vmatpush2.xpose.msra.mxu0 0.0
      %1775 = vmatprep.subr.mxu0 0.0
      %1776 = vmatpush2.xpose.msra.mxu0 0.0
      %1777 = vmatprep.subr.mxu0 0.0
      %1778 = vmatpush2.xpose.msra.mxu0 0.0
      %1779 = vmatprep.subr.mxu0 0.0
      %1780 = vmatpush2.xpose.msra.mxu0 0.0
      %1781 = vmatprep.subr.mxu0 0.0
      %1782 = vmatpush2.xpose.msra.mxu0 0.0
      %1783 = vmatprep.subr.mxu0 0.0
      %1784 = vmatpush2.xpose.msra.mxu0 0.0
      %1785 = vmatprep.subr.mxu0 0.0
      %1786 = vmatpush2.xpose.msra.mxu0 0.0
      %1787 = vmatprep.subr.mxu0 0.0
      %1788 = vmatpush2.xpose.msra.mxu0 0.0
      %1789 = vmatprep.subr.mxu0 0.0
      %1790 = vmatpush2.xpose.msra.mxu0 0.0
      %1791 = vmatprep.subr.mxu0 0.0
      %1792 = vmatpush2.xpose.msra.mxu0 0.0
      %1793 = vmatprep.mubr.f32.mxu0 0.0
      %1794 = vmatmul.mubr.f32.gmra.mxu0 %v1718
      %v1795 = vpop.f32.mrf.mxu0
      %v1796 = vadd.f32 0.0, %v1795
      %v1797 = vpop.f32.mrf.mxu0
      %1798 = vmatprep.mubr.f32.mxu0 0.0
      %1799 = vmatmul.mubr.f32.gmra.mxu0 %v1721
      %v1800 = vpop.f32.mrf.mxu0
      %v1801 = vadd.f32 0.0, %v1800
      %v1802 = vpop.f32.mrf.mxu0
      %1803 = vdwg.mxu0
      %v1804 = vld [vmem:[%s3] sm:$0xff]
      %v1805 = vld [vmem:[%s3 + $0x8] sm:$0xff]
      %v1806 = vld [vmem:[%s3 + $0x10] sm:$0xff]
      %v1807 = vld [vmem:[%s3 + $0x18] sm:$0xff]
      %v1808 = vld [vmem:[%s3 + $0x20] sm:$0xff]
      %v1809 = vld [vmem:[%s3 + $0x28] sm:$0xff]
      %v1810 = vld [vmem:[%s3 + $0x30] sm:$0xff]
      %v1811 = vld [vmem:[%s3 + $0x38] sm:$0xff]
      %v1812 = vadd.f32 %v491, %v1804
      %v1813 = vadd.f32 %v496, %v1805
      %v1814 = vadd.f32 %v578, %v1806
      %v1815 = vadd.f32 %v583, %v1807
      %v1816 = vadd.f32 %v665, %v1808
      %v1817 = vadd.f32 %v670, %v1809
      %v1818 = vadd.f32 %v752, %v1810
      %v1819 = vadd.f32 %v757, %v1811
      %v1820 = vadd.f32 %v839, %v1804
      %v1821 = vadd.f32 %v844, %v1805
      %v1822 = vadd.f32 %v926, %v1806
      %v1823 = vadd.f32 %v931, %v1807
      %v1824 = vadd.f32 %v1013, %v1808
      %v1825 = vadd.f32 %v1018, %v1809
      %v1826 = vadd.f32 %v1100, %v1810
      %v1827 = vadd.f32 %v1105, %v1811
      %v1828 = vadd.f32 %v1187, %v1804
      %v1829 = vadd.f32 %v1192, %v1805
      %v1830 = vadd.f32 %v1274, %v1806
      %v1831 = vadd.f32 %v1279, %v1807
      %v1832 = vadd.f32 %v1361, %v1808
      %v1833 = vadd.f32 %v1366, %v1809
      %v1834 = vadd.f32 %v1448, %v1810
      %v1835 = vadd.f32 %v1453, %v1811
      %v1836 = vadd.f32 %v1535, %v1804
      %v1837 = vadd.f32 %v1540, %v1805
      %v1838 = vadd.f32 %v1622, %v1806
      %v1839 = vadd.f32 %v1627, %v1807
      %v1840 = vadd.f32 %v1709, %v1808
      %v1841 = vadd.f32 %v1714, %v1809
      %v1842 = vadd.f32 %v1796, %v1810
      %v1843 = vadd.f32 %v1801, %v1811
      %v1844 = vld [vmem:[%s4] sm:$0xff]
      %v1845 = vld [vmem:[%s4 + $0x8] sm:$0xff]
      %v1846 = vld [vmem:[%s4 + $0x10] sm:$0xff]
      %v1847 = vld [vmem:[%s4 + $0x18] sm:$0xff]
      %v1848 = vld [vmem:[%s4 + $0x20] sm:$0xff]
      %v1849 = vld [vmem:[%s4 + $0x28] sm:$0xff]
      %v1850 = vld [vmem:[%s4 + $0x30] sm:$0xff]
      %v1851 = vld [vmem:[%s4 + $0x38] sm:$0xff]
      %v1852 = vadd.f32 %v1812, %v1844
      %v1853 = vadd.f32 %v1813, %v1845
      %v1854 = vadd.f32 %v1814, %v1844
      %v1855 = vadd.f32 %v1815, %v1845
      %v1856 = vadd.f32 %v1816, %v1844
      %v1857 = vadd.f32 %v1817, %v1845
      %v1858 = vadd.f32 %v1818, %v1844
      %v1859 = vadd.f32 %v1819, %v1845
      %v1860 = vadd.f32 %v1820, %v1846
      %v1861 = vadd.f32 %v1821, %v1847
      %v1862 = vadd.f32 %v1822, %v1846
      %v1863 = vadd.f32 %v1823, %v1847
      %v1864 = vadd.f32 %v1824, %v1846
      %v1865 = vadd.f32 %v1825, %v1847
      %v1866 = vadd.f32 %v1826, %v1846
      %v1867 = vadd.f32 %v1827, %v1847
      %v1868 = vadd.f32 %v1828, %v1848
      %v1869 = vadd.f32 %v1829, %v1849
      %v1870 = vadd.f32 %v1830, %v1848
      %v1871 = vadd.f32 %v1831, %v1849
      %v1872 = vadd.f32 %v1832, %v1848
      %v1873 = vadd.f32 %v1833, %v1849
      %v1874 = vadd.f32 %v1834, %v1848
      %v1875 = vadd.f32 %v1835, %v1849
      %v1876 = vadd.f32 %v1836, %v1850
      %v1877 = vadd.f32 %v1837, %v1851
      %v1878 = vadd.f32 %v1838, %v1850
      %v1879 = vadd.f32 %v1839, %v1851
      %v1880 = vadd.f32 %v1840, %v1850
      %v1881 = vadd.f32 %v1841, %v1851
      %v1882 = vadd.f32 %v1842, %v1850
      %v1883 = vadd.f32 %v1843, %v1851
      %vm1884 = vcmask 130048
      %v1885 = vsel %vm1884, %v1852, -inf
      %1886 = vmax.xlane.f32.xlu0 %v1885
      %v1887 = vpop.xlane.xlu0 %1886
      %v1888 = vsel %vm1884, %v1853, -inf
      %1889 = vmax.xlane.f32.xlu0 %v1888
      %v1890 = vpop.xlane.xlu0 %1889
      %v1891 = vsel %vm1884, %v1854, -inf
      %1892 = vmax.xlane.f32.xlu0 %v1891
      %v1893 = vpop.xlane.xlu0 %1892
      %v1894 = vsel %vm1884, %v1855, -inf
      %1895 = vmax.xlane.f32.xlu0 %v1894
      %v1896 = vpop.xlane.xlu0 %1895
      %v1897 = vsel %vm1884, %v1856, -inf
      %1898 = vmax.xlane.f32.xlu0 %v1897
      %v1899 = vpop.xlane.xlu0 %1898
      %v1900 = vsel %vm1884, %v1857, -inf
      %1901 = vmax.xlane.f32.xlu0 %v1900
      %v1902 = vpop.xlane.xlu0 %1901
      %v1903 = vsel %vm1884, %v1858, -inf
      %1904 = vmax.xlane.f32.xlu0 %v1903
      %v1905 = vpop.xlane.xlu0 %1904
      %v1906 = vsel %vm1884, %v1859, -inf
      %1907 = vmax.xlane.f32.xlu0 %v1906
      %v1908 = vpop.xlane.xlu0 %1907
      %v1909 = vsel %vm1884, %v1860, -inf
      %1910 = vmax.xlane.f32.xlu0 %v1909
      %v1911 = vpop.xlane.xlu0 %1910
      %v1912 = vsel %vm1884, %v1861, -inf
      %1913 = vmax.xlane.f32.xlu0 %v1912
      %v1914 = vpop.xlane.xlu0 %1913
      %v1915 = vsel %vm1884, %v1862, -inf
      %1916 = vmax.xlane.f32.xlu0 %v1915
      %v1917 = vpop.xlane.xlu0 %1916
      %v1918 = vsel %vm1884, %v1863, -inf
      %1919 = vmax.xlane.f32.xlu0 %v1918
      %v1920 = vpop.xlane.xlu0 %1919
      %v1921 = vsel %vm1884, %v1864, -inf
      %1922 = vmax.xlane.f32.xlu0 %v1921
      %v1923 = vpop.xlane.xlu0 %1922
      %v1924 = vsel %vm1884, %v1865, -inf
      %1925 = vmax.xlane.f32.xlu0 %v1924
      %v1926 = vpop.xlane.xlu0 %1925
      %v1927 = vsel %vm1884, %v1866, -inf
      %1928 = vmax.xlane.f32.xlu0 %v1927
      %v1929 = vpop.xlane.xlu0 %1928
      %v1930 = vsel %vm1884, %v1867, -inf
      %1931 = vmax.xlane.f32.xlu0 %v1930
      %v1932 = vpop.xlane.xlu0 %1931
      %v1933 = vsel %vm1884, %v1868, -inf
      %1934 = vmax.xlane.f32.xlu0 %v1933
      %v1935 = vpop.xlane.xlu0 %1934
      %v1936 = vsel %vm1884, %v1869, -inf
      %1937 = vmax.xlane.f32.xlu0 %v1936
      %v1938 = vpop.xlane.xlu0 %1937
      %v1939 = vsel %vm1884, %v1870, -inf
      %1940 = vmax.xlane.f32.xlu0 %v1939
      %v1941 = vpop.xlane.xlu0 %1940
      %v1942 = vsel %vm1884, %v1871, -inf
      %1943 = vmax.xlane.f32.xlu0 %v1942
      %v1944 = vpop.xlane.xlu0 %1943
      %v1945 = vsel %vm1884, %v1872, -inf
      %1946 = vmax.xlane.f32.xlu0 %v1945
      %v1947 = vpop.xlane.xlu0 %1946
      %v1948 = vsel %vm1884, %v1873, -inf
      %1949 = vmax.xlane.f32.xlu0 %v1948
      %v1950 = vpop.xlane.xlu0 %1949
      %v1951 = vsel %vm1884, %v1874, -inf
      %1952 = vmax.xlane.f32.xlu0 %v1951
      %v1953 = vpop.xlane.xlu0 %1952
      %v1954 = vsel %vm1884, %v1875, -inf
      %1955 = vmax.xlane.f32.xlu0 %v1954
      %v1956 = vpop.xlane.xlu0 %1955
      %v1957 = vsel %vm1884, %v1876, -inf
      %1958 = vmax.xlane.f32.xlu0 %v1957
      %v1959 = vpop.xlane.xlu0 %1958
      %v1960 = vsel %vm1884, %v1877, -inf
      %1961 = vmax.xlane.f32.xlu0 %v1960
      %v1962 = vpop.xlane.xlu0 %1961
      %v1963 = vsel %vm1884, %v1878, -inf
      %1964 = vmax.xlane.f32.xlu0 %v1963
      %v1965 = vpop.xlane.xlu0 %1964
      %v1966 = vsel %vm1884, %v1879, -inf
      %1967 = vmax.xlane.f32.xlu0 %v1966
      %v1968 = vpop.xlane.xlu0 %1967
      %v1969 = vsel %vm1884, %v1880, -inf
      %1970 = vmax.xlane.f32.xlu0 %v1969
      %v1971 = vpop.xlane.xlu0 %1970
      %v1972 = vsel %vm1884, %v1881, -inf
      %1973 = vmax.xlane.f32.xlu0 %v1972
      %v1974 = vpop.xlane.xlu0 %1973
      %v1975 = vsel %vm1884, %v1882, -inf
      %1976 = vmax.xlane.f32.xlu0 %v1975
      %v1977 = vpop.xlane.xlu0 %1976
      %v1978 = vsel %vm1884, %v1883, -inf
      %1979 = vmax.xlane.f32.xlu0 %v1978
      %v1980 = vpop.xlane.xlu0 %1979
      %v1981 = vsub.f32 %v1852, %v1887
      %v1982 = vsub.f32 %v1853, %v1890
      %v1983 = vsub.f32 %v1854, %v1893
      %v1984 = vsub.f32 %v1855, %v1896
      %v1985 = vsub.f32 %v1856, %v1899
      %v1986 = vsub.f32 %v1857, %v1902
      %v1987 = vsub.f32 %v1858, %v1905
      %v1988 = vsub.f32 %v1859, %v1908
      %v1989 = vsub.f32 %v1860, %v1911
      %v1990 = vsub.f32 %v1861, %v1914
      %v1991 = vsub.f32 %v1862, %v1917
      %v1992 = vsub.f32 %v1863, %v1920
      %v1993 = vsub.f32 %v1864, %v1923
      %v1994 = vsub.f32 %v1865, %v1926
      %v1995 = vsub.f32 %v1866, %v1929
      %v1996 = vsub.f32 %v1867, %v1932
      %v1997 = vsub.f32 %v1868, %v1935
      %v1998 = vsub.f32 %v1869, %v1938
      %v1999 = vsub.f32 %v1870, %v1941
      %v2000 = vsub.f32 %v1871, %v1944
      %v2001 = vsub.f32 %v1872, %v1947
      %v2002 = vsub.f32 %v1873, %v1950
      %v2003 = vsub.f32 %v1874, %v1953
      %v2004 = vsub.f32 %v1875, %v1956
      %v2005 = vsub.f32 %v1876, %v1959
      %v2006 = vsub.f32 %v1877, %v1962
      %v2007 = vsub.f32 %v1878, %v1965
      %v2008 = vsub.f32 %v1879, %v1968
      %v2009 = vsub.f32 %v1880, %v1971
      %v2010 = vsub.f32 %v1881, %v1974
      %v2011 = vsub.f32 %v1882, %v1977
      %v2012 = vsub.f32 %v1883, %v1980
      %v2013 = vmul.f32 %v1981, 1.442695
      %v2014 = vpow.pop %v2013
      %v2015 = vmul.f32 %v1982, 1.442695
      %v2016 = vpow.pop %v2015
      %v2017 = vmul.f32 %v1983, 1.442695
      %v2018 = vpow.pop %v2017
      %v2019 = vmul.f32 %v1984, 1.442695
      %v2020 = vpow.pop %v2019
      %v2021 = vmul.f32 %v1985, 1.442695
      %v2022 = vpow.pop %v2021
      %v2023 = vmul.f32 %v1986, 1.442695
      %v2024 = vpow.pop %v2023
      %v2025 = vmul.f32 %v1987, 1.442695
      %v2026 = vpow.pop %v2025
      %v2027 = vmul.f32 %v1988, 1.442695
      %v2028 = vpow.pop %v2027
      %v2029 = vmul.f32 %v1989, 1.442695
      %v2030 = vpow.pop %v2029
      %v2031 = vmul.f32 %v1990, 1.442695
      %v2032 = vpow.pop %v2031
      %v2033 = vmul.f32 %v1991, 1.442695
      %v2034 = vpow.pop %v2033
      %v2035 = vmul.f32 %v1992, 1.442695
      %v2036 = vpow.pop %v2035
      %v2037 = vmul.f32 %v1993, 1.442695
      %v2038 = vpow.pop %v2037
      %v2039 = vmul.f32 %v1994, 1.442695
      %v2040 = vpow.pop %v2039
      %v2041 = vmul.f32 %v1995, 1.442695
      %v2042 = vpow.pop %v2041
      %v2043 = vmul.f32 %v1996, 1.442695
      %v2044 = vpow.pop %v2043
      %v2045 = vmul.f32 %v1997, 1.442695
      %v2046 = vpow.pop %v2045
      %v2047 = vmul.f32 %v1998, 1.442695
      %v2048 = vpow.pop %v2047
      %v2049 = vmul.f32 %v1999, 1.442695
      %v2050 = vpow.pop %v2049
      %v2051 = vmul.f32 %v2000, 1.442695
      %v2052 = vpow.pop %v2051
      %v2053 = vmul.f32 %v2001, 1.442695
      %v2054 = vpow.pop %v2053
      %v2055 = vmul.f32 %v2002, 1.442695
      %v2056 = vpow.pop %v2055
      %v2057 = vmul.f32 %v2003, 1.442695
      %v2058 = vpow.pop %v2057
      %v2059 = vmul.f32 %v2004, 1.442695
      %v2060 = vpow.pop %v2059
      %v2061 = vmul.f32 %v2005, 1.442695
      %v2062 = vpow.pop %v2061
      %v2063 = vmul.f32 %v2006, 1.442695
      %v2064 = vpow.pop %v2063
      %v2065 = vmul.f32 %v2007, 1.442695
      %v2066 = vpow.pop %v2065
      %v2067 = vmul.f32 %v2008, 1.442695
      %v2068 = vpow.pop %v2067
      %v2069 = vmul.f32 %v2009, 1.442695
      %v2070 = vpow.pop %v2069
      %v2071 = vmul.f32 %v2010, 1.442695
      %v2072 = vpow.pop %v2071
      %v2073 = vmul.f32 %v2011, 1.442695
      %v2074 = vpow.pop %v2073
      %v2075 = vmul.f32 %v2012, 1.442695
      %v2076 = vpow.pop %v2075
      %v2077 = vsel %vm1884, %v2014, 0.0
      %2078 = vadd.xlane.f32.xlu0 %v2077
      %v2079 = vpop.xlane.xlu0 %2078
      %v2080 = vsel %vm1884, %v2016, 0.0
      %2081 = vadd.xlane.f32.xlu0 %v2080
      %v2082 = vpop.xlane.xlu0 %2081
      %v2083 = vsel %vm1884, %v2018, 0.0
      %2084 = vadd.xlane.f32.xlu0 %v2083
      %v2085 = vpop.xlane.xlu0 %2084
      %v2086 = vsel %vm1884, %v2020, 0.0
      %2087 = vadd.xlane.f32.xlu0 %v2086
      %v2088 = vpop.xlane.xlu0 %2087
      %v2089 = vsel %vm1884, %v2022, 0.0
      %2090 = vadd.xlane.f32.xlu0 %v2089
      %v2091 = vpop.xlane.xlu0 %2090
      %v2092 = vsel %vm1884, %v2024, 0.0
      %2093 = vadd.xlane.f32.xlu0 %v2092
      %v2094 = vpop.xlane.xlu0 %2093
      %v2095 = vsel %vm1884, %v2026, 0.0
      %2096 = vadd.xlane.f32.xlu0 %v2095
      %v2097 = vpop.xlane.xlu0 %2096
      %v2098 = vsel %vm1884, %v2028, 0.0
      %2099 = vadd.xlane.f32.xlu0 %v2098
      %v2100 = vpop.xlane.xlu0 %2099
      %v2101 = vsel %vm1884, %v2030, 0.0
      %2102 = vadd.xlane.f32.xlu0 %v2101
      %v2103 = vpop.xlane.xlu0 %2102
      %v2104 = vsel %vm1884, %v2032, 0.0
      %2105 = vadd.xlane.f32.xlu0 %v2104
      %v2106 = vpop.xlane.xlu0 %2105
      %v2107 = vsel %vm1884, %v2034, 0.0
      %2108 = vadd.xlane.f32.xlu0 %v2107
      %v2109 = vpop.xlane.xlu0 %2108
      %v2110 = vsel %vm1884, %v2036, 0.0
      %2111 = vadd.xlane.f32.xlu0 %v2110
      %v2112 = vpop.xlane.xlu0 %2111
      %v2113 = vsel %vm1884, %v2038, 0.0
      %2114 = vadd.xlane.f32.xlu0 %v2113
      %v2115 = vpop.xlane.xlu0 %2114
      %v2116 = vsel %vm1884, %v2040, 0.0
      %2117 = vadd.xlane.f32.xlu0 %v2116
      %v2118 = vpop.xlane.xlu0 %2117
      %v2119 = vsel %vm1884, %v2042, 0.0
      %2120 = vadd.xlane.f32.xlu0 %v2119
      %v2121 = vpop.xlane.xlu0 %2120
      %v2122 = vsel %vm1884, %v2044, 0.0
      %2123 = vadd.xlane.f32.xlu0 %v2122
      %v2124 = vpop.xlane.xlu0 %2123
      %v2125 = vsel %vm1884, %v2046, 0.0
      %2126 = vadd.xlane.f32.xlu0 %v2125
      %v2127 = vpop.xlane.xlu0 %2126
      %v2128 = vsel %vm1884, %v2048, 0.0
      %2129 = vadd.xlane.f32.xlu0 %v2128
      %v2130 = vpop.xlane.xlu0 %2129
      %v2131 = vsel %vm1884, %v2050, 0.0
      %2132 = vadd.xlane.f32.xlu0 %v2131
      %v2133 = vpop.xlane.xlu0 %2132
      %v2134 = vsel %vm1884, %v2052, 0.0
      %2135 = vadd.xlane.f32.xlu0 %v2134
      %v2136 = vpop.xlane.xlu0 %2135
      %v2137 = vsel %vm1884, %v2054, 0.0
      %2138 = vadd.xlane.f32.xlu0 %v2137
      %v2139 = vpop.xlane.xlu0 %2138
      %v2140 = vsel %vm1884, %v2056, 0.0
      %2141 = vadd.xlane.f32.xlu0 %v2140
      %v2142 = vpop.xlane.xlu0 %2141
      %v2143 = vsel %vm1884, %v2058, 0.0
      %2144 = vadd.xlane.f32.xlu0 %v2143
      %v2145 = vpop.xlane.xlu0 %2144
      %v2146 = vsel %vm1884, %v2060, 0.0
      %2147 = vadd.xlane.f32.xlu0 %v2146
      %v2148 = vpop.xlane.xlu0 %2147
      %v2149 = vsel %vm1884, %v2062, 0.0
      %2150 = vadd.xlane.f32.xlu0 %v2149
      %v2151 = vpop.xlane.xlu0 %2150
      %v2152 = vsel %vm1884, %v2064, 0.0
      %2153 = vadd.xlane.f32.xlu0 %v2152
      %v2154 = vpop.xlane.xlu0 %2153
      %v2155 = vsel %vm1884, %v2066, 0.0
      %2156 = vadd.xlane.f32.xlu0 %v2155
      %v2157 = vpop.xlane.xlu0 %2156
      %v2158 = vsel %vm1884, %v2068, 0.0
      %2159 = vadd.xlane.f32.xlu0 %v2158
      %v2160 = vpop.xlane.xlu0 %2159
      %v2161 = vsel %vm1884, %v2070, 0.0
      %2162 = vadd.xlane.f32.xlu0 %v2161
      %v2163 = vpop.xlane.xlu0 %2162
      %v2164 = vsel %vm1884, %v2072, 0.0
      %2165 = vadd.xlane.f32.xlu0 %v2164
      %v2166 = vpop.xlane.xlu0 %2165
      %v2167 = vsel %vm1884, %v2074, 0.0
      %2168 = vadd.xlane.f32.xlu0 %v2167
      %v2169 = vpop.xlane.xlu0 %2168
      %v2170 = vsel %vm1884, %v2076, 0.0
      %2171 = vadd.xlane.f32.xlu0 %v2170
      %v2172 = vpop.xlane.xlu0 %2171
      %v2173 = vrcp.pop %v2079
      %v2174 = vrcp.pop %v2082
      %v2175 = vrcp.pop %v2085
      %v2176 = vrcp.pop %v2088
      %v2177 = vrcp.pop %v2091
      %v2178 = vrcp.pop %v2094
      %v2179 = vrcp.pop %v2097
      %v2180 = vrcp.pop %v2100
      %v2181 = vrcp.pop %v2103
      %v2182 = vrcp.pop %v2106
      %v2183 = vrcp.pop %v2109
      %v2184 = vrcp.pop %v2112
      %v2185 = vrcp.pop %v2115
      %v2186 = vrcp.pop %v2118
      %v2187 = vrcp.pop %v2121
      %v2188 = vrcp.pop %v2124
      %v2189 = vrcp.pop %v2127
      %v2190 = vrcp.pop %v2130
      %v2191 = vrcp.pop %v2133
      %v2192 = vrcp.pop %v2136
      %v2193 = vrcp.pop %v2139
      %v2194 = vrcp.pop %v2142
      %v2195 = vrcp.pop %v2145
      %v2196 = vrcp.pop %v2148
      %v2197 = vrcp.pop %v2151
      %v2198 = vrcp.pop %v2154
      %v2199 = vrcp.pop %v2157
      %v2200 = vrcp.pop %v2160
      %v2201 = vrcp.pop %v2163
      %v2202 = vrcp.pop %v2166
      %v2203 = vrcp.pop %v2169
      %v2204 = vrcp.pop %v2172
      %v2205 = vmul.f32 %v2014, %v2173
      %v2206 = vmul.f32 %v2016, %v2174
      %v2207 = vmul.f32 %v2018, %v2175
      %v2208 = vmul.f32 %v2020, %v2176
      %v2209 = vmul.f32 %v2022, %v2177
      %v2210 = vmul.f32 %v2024, %v2178
      %v2211 = vmul.f32 %v2026, %v2179
      %v2212 = vmul.f32 %v2028, %v2180
      %v2213 = vmul.f32 %v2030, %v2181
      %v2214 = vmul.f32 %v2032, %v2182
      %v2215 = vmul.f32 %v2034, %v2183
      %v2216 = vmul.f32 %v2036, %v2184
      %v2217 = vmul.f32 %v2038, %v2185
      %v2218 = vmul.f32 %v2040, %v2186
      %v2219 = vmul.f32 %v2042, %v2187
      %v2220 = vmul.f32 %v2044, %v2188
      %v2221 = vmul.f32 %v2046, %v2189
      %v2222 = vmul.f32 %v2048, %v2190
      %v2223 = vmul.f32 %v2050, %v2191
      %v2224 = vmul.f32 %v2052, %v2192
      %v2225 = vmul.f32 %v2054, %v2193
      %v2226 = vmul.f32 %v2056, %v2194
      %v2227 = vmul.f32 %v2058, %v2195
      %v2228 = vmul.f32 %v2060, %v2196
      %v2229 = vmul.f32 %v2062, %v2197
      %v2230 = vmul.f32 %v2064, %v2198
      %v2231 = vmul.f32 %v2066, %v2199
      %v2232 = vmul.f32 %v2068, %v2200
      %v2233 = vmul.f32 %v2070, %v2201
      %v2234 = vmul.f32 %v2072, %v2202
      %v2235 = vmul.f32 %v2074, %v2203
      %v2236 = vmul.f32 %v2076, %v2204
      %v2238 = vsel %vm1884, %v2205, 0
      %v2241 = vsel %vm1884, %v2206, 0
      %2243 = vmatprep.subr.mxu0 0.0
      %2244 = vmatpush1.msra.mxu0 0.0
      %2245 = vmatprep.subr.mxu0 0.0
      %2246 = vmatpush1.msra.mxu0 0.0
      %2247 = vmatprep.subr.mxu0 0.0
      %2248 = vmatpush1.msra.mxu0 0.0
      %2249 = vmatprep.subr.mxu0 0.0
      %2250 = vmatpush1.msra.mxu0 0.0
      %2251 = vmatprep.subr.mxu0 0.0
      %2252 = vmatpush1.msra.mxu0 0.0
      %2253 = vmatprep.subr.mxu0 0.0
      %2254 = vmatpush1.msra.mxu0 0.0
      %2255 = vmatprep.subr.mxu0 0.0
      %2256 = vmatpush1.msra.mxu0 0.0
      %2257 = vmatprep.subr.mxu0 0.0
      %2258 = vmatpush1.msra.mxu0 0.0
      %2259 = vmatprep.subr.mxu0 0.0
      %2260 = vmatpush1.msra.mxu0 0.0
      %2261 = vmatprep.subr.mxu0 0.0
      %2262 = vmatpush1.msra.mxu0 0.0
      %2263 = vmatprep.subr.mxu0 0.0
      %2264 = vmatpush1.msra.mxu0 0.0
      %2265 = vmatprep.subr.mxu0 0.0
      %2266 = vmatpush1.msra.mxu0 0.0
      %2267 = vmatprep.subr.mxu0 0.0
      %2268 = vmatpush1.msra.mxu0 0.0
      %2269 = vmatprep.subr.mxu0 0.0
      %2270 = vmatpush1.msra.mxu0 0.0
      %2271 = vmatprep.subr.mxu0 0.0
      %2272 = vmatpush1.msra.mxu0 %v380
      %2273 = vmatprep.subr.mxu0 0.0
      %2274 = vmatpush1.msra.mxu0 %v379
      %2275 = vmatprep.subr.mxu0 0.0
      %2276 = vmatpush2.msra.mxu0 0.0
      %2277 = vmatprep.subr.mxu0 0.0
      %2278 = vmatpush2.msra.mxu0 0.0
      %2279 = vmatprep.subr.mxu0 0.0
      %2280 = vmatpush2.msra.mxu0 0.0
      %2281 = vmatprep.subr.mxu0 0.0
      %2282 = vmatpush2.msra.mxu0 0.0
      %2283 = vmatprep.subr.mxu0 0.0
      %2284 = vmatpush2.msra.mxu0 0.0
      %2285 = vmatprep.subr.mxu0 0.0
      %2286 = vmatpush2.msra.mxu0 0.0
      %2287 = vmatprep.subr.mxu0 0.0
      %2288 = vmatpush2.msra.mxu0 0.0
      %2289 = vmatprep.subr.mxu0 0.0
      %2290 = vmatpush2.msra.mxu0 0.0
      %2291 = vmatprep.subr.mxu0 0.0
      %2292 = vmatpush2.msra.mxu0 0.0
      %2293 = vmatprep.subr.mxu0 0.0
      %2294 = vmatpush2.msra.mxu0 0.0
      %2295 = vmatprep.subr.mxu0 0.0
      %2296 = vmatpush2.msra.mxu0 0.0
      %2297 = vmatprep.subr.mxu0 0.0
      %2298 = vmatpush2.msra.mxu0 0.0
      %2299 = vmatprep.subr.mxu0 0.0
      %2300 = vmatpush2.msra.mxu0 0.0
      %2301 = vmatprep.subr.mxu0 0.0
      %2302 = vmatpush2.msra.mxu0 0.0
      %2303 = vmatprep.subr.mxu0 0.0
      %2304 = vmatpush2.msra.mxu0 0.0
      %2305 = vmatprep.subr.mxu0 0.0
      %2306 = vmatpush2.msra.mxu0 0.0
      %2307 = vmatprep.mubr.f32.mxu0 0.0
      %2308 = vmatmul.mubr.f32.gmra.mxu0 %v2238
      %v2309 = vpop.f32.mrf.mxu0
      %v2310 = vadd.f32 0.0, %v2309
      %v2311 = vpop.f32.mrf.mxu0
      %2312 = vmatprep.mubr.f32.mxu0 0.0
      %2313 = vmatmul.mubr.f32.gmra.mxu0 %v2241
      %v2314 = vpop.f32.mrf.mxu0
      %v2315 = vadd.f32 0.0, %v2314
      %v2316 = vpop.f32.mrf.mxu0
      %2317 = vdwg.mxu0
      %v2319 = vsel %vm1884, %v2207, 0
      %v2322 = vsel %vm1884, %v2208, 0
      %2324 = vmatprep.subr.mxu0 0.0
      %2325 = vmatpush1.msra.mxu0 0.0
      %2326 = vmatprep.subr.mxu0 0.0
      %2327 = vmatpush1.msra.mxu0 0.0
      %2328 = vmatprep.subr.mxu0 0.0
      %2329 = vmatpush1.msra.mxu0 0.0
      %2330 = vmatprep.subr.mxu0 0.0
      %2331 = vmatpush1.msra.mxu0 0.0
      %2332 = vmatprep.subr.mxu0 0.0
      %2333 = vmatpush1.msra.mxu0 0.0
      %2334 = vmatprep.subr.mxu0 0.0
      %2335 = vmatpush1.msra.mxu0 0.0
      %2336 = vmatprep.subr.mxu0 0.0
      %2337 = vmatpush1.msra.mxu0 0.0
      %2338 = vmatprep.subr.mxu0 0.0
      %2339 = vmatpush1.msra.mxu0 0.0
      %2340 = vmatprep.subr.mxu0 0.0
      %2341 = vmatpush1.msra.mxu0 0.0
      %2342 = vmatprep.subr.mxu0 0.0
      %2343 = vmatpush1.msra.mxu0 0.0
      %2344 = vmatprep.subr.mxu0 0.0
      %2345 = vmatpush1.msra.mxu0 0.0
      %2346 = vmatprep.subr.mxu0 0.0
      %2347 = vmatpush1.msra.mxu0 0.0
      %2348 = vmatprep.subr.mxu0 0.0
      %2349 = vmatpush1.msra.mxu0 0.0
      %2350 = vmatprep.subr.mxu0 0.0
      %2351 = vmatpush1.msra.mxu0 0.0
      %2352 = vmatprep.subr.mxu0 0.0
      %2353 = vmatpush1.msra.mxu0 %v382
      %2354 = vmatprep.subr.mxu0 0.0
      %2355 = vmatpush1.msra.mxu0 %v381
      %2356 = vmatprep.subr.mxu0 0.0
      %2357 = vmatpush2.msra.mxu0 0.0
      %2358 = vmatprep.subr.mxu0 0.0
      %2359 = vmatpush2.msra.mxu0 0.0
      %2360 = vmatprep.subr.mxu0 0.0
      %2361 = vmatpush2.msra.mxu0 0.0
      %2362 = vmatprep.subr.mxu0 0.0
      %2363 = vmatpush2.msra.mxu0 0.0
      %2364 = vmatprep.subr.mxu0 0.0
      %2365 = vmatpush2.msra.mxu0 0.0
      %2366 = vmatprep.subr.mxu0 0.0
      %2367 = vmatpush2.msra.mxu0 0.0
      %2368 = vmatprep.subr.mxu0 0.0
      %2369 = vmatpush2.msra.mxu0 0.0
      %2370 = vmatprep.subr.mxu0 0.0
      %2371 = vmatpush2.msra.mxu0 0.0
      %2372 = vmatprep.subr.mxu0 0.0
      %2373 = vmatpush2.msra.mxu0 0.0
      %2374 = vmatprep.subr.mxu0 0.0
      %2375 = vmatpush2.msra.mxu0 0.0
      %2376 = vmatprep.subr.mxu0 0.0
      %2377 = vmatpush2.msra.mxu0 0.0
      %2378 = vmatprep.subr.mxu0 0.0
      %2379 = vmatpush2.msra.mxu0 0.0
      %2380 = vmatprep.subr.mxu0 0.0
      %2381 = vmatpush2.msra.mxu0 0.0
      %2382 = vmatprep.subr.mxu0 0.0
      %2383 = vmatpush2.msra.mxu0 0.0
      %2384 = vmatprep.subr.mxu0 0.0
      %2385 = vmatpush2.msra.mxu0 0.0
      %2386 = vmatprep.subr.mxu0 0.0
      %2387 = vmatpush2.msra.mxu0 0.0
      %2388 = vmatprep.mubr.f32.mxu0 0.0
      %2389 = vmatmul.mubr.f32.gmra.mxu0 %v2319
      %v2390 = vpop.f32.mrf.mxu0
      %v2391 = vadd.f32 0.0, %v2390
      %v2392 = vpop.f32.mrf.mxu0
      %2393 = vmatprep.mubr.f32.mxu0 0.0
      %2394 = vmatmul.mubr.f32.gmra.mxu0 %v2322
      %v2395 = vpop.f32.mrf.mxu0
      %v2396 = vadd.f32 0.0, %v2395
      %v2397 = vpop.f32.mrf.mxu0
      %2398 = vdwg.mxu0
      %v2400 = vsel %vm1884, %v2209, 0
      %v2403 = vsel %vm1884, %v2210, 0
      %2405 = vmatprep.subr.mxu0 0.0
      %2406 = vmatpush1.msra.mxu0 0.0
      %2407 = vmatprep.subr.mxu0 0.0
      %2408 = vmatpush1.msra.mxu0 0.0
      %2409 = vmatprep.subr.mxu0 0.0
      %2410 = vmatpush1.msra.mxu0 0.0
      %2411 = vmatprep.subr.mxu0 0.0
      %2412 = vmatpush1.msra.mxu0 0.0
      %2413 = vmatprep.subr.mxu0 0.0
      %2414 = vmatpush1.msra.mxu0 0.0
      %2415 = vmatprep.subr.mxu0 0.0
      %2416 = vmatpush1.msra.mxu0 0.0
      %2417 = vmatprep.subr.mxu0 0.0
      %2418 = vmatpush1.msra.mxu0 0.0
      %2419 = vmatprep.subr.mxu0 0.0
      %2420 = vmatpush1.msra.mxu0 0.0
      %2421 = vmatprep.subr.mxu0 0.0
      %2422 = vmatpush1.msra.mxu0 0.0
      %2423 = vmatprep.subr.mxu0 0.0
      %2424 = vmatpush1.msra.mxu0 0.0
      %2425 = vmatprep.subr.mxu0 0.0
      %2426 = vmatpush1.msra.mxu0 0.0
      %2427 = vmatprep.subr.mxu0 0.0
      %2428 = vmatpush1.msra.mxu0 0.0
      %2429 = vmatprep.subr.mxu0 0.0
      %2430 = vmatpush1.msra.mxu0 0.0
      %2431 = vmatprep.subr.mxu0 0.0
      %2432 = vmatpush1.msra.mxu0 0.0
      %2433 = vmatprep.subr.mxu0 0.0
      %2434 = vmatpush1.msra.mxu0 %v384
      %2435 = vmatprep.subr.mxu0 0.0
      %2436 = vmatpush1.msra.mxu0 %v383
      %2437 = vmatprep.subr.mxu0 0.0
      %2438 = vmatpush2.msra.mxu0 0.0
      %2439 = vmatprep.subr.mxu0 0.0
      %2440 = vmatpush2.msra.mxu0 0.0
      %2441 = vmatprep.subr.mxu0 0.0
      %2442 = vmatpush2.msra.mxu0 0.0
      %2443 = vmatprep.subr.mxu0 0.0
      %2444 = vmatpush2.msra.mxu0 0.0
      %2445 = vmatprep.subr.mxu0 0.0
      %2446 = vmatpush2.msra.mxu0 0.0
      %2447 = vmatprep.subr.mxu0 0.0
      %2448 = vmatpush2.msra.mxu0 0.0
      %2449 = vmatprep.subr.mxu0 0.0
      %2450 = vmatpush2.msra.mxu0 0.0
      %2451 = vmatprep.subr.mxu0 0.0
      %2452 = vmatpush2.msra.mxu0 0.0
      %2453 = vmatprep.subr.mxu0 0.0
      %2454 = vmatpush2.msra.mxu0 0.0
      %2455 = vmatprep.subr.mxu0 0.0
      %2456 = vmatpush2.msra.mxu0 0.0
      %2457 = vmatprep.subr.mxu0 0.0
      %2458 = vmatpush2.msra.mxu0 0.0
      %2459 = vmatprep.subr.mxu0 0.0
      %2460 = vmatpush2.msra.mxu0 0.0
      %2461 = vmatprep.subr.mxu0 0.0
      %2462 = vmatpush2.msra.mxu0 0.0
      %2463 = vmatprep.subr.mxu0 0.0
      %2464 = vmatpush2.msra.mxu0 0.0
      %2465 = vmatprep.subr.mxu0 0.0
      %2466 = vmatpush2.msra.mxu0 0.0
      %2467 = vmatprep.subr.mxu0 0.0
      %2468 = vmatpush2.msra.mxu0 0.0
      %2469 = vmatprep.mubr.f32.mxu0 0.0
      %2470 = vmatmul.mubr.f32.gmra.mxu0 %v2400
      %v2471 = vpop.f32.mrf.mxu0
      %v2472 = vadd.f32 0.0, %v2471
      %v2473 = vpop.f32.mrf.mxu0
      %2474 = vmatprep.mubr.f32.mxu0 0.0
      %2475 = vmatmul.mubr.f32.gmra.mxu0 %v2403
      %v2476 = vpop.f32.mrf.mxu0
      %v2477 = vadd.f32 0.0, %v2476
      %v2478 = vpop.f32.mrf.mxu0
      %2479 = vdwg.mxu0
      %v2481 = vsel %vm1884, %v2211, 0
      %v2484 = vsel %vm1884, %v2212, 0
      %2486 = vmatprep.subr.mxu0 0.0
      %2487 = vmatpush1.msra.mxu0 0.0
      %2488 = vmatprep.subr.mxu0 0.0
      %2489 = vmatpush1.msra.mxu0 0.0
      %2490 = vmatprep.subr.mxu0 0.0
      %2491 = vmatpush1.msra.mxu0 0.0
      %2492 = vmatprep.subr.mxu0 0.0
      %2493 = vmatpush1.msra.mxu0 0.0
      %2494 = vmatprep.subr.mxu0 0.0
      %2495 = vmatpush1.msra.mxu0 0.0
      %2496 = vmatprep.subr.mxu0 0.0
      %2497 = vmatpush1.msra.mxu0 0.0
      %2498 = vmatprep.subr.mxu0 0.0
      %2499 = vmatpush1.msra.mxu0 0.0
      %2500 = vmatprep.subr.mxu0 0.0
      %2501 = vmatpush1.msra.mxu0 0.0
      %2502 = vmatprep.subr.mxu0 0.0
      %2503 = vmatpush1.msra.mxu0 0.0
      %2504 = vmatprep.subr.mxu0 0.0
      %2505 = vmatpush1.msra.mxu0 0.0
      %2506 = vmatprep.subr.mxu0 0.0
      %2507 = vmatpush1.msra.mxu0 0.0
      %2508 = vmatprep.subr.mxu0 0.0
      %2509 = vmatpush1.msra.mxu0 0.0
      %2510 = vmatprep.subr.mxu0 0.0
      %2511 = vmatpush1.msra.mxu0 0.0
      %2512 = vmatprep.subr.mxu0 0.0
      %2513 = vmatpush1.msra.mxu0 0.0
      %2514 = vmatprep.subr.mxu0 0.0
      %2515 = vmatpush1.msra.mxu0 %v386
      %2516 = vmatprep.subr.mxu0 0.0
      %2517 = vmatpush1.msra.mxu0 %v385
      %2518 = vmatprep.subr.mxu0 0.0
      %2519 = vmatpush2.msra.mxu0 0.0
      %2520 = vmatprep.subr.mxu0 0.0
      %2521 = vmatpush2.msra.mxu0 0.0
      %2522 = vmatprep.subr.mxu0 0.0
      %2523 = vmatpush2.msra.mxu0 0.0
      %2524 = vmatprep.subr.mxu0 0.0
      %2525 = vmatpush2.msra.mxu0 0.0
      %2526 = vmatprep.subr.mxu0 0.0
      %2527 = vmatpush2.msra.mxu0 0.0
      %2528 = vmatprep.subr.mxu0 0.0
      %2529 = vmatpush2.msra.mxu0 0.0
      %2530 = vmatprep.subr.mxu0 0.0
      %2531 = vmatpush2.msra.mxu0 0.0
      %2532 = vmatprep.subr.mxu0 0.0
      %2533 = vmatpush2.msra.mxu0 0.0
      %2534 = vmatprep.subr.mxu0 0.0
      %2535 = vmatpush2.msra.mxu0 0.0
      %2536 = vmatprep.subr.mxu0 0.0
      %2537 = vmatpush2.msra.mxu0 0.0
      %2538 = vmatprep.subr.mxu0 0.0
      %2539 = vmatpush2.msra.mxu0 0.0
      %2540 = vmatprep.subr.mxu0 0.0
      %2541 = vmatpush2.msra.mxu0 0.0
      %2542 = vmatprep.subr.mxu0 0.0
      %2543 = vmatpush2.msra.mxu0 0.0
      %2544 = vmatprep.subr.mxu0 0.0
      %2545 = vmatpush2.msra.mxu0 0.0
      %2546 = vmatprep.subr.mxu0 0.0
      %2547 = vmatpush2.msra.mxu0 0.0
      %2548 = vmatprep.subr.mxu0 0.0
      %2549 = vmatpush2.msra.mxu0 0.0
      %2550 = vmatprep.mubr.f32.mxu0 0.0
      %2551 = vmatmul.mubr.f32.gmra.mxu0 %v2481
      %v2552 = vpop.f32.mrf.mxu0
      %v2553 = vadd.f32 0.0, %v2552
      %v2554 = vpop.f32.mrf.mxu0
      %2555 = vmatprep.mubr.f32.mxu0 0.0
      %2556 = vmatmul.mubr.f32.gmra.mxu0 %v2484
      %v2557 = vpop.f32.mrf.mxu0
      %v2558 = vadd.f32 0.0, %v2557
      %v2559 = vpop.f32.mrf.mxu0
      %2560 = vdwg.mxu0
      %v2562 = vsel %vm1884, %v2213, 0
      %v2565 = vsel %vm1884, %v2214, 0
      %2567 = vmatprep.subr.mxu0 0.0
      %2568 = vmatpush1.msra.mxu0 0.0
      %2569 = vmatprep.subr.mxu0 0.0
      %2570 = vmatpush1.msra.mxu0 0.0
      %2571 = vmatprep.subr.mxu0 0.0
      %2572 = vmatpush1.msra.mxu0 0.0
      %2573 = vmatprep.subr.mxu0 0.0
      %2574 = vmatpush1.msra.mxu0 0.0
      %2575 = vmatprep.subr.mxu0 0.0
      %2576 = vmatpush1.msra.mxu0 0.0
      %2577 = vmatprep.subr.mxu0 0.0
      %2578 = vmatpush1.msra.mxu0 0.0
      %2579 = vmatprep.subr.mxu0 0.0
      %2580 = vmatpush1.msra.mxu0 0.0
      %2581 = vmatprep.subr.mxu0 0.0
      %2582 = vmatpush1.msra.mxu0 0.0
      %2583 = vmatprep.subr.mxu0 0.0
      %2584 = vmatpush1.msra.mxu0 0.0
      %2585 = vmatprep.subr.mxu0 0.0
      %2586 = vmatpush1.msra.mxu0 0.0
      %2587 = vmatprep.subr.mxu0 0.0
      %2588 = vmatpush1.msra.mxu0 0.0
      %2589 = vmatprep.subr.mxu0 0.0
      %2590 = vmatpush1.msra.mxu0 0.0
      %2591 = vmatprep.subr.mxu0 0.0
      %2592 = vmatpush1.msra.mxu0 0.0
      %2593 = vmatprep.subr.mxu0 0.0
      %2594 = vmatpush1.msra.mxu0 0.0
      %2595 = vmatprep.subr.mxu0 0.0
      %2596 = vmatpush1.msra.mxu0 %v388
      %2597 = vmatprep.subr.mxu0 0.0
      %2598 = vmatpush1.msra.mxu0 %v387
      %2599 = vmatprep.subr.mxu0 0.0
      %2600 = vmatpush2.msra.mxu0 0.0
      %2601 = vmatprep.subr.mxu0 0.0
      %2602 = vmatpush2.msra.mxu0 0.0
      %2603 = vmatprep.subr.mxu0 0.0
      %2604 = vmatpush2.msra.mxu0 0.0
      %2605 = vmatprep.subr.mxu0 0.0
      %2606 = vmatpush2.msra.mxu0 0.0
      %2607 = vmatprep.subr.mxu0 0.0
      %2608 = vmatpush2.msra.mxu0 0.0
      %2609 = vmatprep.subr.mxu0 0.0
      %2610 = vmatpush2.msra.mxu0 0.0
      %2611 = vmatprep.subr.mxu0 0.0
      %2612 = vmatpush2.msra.mxu0 0.0
      %2613 = vmatprep.subr.mxu0 0.0
      %2614 = vmatpush2.msra.mxu0 0.0
      %2615 = vmatprep.subr.mxu0 0.0
      %2616 = vmatpush2.msra.mxu0 0.0
      %2617 = vmatprep.subr.mxu0 0.0
      %2618 = vmatpush2.msra.mxu0 0.0
      %2619 = vmatprep.subr.mxu0 0.0
      %2620 = vmatpush2.msra.mxu0 0.0
      %2621 = vmatprep.subr.mxu0 0.0
      %2622 = vmatpush2.msra.mxu0 0.0
      %2623 = vmatprep.subr.mxu0 0.0
      %2624 = vmatpush2.msra.mxu0 0.0
      %2625 = vmatprep.subr.mxu0 0.0
      %2626 = vmatpush2.msra.mxu0 0.0
      %2627 = vmatprep.subr.mxu0 0.0
      %2628 = vmatpush2.msra.mxu0 0.0
      %2629 = vmatprep.subr.mxu0 0.0
      %2630 = vmatpush2.msra.mxu0 0.0
      %2631 = vmatprep.mubr.f32.mxu0 0.0
      %2632 = vmatmul.mubr.f32.gmra.mxu0 %v2562
      %v2633 = vpop.f32.mrf.mxu0
      %v2634 = vadd.f32 0.0, %v2633
      %v2635 = vpop.f32.mrf.mxu0
      %2636 = vmatprep.mubr.f32.mxu0 0.0
      %2637 = vmatmul.mubr.f32.gmra.mxu0 %v2565
      %v2638 = vpop.f32.mrf.mxu0
      %v2639 = vadd.f32 0.0, %v2638
      %v2640 = vpop.f32.mrf.mxu0
      %2641 = vdwg.mxu0
      %v2643 = vsel %vm1884, %v2215, 0
      %v2646 = vsel %vm1884, %v2216, 0
      %2648 = vmatprep.subr.mxu0 0.0
      %2649 = vmatpush1.msra.mxu0 0.0
      %2650 = vmatprep.subr.mxu0 0.0
      %2651 = vmatpush1.msra.mxu0 0.0
      %2652 = vmatprep.subr.mxu0 0.0
      %2653 = vmatpush1.msra.mxu0 0.0
      %2654 = vmatprep.subr.mxu0 0.0
      %2655 = vmatpush1.msra.mxu0 0.0
      %2656 = vmatprep.subr.mxu0 0.0
      %2657 = vmatpush1.msra.mxu0 0.0
      %2658 = vmatprep.subr.mxu0 0.0
      %2659 = vmatpush1.msra.mxu0 0.0
      %2660 = vmatprep.subr.mxu0 0.0
      %2661 = vmatpush1.msra.mxu0 0.0
      %2662 = vmatprep.subr.mxu0 0.0
      %2663 = vmatpush1.msra.mxu0 0.0
      %2664 = vmatprep.subr.mxu0 0.0
      %2665 = vmatpush1.msra.mxu0 0.0
      %2666 = vmatprep.subr.mxu0 0.0
      %2667 = vmatpush1.msra.mxu0 0.0
      %2668 = vmatprep.subr.mxu0 0.0
      %2669 = vmatpush1.msra.mxu0 0.0
      %2670 = vmatprep.subr.mxu0 0.0
      %2671 = vmatpush1.msra.mxu0 0.0
      %2672 = vmatprep.subr.mxu0 0.0
      %2673 = vmatpush1.msra.mxu0 0.0
      %2674 = vmatprep.subr.mxu0 0.0
      %2675 = vmatpush1.msra.mxu0 0.0
      %2676 = vmatprep.subr.mxu0 0.0
      %2677 = vmatpush1.msra.mxu0 %v390
      %2678 = vmatprep.subr.mxu0 0.0
      %2679 = vmatpush1.msra.mxu0 %v389
      %2680 = vmatprep.subr.mxu0 0.0
      %2681 = vmatpush2.msra.mxu0 0.0
      %2682 = vmatprep.subr.mxu0 0.0
      %2683 = vmatpush2.msra.mxu0 0.0
      %2684 = vmatprep.subr.mxu0 0.0
      %2685 = vmatpush2.msra.mxu0 0.0
      %2686 = vmatprep.subr.mxu0 0.0
      %2687 = vmatpush2.msra.mxu0 0.0
      %2688 = vmatprep.subr.mxu0 0.0
      %2689 = vmatpush2.msra.mxu0 0.0
      %2690 = vmatprep.subr.mxu0 0.0
      %2691 = vmatpush2.msra.mxu0 0.0
      %2692 = vmatprep.subr.mxu0 0.0
      %2693 = vmatpush2.msra.mxu0 0.0
      %2694 = vmatprep.subr.mxu0 0.0
      %2695 = vmatpush2.msra.mxu0 0.0
      %2696 = vmatprep.subr.mxu0 0.0
      %2697 = vmatpush2.msra.mxu0 0.0
      %2698 = vmatprep.subr.mxu0 0.0
      %2699 = vmatpush2.msra.mxu0 0.0
      %2700 = vmatprep.subr.mxu0 0.0
      %2701 = vmatpush2.msra.mxu0 0.0
      %2702 = vmatprep.subr.mxu0 0.0
      %2703 = vmatpush2.msra.mxu0 0.0
      %2704 = vmatprep.subr.mxu0 0.0
      %2705 = vmatpush2.msra.mxu0 0.0
      %2706 = vmatprep.subr.mxu0 0.0
      %2707 = vmatpush2.msra.mxu0 0.0
      %2708 = vmatprep.subr.mxu0 0.0
      %2709 = vmatpush2.msra.mxu0 0.0
      %2710 = vmatprep.subr.mxu0 0.0
      %2711 = vmatpush2.msra.mxu0 0.0
      %2712 = vmatprep.mubr.f32.mxu0 0.0
      %2713 = vmatmul.mubr.f32.gmra.mxu0 %v2643
      %v2714 = vpop.f32.mrf.mxu0
      %v2715 = vadd.f32 0.0, %v2714
      %v2716 = vpop.f32.mrf.mxu0
      %2717 = vmatprep.mubr.f32.mxu0 0.0
      %2718 = vmatmul.mubr.f32.gmra.mxu0 %v2646
      %v2719 = vpop.f32.mrf.mxu0
      %v2720 = vadd.f32 0.0, %v2719
      %v2721 = vpop.f32.mrf.mxu0
      %2722 = vdwg.mxu0
      %v2724 = vsel %vm1884, %v2217, 0
      %v2727 = vsel %vm1884, %v2218, 0
      %2729 = vmatprep.subr.mxu0 0.0
      %2730 = vmatpush1.msra.mxu0 0.0
      %2731 = vmatprep.subr.mxu0 0.0
      %2732 = vmatpush1.msra.mxu0 0.0
      %2733 = vmatprep.subr.mxu0 0.0
      %2734 = vmatpush1.msra.mxu0 0.0
      %2735 = vmatprep.subr.mxu0 0.0
      %2736 = vmatpush1.msra.mxu0 0.0
      %2737 = vmatprep.subr.mxu0 0.0
      %2738 = vmatpush1.msra.mxu0 0.0
      %2739 = vmatprep.subr.mxu0 0.0
      %2740 = vmatpush1.msra.mxu0 0.0
      %2741 = vmatprep.subr.mxu0 0.0
      %2742 = vmatpush1.msra.mxu0 0.0
      %2743 = vmatprep.subr.mxu0 0.0
      %2744 = vmatpush1.msra.mxu0 0.0
      %2745 = vmatprep.subr.mxu0 0.0
      %2746 = vmatpush1.msra.mxu0 0.0
      %2747 = vmatprep.subr.mxu0 0.0
      %2748 = vmatpush1.msra.mxu0 0.0
      %2749 = vmatprep.subr.mxu0 0.0
      %2750 = vmatpush1.msra.mxu0 0.0
      %2751 = vmatprep.subr.mxu0 0.0
      %2752 = vmatpush1.msra.mxu0 0.0
      %2753 = vmatprep.subr.mxu0 0.0
      %2754 = vmatpush1.msra.mxu0 0.0
      %2755 = vmatprep.subr.mxu0 0.0
      %2756 = vmatpush1.msra.mxu0 0.0
      %2757 = vmatprep.subr.mxu0 0.0
      %2758 = vmatpush1.msra.mxu0 %v392
      %2759 = vmatprep.subr.mxu0 0.0
      %2760 = vmatpush1.msra.mxu0 %v391
      %2761 = vmatprep.subr.mxu0 0.0
      %2762 = vmatpush2.msra.mxu0 0.0
      %2763 = vmatprep.subr.mxu0 0.0
      %2764 = vmatpush2.msra.mxu0 0.0
      %2765 = vmatprep.subr.mxu0 0.0
      %2766 = vmatpush2.msra.mxu0 0.0
      %2767 = vmatprep.subr.mxu0 0.0
      %2768 = vmatpush2.msra.mxu0 0.0
      %2769 = vmatprep.subr.mxu0 0.0
      %2770 = vmatpush2.msra.mxu0 0.0
      %2771 = vmatprep.subr.mxu0 0.0
      %2772 = vmatpush2.msra.mxu0 0.0
      %2773 = vmatprep.subr.mxu0 0.0
      %2774 = vmatpush2.msra.mxu0 0.0
      %2775 = vmatprep.subr.mxu0 0.0
      %2776 = vmatpush2.msra.mxu0 0.0
      %2777 = vmatprep.subr.mxu0 0.0
      %2778 = vmatpush2.msra.mxu0 0.0
      %2779 = vmatprep.subr.mxu0 0.0
      %2780 = vmatpush2.msra.mxu0 0.0
      %2781 = vmatprep.subr.mxu0 0.0
      %2782 = vmatpush2.msra.mxu0 0.0
      %2783 = vmatprep.subr.mxu0 0.0
      %2784 = vmatpush2.msra.mxu0 0.0
      %2785 = vmatprep.subr.mxu0 0.0
      %2786 = vmatpush2.msra.mxu0 0.0
      %2787 = vmatprep.subr.mxu0 0.0
      %2788 = vmatpush2.msra.mxu0 0.0
      %2789 = vmatprep.subr.mxu0 0.0
      %2790 = vmatpush2.msra.mxu0 0.0
      %2791 = vmatprep.subr.mxu0 0.0
      %2792 = vmatpush2.msra.mxu0 0.0
      %2793 = vmatprep.mubr.f32.mxu0 0.0
      %2794 = vmatmul.mubr.f32.gmra.mxu0 %v2724
      %v2795 = vpop.f32.mrf.mxu0
      %v2796 = vadd.f32 0.0, %v2795
      %v2797 = vpop.f32.mrf.mxu0
      %2798 = vmatprep.mubr.f32.mxu0 0.0
      %2799 = vmatmul.mubr.f32.gmra.mxu0 %v2727
      %v2800 = vpop.f32.mrf.mxu0
      %v2801 = vadd.f32 0.0, %v2800
      %v2802 = vpop.f32.mrf.mxu0
      %2803 = vdwg.mxu0
      %v2805 = vsel %vm1884, %v2219, 0
      %v2808 = vsel %vm1884, %v2220, 0
      %2810 = vmatprep.subr.mxu0 0.0
      %2811 = vmatpush1.msra.mxu0 0.0
      %2812 = vmatprep.subr.mxu0 0.0
      %2813 = vmatpush1.msra.mxu0 0.0
      %2814 = vmatprep.subr.mxu0 0.0
      %2815 = vmatpush1.msra.mxu0 0.0
      %2816 = vmatprep.subr.mxu0 0.0
      %2817 = vmatpush1.msra.mxu0 0.0
      %2818 = vmatprep.subr.mxu0 0.0
      %2819 = vmatpush1.msra.mxu0 0.0
      %2820 = vmatprep.subr.mxu0 0.0
      %2821 = vmatpush1.msra.mxu0 0.0
      %2822 = vmatprep.subr.mxu0 0.0
      %2823 = vmatpush1.msra.mxu0 0.0
      %2824 = vmatprep.subr.mxu0 0.0
      %2825 = vmatpush1.msra.mxu0 0.0
      %2826 = vmatprep.subr.mxu0 0.0
      %2827 = vmatpush1.msra.mxu0 0.0
      %2828 = vmatprep.subr.mxu0 0.0
      %2829 = vmatpush1.msra.mxu0 0.0
      %2830 = vmatprep.subr.mxu0 0.0
      %2831 = vmatpush1.msra.mxu0 0.0
      %2832 = vmatprep.subr.mxu0 0.0
      %2833 = vmatpush1.msra.mxu0 0.0
      %2834 = vmatprep.subr.mxu0 0.0
      %2835 = vmatpush1.msra.mxu0 0.0
      %2836 = vmatprep.subr.mxu0 0.0
      %2837 = vmatpush1.msra.mxu0 0.0
      %2838 = vmatprep.subr.mxu0 0.0
      %2839 = vmatpush1.msra.mxu0 %v394
      %2840 = vmatprep.subr.mxu0 0.0
      %2841 = vmatpush1.msra.mxu0 %v393
      %2842 = vmatprep.subr.mxu0 0.0
      %2843 = vmatpush2.msra.mxu0 0.0
      %2844 = vmatprep.subr.mxu0 0.0
      %2845 = vmatpush2.msra.mxu0 0.0
      %2846 = vmatprep.subr.mxu0 0.0
      %2847 = vmatpush2.msra.mxu0 0.0
      %2848 = vmatprep.subr.mxu0 0.0
      %2849 = vmatpush2.msra.mxu0 0.0
      %2850 = vmatprep.subr.mxu0 0.0
      %2851 = vmatpush2.msra.mxu0 0.0
      %2852 = vmatprep.subr.mxu0 0.0
      %2853 = vmatpush2.msra.mxu0 0.0
      %2854 = vmatprep.subr.mxu0 0.0
      %2855 = vmatpush2.msra.mxu0 0.0
      %2856 = vmatprep.subr.mxu0 0.0
      %2857 = vmatpush2.msra.mxu0 0.0
      %2858 = vmatprep.subr.mxu0 0.0
      %2859 = vmatpush2.msra.mxu0 0.0
      %2860 = vmatprep.subr.mxu0 0.0
      %2861 = vmatpush2.msra.mxu0 0.0
      %2862 = vmatprep.subr.mxu0 0.0
      %2863 = vmatpush2.msra.mxu0 0.0
      %2864 = vmatprep.subr.mxu0 0.0
      %2865 = vmatpush2.msra.mxu0 0.0
      %2866 = vmatprep.subr.mxu0 0.0
      %2867 = vmatpush2.msra.mxu0 0.0
      %2868 = vmatprep.subr.mxu0 0.0
      %2869 = vmatpush2.msra.mxu0 0.0
      %2870 = vmatprep.subr.mxu0 0.0
      %2871 = vmatpush2.msra.mxu0 0.0
      %2872 = vmatprep.subr.mxu0 0.0
      %2873 = vmatpush2.msra.mxu0 0.0
      %2874 = vmatprep.mubr.f32.mxu0 0.0
      %2875 = vmatmul.mubr.f32.gmra.mxu0 %v2805
      %v2876 = vpop.f32.mrf.mxu0
      %v2877 = vadd.f32 0.0, %v2876
      %v2878 = vpop.f32.mrf.mxu0
      %2879 = vmatprep.mubr.f32.mxu0 0.0
      %2880 = vmatmul.mubr.f32.gmra.mxu0 %v2808
      %v2881 = vpop.f32.mrf.mxu0
      %v2882 = vadd.f32 0.0, %v2881
      %v2883 = vpop.f32.mrf.mxu0
      %2884 = vdwg.mxu0
      %v2886 = vsel %vm1884, %v2221, 0
      %v2889 = vsel %vm1884, %v2222, 0
      %2891 = vmatprep.subr.mxu0 0.0
      %2892 = vmatpush1.msra.mxu0 0.0
      %2893 = vmatprep.subr.mxu0 0.0
      %2894 = vmatpush1.msra.mxu0 0.0
      %2895 = vmatprep.subr.mxu0 0.0
      %2896 = vmatpush1.msra.mxu0 0.0
      %2897 = vmatprep.subr.mxu0 0.0
      %2898 = vmatpush1.msra.mxu0 0.0
      %2899 = vmatprep.subr.mxu0 0.0
      %2900 = vmatpush1.msra.mxu0 0.0
      %2901 = vmatprep.subr.mxu0 0.0
      %2902 = vmatpush1.msra.mxu0 0.0
      %2903 = vmatprep.subr.mxu0 0.0
      %2904 = vmatpush1.msra.mxu0 0.0
      %2905 = vmatprep.subr.mxu0 0.0
      %2906 = vmatpush1.msra.mxu0 0.0
      %2907 = vmatprep.subr.mxu0 0.0
      %2908 = vmatpush1.msra.mxu0 0.0
      %2909 = vmatprep.subr.mxu0 0.0
      %2910 = vmatpush1.msra.mxu0 0.0
      %2911 = vmatprep.subr.mxu0 0.0
      %2912 = vmatpush1.msra.mxu0 0.0
      %2913 = vmatprep.subr.mxu0 0.0
      %2914 = vmatpush1.msra.mxu0 0.0
      %2915 = vmatprep.subr.mxu0 0.0
      %2916 = vmatpush1.msra.mxu0 0.0
      %2917 = vmatprep.subr.mxu0 0.0
      %2918 = vmatpush1.msra.mxu0 0.0
      %2919 = vmatprep.subr.mxu0 0.0
      %2920 = vmatpush1.msra.mxu0 %v396
      %2921 = vmatprep.subr.mxu0 0.0
      %2922 = vmatpush1.msra.mxu0 %v395
      %2923 = vmatprep.subr.mxu0 0.0
      %2924 = vmatpush2.msra.mxu0 0.0
      %2925 = vmatprep.subr.mxu0 0.0
      %2926 = vmatpush2.msra.mxu0 0.0
      %2927 = vmatprep.subr.mxu0 0.0
      %2928 = vmatpush2.msra.mxu0 0.0
      %2929 = vmatprep.subr.mxu0 0.0
      %2930 = vmatpush2.msra.mxu0 0.0
      %2931 = vmatprep.subr.mxu0 0.0
      %2932 = vmatpush2.msra.mxu0 0.0
      %2933 = vmatprep.subr.mxu0 0.0
      %2934 = vmatpush2.msra.mxu0 0.0
      %2935 = vmatprep.subr.mxu0 0.0
      %2936 = vmatpush2.msra.mxu0 0.0
      %2937 = vmatprep.subr.mxu0 0.0
      %2938 = vmatpush2.msra.mxu0 0.0
      %2939 = vmatprep.subr.mxu0 0.0
      %2940 = vmatpush2.msra.mxu0 0.0
      %2941 = vmatprep.subr.mxu0 0.0
      %2942 = vmatpush2.msra.mxu0 0.0
      %2943 = vmatprep.subr.mxu0 0.0
      %2944 = vmatpush2.msra.mxu0 0.0
      %2945 = vmatprep.subr.mxu0 0.0
      %2946 = vmatpush2.msra.mxu0 0.0
      %2947 = vmatprep.subr.mxu0 0.0
      %2948 = vmatpush2.msra.mxu0 0.0
      %2949 = vmatprep.subr.mxu0 0.0
      %2950 = vmatpush2.msra.mxu0 0.0
      %2951 = vmatprep.subr.mxu0 0.0
      %2952 = vmatpush2.msra.mxu0 0.0
      %2953 = vmatprep.subr.mxu0 0.0
      %2954 = vmatpush2.msra.mxu0 0.0
      %2955 = vmatprep.mubr.f32.mxu0 0.0
      %2956 = vmatmul.mubr.f32.gmra.mxu0 %v2886
      %v2957 = vpop.f32.mrf.mxu0
      %v2958 = vadd.f32 0.0, %v2957
      %v2959 = vpop.f32.mrf.mxu0
      %2960 = vmatprep.mubr.f32.mxu0 0.0
      %2961 = vmatmul.mubr.f32.gmra.mxu0 %v2889
      %v2962 = vpop.f32.mrf.mxu0
      %v2963 = vadd.f32 0.0, %v2962
      %v2964 = vpop.f32.mrf.mxu0
      %2965 = vdwg.mxu0
      %v2967 = vsel %vm1884, %v2223, 0
      %v2970 = vsel %vm1884, %v2224, 0
      %2972 = vmatprep.subr.mxu0 0.0
      %2973 = vmatpush1.msra.mxu0 0.0
      %2974 = vmatprep.subr.mxu0 0.0
      %2975 = vmatpush1.msra.mxu0 0.0
      %2976 = vmatprep.subr.mxu0 0.0
      %2977 = vmatpush1.msra.mxu0 0.0
      %2978 = vmatprep.subr.mxu0 0.0
      %2979 = vmatpush1.msra.mxu0 0.0
      %2980 = vmatprep.subr.mxu0 0.0
      %2981 = vmatpush1.msra.mxu0 0.0
      %2982 = vmatprep.subr.mxu0 0.0
      %2983 = vmatpush1.msra.mxu0 0.0
      %2984 = vmatprep.subr.mxu0 0.0
      %2985 = vmatpush1.msra.mxu0 0.0
      %2986 = vmatprep.subr.mxu0 0.0
      %2987 = vmatpush1.msra.mxu0 0.0
      %2988 = vmatprep.subr.mxu0 0.0
      %2989 = vmatpush1.msra.mxu0 0.0
      %2990 = vmatprep.subr.mxu0 0.0
      %2991 = vmatpush1.msra.mxu0 0.0
      %2992 = vmatprep.subr.mxu0 0.0
      %2993 = vmatpush1.msra.mxu0 0.0
      %2994 = vmatprep.subr.mxu0 0.0
      %2995 = vmatpush1.msra.mxu0 0.0
      %2996 = vmatprep.subr.mxu0 0.0
      %2997 = vmatpush1.msra.mxu0 0.0
      %2998 = vmatprep.subr.mxu0 0.0
      %2999 = vmatpush1.msra.mxu0 0.0
      %3000 = vmatprep.subr.mxu0 0.0
      %3001 = vmatpush1.msra.mxu0 %v398
      %3002 = vmatprep.subr.mxu0 0.0
      %3003 = vmatpush1.msra.mxu0 %v397
      %3004 = vmatprep.subr.mxu0 0.0
      %3005 = vmatpush2.msra.mxu0 0.0
      %3006 = vmatprep.subr.mxu0 0.0
      %3007 = vmatpush2.msra.mxu0 0.0
      %3008 = vmatprep.subr.mxu0 0.0
      %3009 = vmatpush2.msra.mxu0 0.0
      %3010 = vmatprep.subr.mxu0 0.0
      %3011 = vmatpush2.msra.mxu0 0.0
      %3012 = vmatprep.subr.mxu0 0.0
      %3013 = vmatpush2.msra.mxu0 0.0
      %3014 = vmatprep.subr.mxu0 0.0
      %3015 = vmatpush2.msra.mxu0 0.0
      %3016 = vmatprep.subr.mxu0 0.0
      %3017 = vmatpush2.msra.mxu0 0.0
      %3018 = vmatprep.subr.mxu0 0.0
      %3019 = vmatpush2.msra.mxu0 0.0
      %3020 = vmatprep.subr.mxu0 0.0
      %3021 = vmatpush2.msra.mxu0 0.0
      %3022 = vmatprep.subr.mxu0 0.0
      %3023 = vmatpush2.msra.mxu0 0.0
      %3024 = vmatprep.subr.mxu0 0.0
      %3025 = vmatpush2.msra.mxu0 0.0
      %3026 = vmatprep.subr.mxu0 0.0
      %3027 = vmatpush2.msra.mxu0 0.0
      %3028 = vmatprep.subr.mxu0 0.0
      %3029 = vmatpush2.msra.mxu0 0.0
      %3030 = vmatprep.subr.mxu0 0.0
      %3031 = vmatpush2.msra.mxu0 0.0
      %3032 = vmatprep.subr.mxu0 0.0
      %3033 = vmatpush2.msra.mxu0 0.0
      %3034 = vmatprep.subr.mxu0 0.0
      %3035 = vmatpush2.msra.mxu0 0.0
      %3036 = vmatprep.mubr.f32.mxu0 0.0
      %3037 = vmatmul.mubr.f32.gmra.mxu0 %v2967
      %v3038 = vpop.f32.mrf.mxu0
      %v3039 = vadd.f32 0.0, %v3038
      %v3040 = vpop.f32.mrf.mxu0
      %3041 = vmatprep.mubr.f32.mxu0 0.0
      %3042 = vmatmul.mubr.f32.gmra.mxu0 %v2970
      %v3043 = vpop.f32.mrf.mxu0
      %v3044 = vadd.f32 0.0, %v3043
      %v3045 = vpop.f32.mrf.mxu0
      %3046 = vdwg.mxu0
      %v3048 = vsel %vm1884, %v2225, 0
      %v3051 = vsel %vm1884, %v2226, 0
      %3053 = vmatprep.subr.mxu0 0.0
      %3054 = vmatpush1.msra.mxu0 0.0
      %3055 = vmatprep.subr.mxu0 0.0
      %3056 = vmatpush1.msra.mxu0 0.0
      %3057 = vmatprep.subr.mxu0 0.0
      %3058 = vmatpush1.msra.mxu0 0.0
      %3059 = vmatprep.subr.mxu0 0.0
      %3060 = vmatpush1.msra.mxu0 0.0
      %3061 = vmatprep.subr.mxu0 0.0
      %3062 = vmatpush1.msra.mxu0 0.0
      %3063 = vmatprep.subr.mxu0 0.0
      %3064 = vmatpush1.msra.mxu0 0.0
      %3065 = vmatprep.subr.mxu0 0.0
      %3066 = vmatpush1.msra.mxu0 0.0
      %3067 = vmatprep.subr.mxu0 0.0
      %3068 = vmatpush1.msra.mxu0 0.0
      %3069 = vmatprep.subr.mxu0 0.0
      %3070 = vmatpush1.msra.mxu0 0.0
      %3071 = vmatprep.subr.mxu0 0.0
      %3072 = vmatpush1.msra.mxu0 0.0
      %3073 = vmatprep.subr.mxu0 0.0
      %3074 = vmatpush1.msra.mxu0 0.0
      %3075 = vmatprep.subr.mxu0 0.0
      %3076 = vmatpush1.msra.mxu0 0.0
      %3077 = vmatprep.subr.mxu0 0.0
      %3078 = vmatpush1.msra.mxu0 0.0
      %3079 = vmatprep.subr.mxu0 0.0
      %3080 = vmatpush1.msra.mxu0 0.0
      %3081 = vmatprep.subr.mxu0 0.0
      %3082 = vmatpush1.msra.mxu0 %v400
      %3083 = vmatprep.subr.mxu0 0.0
      %3084 = vmatpush1.msra.mxu0 %v399
      %3085 = vmatprep.subr.mxu0 0.0
      %3086 = vmatpush2.msra.mxu0 0.0
      %3087 = vmatprep.subr.mxu0 0.0
      %3088 = vmatpush2.msra.mxu0 0.0
      %3089 = vmatprep.subr.mxu0 0.0
      %3090 = vmatpush2.msra.mxu0 0.0
      %3091 = vmatprep.subr.mxu0 0.0
      %3092 = vmatpush2.msra.mxu0 0.0
      %3093 = vmatprep.subr.mxu0 0.0
      %3094 = vmatpush2.msra.mxu0 0.0
      %3095 = vmatprep.subr.mxu0 0.0
      %3096 = vmatpush2.msra.mxu0 0.0
      %3097 = vmatprep.subr.mxu0 0.0
      %3098 = vmatpush2.msra.mxu0 0.0
      %3099 = vmatprep.subr.mxu0 0.0
      %3100 = vmatpush2.msra.mxu0 0.0
      %3101 = vmatprep.subr.mxu0 0.0
      %3102 = vmatpush2.msra.mxu0 0.0
      %3103 = vmatprep.subr.mxu0 0.0
      %3104 = vmatpush2.msra.mxu0 0.0
      %3105 = vmatprep.subr.mxu0 0.0
      %3106 = vmatpush2.msra.mxu0 0.0
      %3107 = vmatprep.subr.mxu0 0.0
      %3108 = vmatpush2.msra.mxu0 0.0
      %3109 = vmatprep.subr.mxu0 0.0
      %3110 = vmatpush2.msra.mxu0 0.0
      %3111 = vmatprep.subr.mxu0 0.0
      %3112 = vmatpush2.msra.mxu0 0.0
      %3113 = vmatprep.subr.mxu0 0.0
      %3114 = vmatpush2.msra.mxu0 0.0
      %3115 = vmatprep.subr.mxu0 0.0
      %3116 = vmatpush2.msra.mxu0 0.0
      %3117 = vmatprep.mubr.f32.mxu0 0.0
      %3118 = vmatmul.mubr.f32.gmra.mxu0 %v3048
      %v3119 = vpop.f32.mrf.mxu0
      %v3120 = vadd.f32 0.0, %v3119
      %v3121 = vpop.f32.mrf.mxu0
      %3122 = vmatprep.mubr.f32.mxu0 0.0
      %3123 = vmatmul.mubr.f32.gmra.mxu0 %v3051
      %v3124 = vpop.f32.mrf.mxu0
      %v3125 = vadd.f32 0.0, %v3124
      %v3126 = vpop.f32.mrf.mxu0
      %3127 = vdwg.mxu0
      %v3129 = vsel %vm1884, %v2227, 0
      %v3132 = vsel %vm1884, %v2228, 0
      %3134 = vmatprep.subr.mxu0 0.0
      %3135 = vmatpush1.msra.mxu0 0.0
      %3136 = vmatprep.subr.mxu0 0.0
      %3137 = vmatpush1.msra.mxu0 0.0
      %3138 = vmatprep.subr.mxu0 0.0
      %3139 = vmatpush1.msra.mxu0 0.0
      %3140 = vmatprep.subr.mxu0 0.0
      %3141 = vmatpush1.msra.mxu0 0.0
      %3142 = vmatprep.subr.mxu0 0.0
      %3143 = vmatpush1.msra.mxu0 0.0
      %3144 = vmatprep.subr.mxu0 0.0
      %3145 = vmatpush1.msra.mxu0 0.0
      %3146 = vmatprep.subr.mxu0 0.0
      %3147 = vmatpush1.msra.mxu0 0.0
      %3148 = vmatprep.subr.mxu0 0.0
      %3149 = vmatpush1.msra.mxu0 0.0
      %3150 = vmatprep.subr.mxu0 0.0
      %3151 = vmatpush1.msra.mxu0 0.0
      %3152 = vmatprep.subr.mxu0 0.0
      %3153 = vmatpush1.msra.mxu0 0.0
      %3154 = vmatprep.subr.mxu0 0.0
      %3155 = vmatpush1.msra.mxu0 0.0
      %3156 = vmatprep.subr.mxu0 0.0
      %3157 = vmatpush1.msra.mxu0 0.0
      %3158 = vmatprep.subr.mxu0 0.0
      %3159 = vmatpush1.msra.mxu0 0.0
      %3160 = vmatprep.subr.mxu0 0.0
      %3161 = vmatpush1.msra.mxu0 0.0
      %3162 = vmatprep.subr.mxu0 0.0
      %3163 = vmatpush1.msra.mxu0 %v402
      %3164 = vmatprep.subr.mxu0 0.0
      %3165 = vmatpush1.msra.mxu0 %v401
      %3166 = vmatprep.subr.mxu0 0.0
      %3167 = vmatpush2.msra.mxu0 0.0
      %3168 = vmatprep.subr.mxu0 0.0
      %3169 = vmatpush2.msra.mxu0 0.0
      %3170 = vmatprep.subr.mxu0 0.0
      %3171 = vmatpush2.msra.mxu0 0.0
      %3172 = vmatprep.subr.mxu0 0.0
      %3173 = vmatpush2.msra.mxu0 0.0
      %3174 = vmatprep.subr.mxu0 0.0
      %3175 = vmatpush2.msra.mxu0 0.0
      %3176 = vmatprep.subr.mxu0 0.0
      %3177 = vmatpush2.msra.mxu0 0.0
      %3178 = vmatprep.subr.mxu0 0.0
      %3179 = vmatpush2.msra.mxu0 0.0
      %3180 = vmatprep.subr.mxu0 0.0
      %3181 = vmatpush2.msra.mxu0 0.0
      %3182 = vmatprep.subr.mxu0 0.0
      %3183 = vmatpush2.msra.mxu0 0.0
      %3184 = vmatprep.subr.mxu0 0.0
      %3185 = vmatpush2.msra.mxu0 0.0
      %3186 = vmatprep.subr.mxu0 0.0
      %3187 = vmatpush2.msra.mxu0 0.0
      %3188 = vmatprep.subr.mxu0 0.0
      %3189 = vmatpush2.msra.mxu0 0.0
      %3190 = vmatprep.subr.mxu0 0.0
      %3191 = vmatpush2.msra.mxu0 0.0
      %3192 = vmatprep.subr.mxu0 0.0
      %3193 = vmatpush2.msra.mxu0 0.0
      %3194 = vmatprep.subr.mxu0 0.0
      %3195 = vmatpush2.msra.mxu0 0.0
      %3196 = vmatprep.subr.mxu0 0.0
      %3197 = vmatpush2.msra.mxu0 0.0
      %3198 = vmatprep.mubr.f32.mxu0 0.0
      %3199 = vmatmul.mubr.f32.gmra.mxu0 %v3129
      %v3200 = vpop.f32.mrf.mxu0
      %v3201 = vadd.f32 0.0, %v3200
      %v3202 = vpop.f32.mrf.mxu0
      %3203 = vmatprep.mubr.f32.mxu0 0.0
      %3204 = vmatmul.mubr.f32.gmra.mxu0 %v3132
      %v3205 = vpop.f32.mrf.mxu0
      %v3206 = vadd.f32 0.0, %v3205
      %v3207 = vpop.f32.mrf.mxu0
      %3208 = vdwg.mxu0
      %v3210 = vsel %vm1884, %v2229, 0
      %v3213 = vsel %vm1884, %v2230, 0
      %3215 = vmatprep.subr.mxu0 0.0
      %3216 = vmatpush1.msra.mxu0 0.0
      %3217 = vmatprep.subr.mxu0 0.0
      %3218 = vmatpush1.msra.mxu0 0.0
      %3219 = vmatprep.subr.mxu0 0.0
      %3220 = vmatpush1.msra.mxu0 0.0
      %3221 = vmatprep.subr.mxu0 0.0
      %3222 = vmatpush1.msra.mxu0 0.0
      %3223 = vmatprep.subr.mxu0 0.0
      %3224 = vmatpush1.msra.mxu0 0.0
      %3225 = vmatprep.subr.mxu0 0.0
      %3226 = vmatpush1.msra.mxu0 0.0
      %3227 = vmatprep.subr.mxu0 0.0
      %3228 = vmatpush1.msra.mxu0 0.0
      %3229 = vmatprep.subr.mxu0 0.0
      %3230 = vmatpush1.msra.mxu0 0.0
      %3231 = vmatprep.subr.mxu0 0.0
      %3232 = vmatpush1.msra.mxu0 0.0
      %3233 = vmatprep.subr.mxu0 0.0
      %3234 = vmatpush1.msra.mxu0 0.0
      %3235 = vmatprep.subr.mxu0 0.0
      %3236 = vmatpush1.msra.mxu0 0.0
      %3237 = vmatprep.subr.mxu0 0.0
      %3238 = vmatpush1.msra.mxu0 0.0
      %3239 = vmatprep.subr.mxu0 0.0
      %3240 = vmatpush1.msra.mxu0 0.0
      %3241 = vmatprep.subr.mxu0 0.0
      %3242 = vmatpush1.msra.mxu0 0.0
      %3243 = vmatprep.subr.mxu0 0.0
      %3244 = vmatpush1.msra.mxu0 %v404
      %3245 = vmatprep.subr.mxu0 0.0
      %3246 = vmatpush1.msra.mxu0 %v403
      %3247 = vmatprep.subr.mxu0 0.0
      %3248 = vmatpush2.msra.mxu0 0.0
      %3249 = vmatprep.subr.mxu0 0.0
      %3250 = vmatpush2.msra.mxu0 0.0
      %3251 = vmatprep.subr.mxu0 0.0
      %3252 = vmatpush2.msra.mxu0 0.0
      %3253 = vmatprep.subr.mxu0 0.0
      %3254 = vmatpush2.msra.mxu0 0.0
      %3255 = vmatprep.subr.mxu0 0.0
      %3256 = vmatpush2.msra.mxu0 0.0
      %3257 = vmatprep.subr.mxu0 0.0
      %3258 = vmatpush2.msra.mxu0 0.0
      %3259 = vmatprep.subr.mxu0 0.0
      %3260 = vmatpush2.msra.mxu0 0.0
      %3261 = vmatprep.subr.mxu0 0.0
      %3262 = vmatpush2.msra.mxu0 0.0
      %3263 = vmatprep.subr.mxu0 0.0
      %3264 = vmatpush2.msra.mxu0 0.0
      %3265 = vmatprep.subr.mxu0 0.0
      %3266 = vmatpush2.msra.mxu0 0.0
      %3267 = vmatprep.subr.mxu0 0.0
      %3268 = vmatpush2.msra.mxu0 0.0
      %3269 = vmatprep.subr.mxu0 0.0
      %3270 = vmatpush2.msra.mxu0 0.0
      %3271 = vmatprep.subr.mxu0 0.0
      %3272 = vmatpush2.msra.mxu0 0.0
      %3273 = vmatprep.subr.mxu0 0.0
      %3274 = vmatpush2.msra.mxu0 0.0
      %3275 = vmatprep.subr.mxu0 0.0
      %3276 = vmatpush2.msra.mxu0 0.0
      %3277 = vmatprep.subr.mxu0 0.0
      %3278 = vmatpush2.msra.mxu0 0.0
      %3279 = vmatprep.mubr.f32.mxu0 0.0
      %3280 = vmatmul.mubr.f32.gmra.mxu0 %v3210
      %v3281 = vpop.f32.mrf.mxu0
      %v3282 = vadd.f32 0.0, %v3281
      %v3283 = vpop.f32.mrf.mxu0
      %3284 = vmatprep.mubr.f32.mxu0 0.0
      %3285 = vmatmul.mubr.f32.gmra.mxu0 %v3213
      %v3286 = vpop.f32.mrf.mxu0
      %v3287 = vadd.f32 0.0, %v3286
      %v3288 = vpop.f32.mrf.mxu0
      %3289 = vdwg.mxu0
      %v3291 = vsel %vm1884, %v2231, 0
      %v3294 = vsel %vm1884, %v2232, 0
      %3296 = vmatprep.subr.mxu0 0.0
      %3297 = vmatpush1.msra.mxu0 0.0
      %3298 = vmatprep.subr.mxu0 0.0
      %3299 = vmatpush1.msra.mxu0 0.0
      %3300 = vmatprep.subr.mxu0 0.0
      %3301 = vmatpush1.msra.mxu0 0.0
      %3302 = vmatprep.subr.mxu0 0.0
      %3303 = vmatpush1.msra.mxu0 0.0
      %3304 = vmatprep.subr.mxu0 0.0
      %3305 = vmatpush1.msra.mxu0 0.0
      %3306 = vmatprep.subr.mxu0 0.0
      %3307 = vmatpush1.msra.mxu0 0.0
      %3308 = vmatprep.subr.mxu0 0.0
      %3309 = vmatpush1.msra.mxu0 0.0
      %3310 = vmatprep.subr.mxu0 0.0
      %3311 = vmatpush1.msra.mxu0 0.0
      %3312 = vmatprep.subr.mxu0 0.0
      %3313 = vmatpush1.msra.mxu0 0.0
      %3314 = vmatprep.subr.mxu0 0.0
      %3315 = vmatpush1.msra.mxu0 0.0
      %3316 = vmatprep.subr.mxu0 0.0
      %3317 = vmatpush1.msra.mxu0 0.0
      %3318 = vmatprep.subr.mxu0 0.0
      %3319 = vmatpush1.msra.mxu0 0.0
      %3320 = vmatprep.subr.mxu0 0.0
      %3321 = vmatpush1.msra.mxu0 0.0
      %3322 = vmatprep.subr.mxu0 0.0
      %3323 = vmatpush1.msra.mxu0 0.0
      %3324 = vmatprep.subr.mxu0 0.0
      %3325 = vmatpush1.msra.mxu0 %v406
      %3326 = vmatprep.subr.mxu0 0.0
      %3327 = vmatpush1.msra.mxu0 %v405
      %3328 = vmatprep.subr.mxu0 0.0
      %3329 = vmatpush2.msra.mxu0 0.0
      %3330 = vmatprep.subr.mxu0 0.0
      %3331 = vmatpush2.msra.mxu0 0.0
      %3332 = vmatprep.subr.mxu0 0.0
      %3333 = vmatpush2.msra.mxu0 0.0
      %3334 = vmatprep.subr.mxu0 0.0
      %3335 = vmatpush2.msra.mxu0 0.0
      %3336 = vmatprep.subr.mxu0 0.0
      %3337 = vmatpush2.msra.mxu0 0.0
      %3338 = vmatprep.subr.mxu0 0.0
      %3339 = vmatpush2.msra.mxu0 0.0
      %3340 = vmatprep.subr.mxu0 0.0
      %3341 = vmatpush2.msra.mxu0 0.0
      %3342 = vmatprep.subr.mxu0 0.0
      %3343 = vmatpush2.msra.mxu0 0.0
      %3344 = vmatprep.subr.mxu0 0.0
      %3345 = vmatpush2.msra.mxu0 0.0
      %3346 = vmatprep.subr.mxu0 0.0
      %3347 = vmatpush2.msra.mxu0 0.0
      %3348 = vmatprep.subr.mxu0 0.0
      %3349 = vmatpush2.msra.mxu0 0.0
      %3350 = vmatprep.subr.mxu0 0.0
      %3351 = vmatpush2.msra.mxu0 0.0
      %3352 = vmatprep.subr.mxu0 0.0
      %3353 = vmatpush2.msra.mxu0 0.0
      %3354 = vmatprep.subr.mxu0 0.0
      %3355 = vmatpush2.msra.mxu0 0.0
      %3356 = vmatprep.subr.mxu0 0.0
      %3357 = vmatpush2.msra.mxu0 0.0
      %3358 = vmatprep.subr.mxu0 0.0
      %3359 = vmatpush2.msra.mxu0 0.0
      %3360 = vmatprep.mubr.f32.mxu0 0.0
      %3361 = vmatmul.mubr.f32.gmra.mxu0 %v3291
      %v3362 = vpop.f32.mrf.mxu0
      %v3363 = vadd.f32 0.0, %v3362
      %v3364 = vpop.f32.mrf.mxu0
      %3365 = vmatprep.mubr.f32.mxu0 0.0
      %3366 = vmatmul.mubr.f32.gmra.mxu0 %v3294
      %v3367 = vpop.f32.mrf.mxu0
      %v3368 = vadd.f32 0.0, %v3367
      %v3369 = vpop.f32.mrf.mxu0
      %3370 = vdwg.mxu0
      %v3372 = vsel %vm1884, %v2233, 0
      %v3375 = vsel %vm1884, %v2234, 0
      %3377 = vmatprep.subr.mxu0 0.0
      %3378 = vmatpush1.msra.mxu0 0.0
      %3379 = vmatprep.subr.mxu0 0.0
      %3380 = vmatpush1.msra.mxu0 0.0
      %3381 = vmatprep.subr.mxu0 0.0
      %3382 = vmatpush1.msra.mxu0 0.0
      %3383 = vmatprep.subr.mxu0 0.0
      %3384 = vmatpush1.msra.mxu0 0.0
      %3385 = vmatprep.subr.mxu0 0.0
      %3386 = vmatpush1.msra.mxu0 0.0
      %3387 = vmatprep.subr.mxu0 0.0
      %3388 = vmatpush1.msra.mxu0 0.0
      %3389 = vmatprep.subr.mxu0 0.0
      %3390 = vmatpush1.msra.mxu0 0.0
      %3391 = vmatprep.subr.mxu0 0.0
      %3392 = vmatpush1.msra.mxu0 0.0
      %3393 = vmatprep.subr.mxu0 0.0
      %3394 = vmatpush1.msra.mxu0 0.0
      %3395 = vmatprep.subr.mxu0 0.0
      %3396 = vmatpush1.msra.mxu0 0.0
      %3397 = vmatprep.subr.mxu0 0.0
      %3398 = vmatpush1.msra.mxu0 0.0
      %3399 = vmatprep.subr.mxu0 0.0
      %3400 = vmatpush1.msra.mxu0 0.0
      %3401 = vmatprep.subr.mxu0 0.0
      %3402 = vmatpush1.msra.mxu0 0.0
      %3403 = vmatprep.subr.mxu0 0.0
      %3404 = vmatpush1.msra.mxu0 0.0
      %3405 = vmatprep.subr.mxu0 0.0
      %3406 = vmatpush1.msra.mxu0 %v408
      %3407 = vmatprep.subr.mxu0 0.0
      %3408 = vmatpush1.msra.mxu0 %v407
      %3409 = vmatprep.subr.mxu0 0.0
      %3410 = vmatpush2.msra.mxu0 0.0
      %3411 = vmatprep.subr.mxu0 0.0
      %3412 = vmatpush2.msra.mxu0 0.0
      %3413 = vmatprep.subr.mxu0 0.0
      %3414 = vmatpush2.msra.mxu0 0.0
      %3415 = vmatprep.subr.mxu0 0.0
      %3416 = vmatpush2.msra.mxu0 0.0
      %3417 = vmatprep.subr.mxu0 0.0
      %3418 = vmatpush2.msra.mxu0 0.0
      %3419 = vmatprep.subr.mxu0 0.0
      %3420 = vmatpush2.msra.mxu0 0.0
      %3421 = vmatprep.subr.mxu0 0.0
      %3422 = vmatpush2.msra.mxu0 0.0
      %3423 = vmatprep.subr.mxu0 0.0
      %3424 = vmatpush2.msra.mxu0 0.0
      %3425 = vmatprep.subr.mxu0 0.0
      %3426 = vmatpush2.msra.mxu0 0.0
      %3427 = vmatprep.subr.mxu0 0.0
      %3428 = vmatpush2.msra.mxu0 0.0
      %3429 = vmatprep.subr.mxu0 0.0
      %3430 = vmatpush2.msra.mxu0 0.0
      %3431 = vmatprep.subr.mxu0 0.0
      %3432 = vmatpush2.msra.mxu0 0.0
      %3433 = vmatprep.subr.mxu0 0.0
      %3434 = vmatpush2.msra.mxu0 0.0
      %3435 = vmatprep.subr.mxu0 0.0
      %3436 = vmatpush2.msra.mxu0 0.0
      %3437 = vmatprep.subr.mxu0 0.0
      %3438 = vmatpush2.msra.mxu0 0.0
      %3439 = vmatprep.subr.mxu0 0.0
      %3440 = vmatpush2.msra.mxu0 0.0
      %3441 = vmatprep.mubr.f32.mxu0 0.0
      %3442 = vmatmul.mubr.f32.gmra.mxu0 %v3372
      %v3443 = vpop.f32.mrf.mxu0
      %v3444 = vadd.f32 0.0, %v3443
      %v3445 = vpop.f32.mrf.mxu0
      %3446 = vmatprep.mubr.f32.mxu0 0.0
      %3447 = vmatmul.mubr.f32.gmra.mxu0 %v3375
      %v3448 = vpop.f32.mrf.mxu0
      %v3449 = vadd.f32 0.0, %v3448
      %v3450 = vpop.f32.mrf.mxu0
      %3451 = vdwg.mxu0
      %v3453 = vsel %vm1884, %v2235, 0
      %v3456 = vsel %vm1884, %v2236, 0
      %3458 = vmatprep.subr.mxu0 0.0
      %3459 = vmatpush1.msra.mxu0 0.0
      %3460 = vmatprep.subr.mxu0 0.0
      %3461 = vmatpush1.msra.mxu0 0.0
      %3462 = vmatprep.subr.mxu0 0.0
      %3463 = vmatpush1.msra.mxu0 0.0
      %3464 = vmatprep.subr.mxu0 0.0
      %3465 = vmatpush1.msra.mxu0 0.0
      %3466 = vmatprep.subr.mxu0 0.0
      %3467 = vmatpush1.msra.mxu0 0.0
      %3468 = vmatprep.subr.mxu0 0.0
      %3469 = vmatpush1.msra.mxu0 0.0
      %3470 = vmatprep.subr.mxu0 0.0
      %3471 = vmatpush1.msra.mxu0 0.0
      %3472 = vmatprep.subr.mxu0 0.0
      %3473 = vmatpush1.msra.mxu0 0.0
      %3474 = vmatprep.subr.mxu0 0.0
      %3475 = vmatpush1.msra.mxu0 0.0
      %3476 = vmatprep.subr.mxu0 0.0
      %3477 = vmatpush1.msra.mxu0 0.0
      %3478 = vmatprep.subr.mxu0 0.0
      %3479 = vmatpush1.msra.mxu0 0.0
      %3480 = vmatprep.subr.mxu0 0.0
      %3481 = vmatpush1.msra.mxu0 0.0
      %3482 = vmatprep.subr.mxu0 0.0
      %3483 = vmatpush1.msra.mxu0 0.0
      %3484 = vmatprep.subr.mxu0 0.0
      %3485 = vmatpush1.msra.mxu0 0.0
      %3486 = vmatprep.subr.mxu0 0.0
      %3487 = vmatpush1.msra.mxu0 %v410
      %3488 = vmatprep.subr.mxu0 0.0
      %3489 = vmatpush1.msra.mxu0 %v409
      %3490 = vmatprep.subr.mxu0 0.0
      %3491 = vmatpush2.msra.mxu0 0.0
      %3492 = vmatprep.subr.mxu0 0.0
      %3493 = vmatpush2.msra.mxu0 0.0
      %3494 = vmatprep.subr.mxu0 0.0
      %3495 = vmatpush2.msra.mxu0 0.0
      %3496 = vmatprep.subr.mxu0 0.0
      %3497 = vmatpush2.msra.mxu0 0.0
      %3498 = vmatprep.subr.mxu0 0.0
      %3499 = vmatpush2.msra.mxu0 0.0
      %3500 = vmatprep.subr.mxu0 0.0
      %3501 = vmatpush2.msra.mxu0 0.0
      %3502 = vmatprep.subr.mxu0 0.0
      %3503 = vmatpush2.msra.mxu0 0.0
      %3504 = vmatprep.subr.mxu0 0.0
      %3505 = vmatpush2.msra.mxu0 0.0
      %3506 = vmatprep.subr.mxu0 0.0
      %3507 = vmatpush2.msra.mxu0 0.0
      %3508 = vmatprep.subr.mxu0 0.0
      %3509 = vmatpush2.msra.mxu0 0.0
      %3510 = vmatprep.subr.mxu0 0.0
      %3511 = vmatpush2.msra.mxu0 0.0
      %3512 = vmatprep.subr.mxu0 0.0
      %3513 = vmatpush2.msra.mxu0 0.0
      %3514 = vmatprep.subr.mxu0 0.0
      %3515 = vmatpush2.msra.mxu0 0.0
      %3516 = vmatprep.subr.mxu0 0.0
      %3517 = vmatpush2.msra.mxu0 0.0
      %3518 = vmatprep.subr.mxu0 0.0
      %3519 = vmatpush2.msra.mxu0 0.0
      %3520 = vmatprep.subr.mxu0 0.0
      %3521 = vmatpush2.msra.mxu0 0.0
      %3522 = vmatprep.mubr.f32.mxu0 0.0
      %3523 = vmatmul.mubr.f32.gmra.mxu0 %v3453
      %v3524 = vpop.f32.mrf.mxu0
      %v3525 = vadd.f32 0.0, %v3524
      %v3526 = vpop.f32.mrf.mxu0
      %3527 = vmatprep.mubr.f32.mxu0 0.0
      %3528 = vmatmul.mubr.f32.gmra.mxu0 %v3456
      %v3529 = vpop.f32.mrf.mxu0
      %v3530 = vadd.f32 0.0, %v3529
      %v3531 = vpop.f32.mrf.mxu0
      %3532 = vdwg.mxu0
      %3533 = vst.msk [vmem:[%s281] sm:$0xff] %vm411, %v2310
      %3534 = vst.msk [vmem:[%s281 + $0x8] sm:$0xff] %vm411, %v2315
      %3535 = vst.msk [vmem:[%s281 + $0x10] sm:$0xff] %vm411, %v2391
      %3536 = vst.msk [vmem:[%s281 + $0x18] sm:$0xff] %vm411, %v2396
      %3537 = vst.msk [vmem:[%s281 + $0x20] sm:$0xff] %vm411, %v2472
      %3538 = vst.msk [vmem:[%s281 + $0x28] sm:$0xff] %vm411, %v2477
      %3539 = vst.msk [vmem:[%s281 + $0x30] sm:$0xff] %vm411, %v2553
      %3540 = vst.msk [vmem:[%s281 + $0x38] sm:$0xff] %vm411, %v2558
      %3541 = vst.msk [vmem:[%s281 + $0x40] sm:$0xff] %vm411, %v2634
      %3542 = vst.msk [vmem:[%s281 + $0x48] sm:$0xff] %vm411, %v2639
      %3543 = vst.msk [vmem:[%s281 + $0x50] sm:$0xff] %vm411, %v2715
      %3544 = vst.msk [vmem:[%s281 + $0x58] sm:$0xff] %vm411, %v2720
      %3545 = vst.msk [vmem:[%s281 + $0x60] sm:$0xff] %vm411, %v2796
      %3546 = vst.msk [vmem:[%s281 + $0x68] sm:$0xff] %vm411, %v2801
      %3547 = vst.msk [vmem:[%s281 + $0x70] sm:$0xff] %vm411, %v2877
      %3548 = vst.msk [vmem:[%s281 + $0x78] sm:$0xff] %vm411, %v2882
      %3549 = vst.msk [vmem:[%s281 + $0x80] sm:$0xff] %vm411, %v2958
      %3550 = vst.msk [vmem:[%s281 + $0x88] sm:$0xff] %vm411, %v2963
      %3551 = vst.msk [vmem:[%s281 + $0x90] sm:$0xff] %vm411, %v3039
      %3552 = vst.msk [vmem:[%s281 + $0x98] sm:$0xff] %vm411, %v3044
      %3553 = vst.msk [vmem:[%s281 + $0xa0] sm:$0xff] %vm411, %v3120
      %3554 = vst.msk [vmem:[%s281 + $0xa8] sm:$0xff] %vm411, %v3125
      %3555 = vst.msk [vmem:[%s281 + $0xb0] sm:$0xff] %vm411, %v3201
      %3556 = vst.msk [vmem:[%s281 + $0xb8] sm:$0xff] %vm411, %v3206
      %3557 = vst.msk [vmem:[%s281 + $0xc0] sm:$0xff] %vm411, %v3282
      %3558 = vst.msk [vmem:[%s281 + $0xc8] sm:$0xff] %vm411, %v3287
      %3559 = vst.msk [vmem:[%s281 + $0xd0] sm:$0xff] %vm411, %v3363
      %3560 = vst.msk [vmem:[%s281 + $0xd8] sm:$0xff] %vm411, %v3368
      %3561 = vst.msk [vmem:[%s281 + $0xe0] sm:$0xff] %vm411, %v3444
      %3562 = vst.msk [vmem:[%s281 + $0xe8] sm:$0xff] %vm411, %v3449
      %3563 = vst.msk [vmem:[%s281 + $0xf0] sm:$0xff] %vm411, %v3525
      %3564 = vst.msk [vmem:[%s281 + $0xf8] sm:$0xff] %vm411, %v3530
      %s3565 = smul.u32 4, %s16
      %p3566 = scmp.lt.s32.totalorder %s3565, 7
      %s3567 = scalar_select %p3566, %s3565, 7
      %s3568 = smul.addr %s3567, 8
      %s3569 = smul.addr %s3568, 8
      %s3570 = scalar_lea.vmem %s5, %s3569
      // Predicated region
      $region41: #{window_attention_forward.4} parent=39 // pred_check
        %p3571 = pneg %p154
      $region42: #{window_attention_forward.4} parent=39 // pred_check_branch
        %3573 = sbr.rel (%p3571) target = $region44
      $region43: #{window_attention_forward.4} parent=39 // pred_region
        %s3574 = smul.u32 4, %s16
      $region44: #{window_attention_forward.4} parent=39 // pred_fallthru
        _
    $region40: #{window_attention_forward.4} parent=5 // pred_fallthru
      _
    %p3575 = scmp.le.s32.totalorder 2, %s11
    // Predicated region
    $region45: #{window_attention_forward.4} parent=5 // pred_check
      %p3576 = pneg %p3575
    $region46: #{window_attention_forward.4} parent=5 // pred_check_branch
      %3578 = sbr.rel (%p3576) target = $region48
    $region47: #{window_attention_forward.4} parent=5 // pred_region
      %s3579 = ssub.s32 %s11, 2
      // Predicated region
      $region49: #{window_attention_forward.4} parent=47 // pred_check
        %p3580 = pneg %p160
      $region50: #{window_attention_forward.4} parent=47 // pred_check_branch
        %3582 = sbr.rel (%p3580) target = $region52
      $region51: #{window_attention_forward.4} parent=47 // pred_region
        %s3583 = smul.u32 4, %s17
        %p3584 = scmp.lt.s32.totalorder %s3583, 7
        %s3585 = scalar_select %p3584, %s3583, 7
        %s3586 = smul.addr %s3585, 8
        %s3587 = smul.addr %s3586, 8
        %s3588 = scalar_lea.vmem %s5, %s3587
      $region52: #{window_attention_forward.4} parent=47 // pred_fallthru
        _
    $region48: #{window_attention_forward.4} parent=5 // pred_fallthru
      _
  $region6: #{window_attention_forward.4} parent=0 // loop_footer
    %s15 = sadd.s32 1, %s11
  $region7: #{window_attention_forward.4} parent=0 // loop_footer_branch
    %10 = sbr.rel target = $region3
  $region8: #{window_attention_forward.4} parent=0 // loop_exit
    _

</llo_original>
